<compile_context>
chip_gen: v7x
topology: tpu7x:2x2x1
jax: 0.10.0
libtpu: 0.0.40
codegen_flags: <defaults>
</compile_context>

<pallas_src>
from functools import partial

import jax
import jax.numpy as jnp
from jax.experimental import pallas as pl
from jax.experimental.pallas import tpu as pltpu
import numpy as np

# ---- small, CLIP-consistent synthetic sizes ---------------------------------
N = 16         # batch (number of prompts)
L = 8          # context length
D = 32         # transformer width
H = 4          # attention heads
DH = D // H    # head dim
E = 32         # text projection output dim
LAYERS = 2     # transformer depth
TN = 8         # batch tile (rows per grid step = TN*L); multiple of 8 keeps output blocks sublane-aligned
NB = N // TN   # number of batch tiles
EPS = 1e-5     # LayerNorm eps (CLIP)
NEG_INF = -1e30  # large finite negative for causal mask (avoids -inf NaN pitfalls)

assert N % TN == 0


def _bf16_gelu_gate_ok():
    # v6e/v7x EUP supports bf16 (~2x sigmoid throughput); v5e does not (casts would only add cost).
    try:
        kind = jax.devices()[0].device_kind.lower()
    except Exception:
        return False
    return not ("v5 lite" in kind or "v5e" in kind or "v5litepod" in kind)


def _ln(x, g, b):
    mu = jnp.mean(x, axis=-1, keepdims=True)
    var = jnp.mean(jnp.square(x - mu), axis=-1, keepdims=True)
    return (x - mu) * jax.lax.rsqrt(var + EPS) * g + b


# -----------------------------------------------------------------------------
# Fused kernel: pos-add + LAYERS residual blocks + ln_final + EOT gather + proj
# -----------------------------------------------------------------------------
def fused_text_encoder_kernel(eot_ref,
                              prompts_ref, pos_ref,
                              wqkv_ref, wo_ref, wfc_ref, wpr_ref,
                              bqkv_ref, bo_ref, bfc_ref, bpr_ref,
                              lnp_ref, lnfg_ref, lnfb_ref, proj_ref,
                              o_ref, x_scr, sel_scr, *, bf16_gate):
    b = pl.program_id(0)          # batch-tile index ("parallel")
    layer = pl.program_id(1)      # layer index ("arbitrary", carries x_scr)
    MT = TN * L                   # rows in this batch tile

    # ---- layer 0: x = prompts + positional_embedding (flat f32 residual in VMEM scratch)
    @pl.when(layer == 0)
    def _():
        x_scr[...] = (prompts_ref[...].astype(jnp.float32)
                      + pos_ref[...].astype(jnp.float32))

    # ---- this layer's LN params (f32), rows: [ln1_g, ln1_b, ln2_g, ln2_b]
    lnp = lnp_ref[0]                          # (4, D) f32
    ln1_g, ln1_b = lnp[0:1], lnp[1:2]
    ln2_g, ln2_b = lnp[2:3], lnp[3:4]

    x = x_scr[...]                            # (MT, D) f32, no reshape

    # ---- causal multi-head self-attention ----
    xn = _ln(x, ln1_g, ln1_b)
    qkv = jnp.dot(xn.astype(jnp.bfloat16), wqkv_ref[0],
                  preferred_element_type=jnp.float32) + bqkv_ref[0]     # (MT, 3D) f32, f32 bias
    q = qkv[:, 0 * D:1 * D].reshape(TN, L, D)
    k = qkv[:, 1 * D:2 * D].reshape(TN, L, D)
    v = qkv[:, 2 * D:3 * D].reshape(TN, L, D)

    scale = 1.0 / (DH ** 0.5)
    row = jax.lax.broadcasted_iota(jnp.int32, (L, L), 0)
    col = jax.lax.broadcasted_iota(jnp.int32, (L, L), 1)
    mask_add = jnp.where(row >= col, 0.0, NEG_INF).astype(jnp.float32)  # additive mask, once/step

    ctx_heads = []
    for h in range(H):                        # static H; scores/softmax/context batched over TN
        qh = q[:, :, h * DH:(h + 1) * DH].astype(jnp.bfloat16)
        kh = k[:, :, h * DH:(h + 1) * DH].astype(jnp.bfloat16)
        vh = v[:, :, h * DH:(h + 1) * DH].astype(jnp.bfloat16)
        s = jnp.einsum("nqd,nkd->nqk", qh, kh,
                       preferred_element_type=jnp.float32) * scale + mask_add[None]
        s = s - jnp.max(s, axis=-1, keepdims=True)
        e = jnp.exp(s)
        p = e * pl.reciprocal(jnp.sum(e, axis=-1, keepdims=True), approx=True)
        ctx_heads.append(jnp.einsum("nqk,nkd->nqd", p.astype(jnp.bfloat16), vh,
                                    preferred_element_type=jnp.float32))   # (TN, L, DH) f32

    # fused output projection: concat(heads) @ w_o as ONE (MT,D)@(D,D) MXU matmul
    ctx = jnp.concatenate(ctx_heads, axis=-1).reshape(MT, D)
    attn = jnp.dot(ctx.astype(jnp.bfloat16), wo_ref[0],
                   preferred_element_type=jnp.float32) + bo_ref[0]
    x = x + attn                                                        # residual

    # ---- MLP: c_fc -> QuickGELU -> c_proj ----
    xn2 = _ln(x, ln2_g, ln2_b)
    h1 = jnp.dot(xn2.astype(jnp.bfloat16), wfc_ref[0],
                 preferred_element_type=jnp.float32) + bfc_ref[0]
    if bf16_gate:   # bf16 EUP sigmoid (v6e/v7x); multiply/accumulate path stays f32
        gate = jax.nn.sigmoid((1.702 * h1).astype(jnp.bfloat16)).astype(jnp.float32)
    else:
        gate = jax.nn.sigmoid(1.702 * h1)
    h1 = h1 * gate                                                      # QuickGELU (CLIP)
    h2 = jnp.dot(h1.astype(jnp.bfloat16), wpr_ref[0],
                 preferred_element_type=jnp.float32) + bpr_ref[0]
    x = x + h2                                                          # residual

    x_scr[...] = x

    # ---- last layer: EOT-row gather (pl.loop, O(1) code size) + ln_final + text_projection
    @pl.when(layer == pl.num_programs(1) - 1)
    def _():
        @pl.loop(0, TN)
        def _(i):
            n = b * TN + i                                              # global prompt index
            sel_scr[pl.ds(i, 1), :] = x_scr[pl.ds(i * L + eot_ref[n], 1), :]
        seln = _ln(sel_scr[...], lnfg_ref[...], lnfb_ref[...])          # LN is row-wise => gather-then-LN ok
        o_ref[...] = jnp.dot(seln.astype(jnp.bfloat16), proj_ref[...],
                             preferred_element_type=jnp.float32).astype(o_ref.dtype)


# -----------------------------------------------------------------------------
# Wrapper: layer-stacked weights (bf16) + f32 biases/LN params, launch once
# -----------------------------------------------------------------------------
def pack_params(params):
    stk = lambda key: jnp.stack([p[key] for p in params["layers"]])
    w_qkv = stk("w_qkv").astype(jnp.bfloat16)      # (LAYERS, D, 3D)   MXU operands in bf16
    w_o = stk("w_o").astype(jnp.bfloat16)          # (LAYERS, D, D)
    w_fc = stk("w_fc").astype(jnp.bfloat16)        # (LAYERS, D, 4D)
    w_pr = stk("w_pr").astype(jnp.bfloat16)        # (LAYERS, 4D, D)
    b_qkv = stk("b_qkv").astype(jnp.float32)       # (LAYERS, 1, 3D)   biases stay f32
    b_o = stk("b_o").astype(jnp.float32)           # (LAYERS, 1, D)
    b_fc = stk("b_fc").astype(jnp.float32)         # (LAYERS, 1, 4D)
    b_pr = stk("b_pr").astype(jnp.float32)         # (LAYERS, 1, D)
    lnp = jnp.stack([jnp.concatenate([p["ln1_g"], p["ln1_b"], p["ln2_g"], p["ln2_b"]], axis=0)
                     for p in params["layers"]]).astype(jnp.float32)    # (LAYERS, 4, D)
    return w_qkv, w_o, w_fc, w_pr, b_qkv, b_o, b_fc, b_pr, lnp


def text_encoder_forward(prompts, tokenized_prompts, params):
    w_qkv, w_o, w_fc, w_pr, b_qkv, b_o, b_fc, b_pr, lnp = pack_params(params)
    eot = jnp.argmax(tokenized_prompts, axis=-1).astype(jnp.int32)

    MT = TN * L
    # layout plumbing only (not compute hoisting): flat (N*L, D) residual layout, pos tiled per batch tile
    prompts_flat = prompts.reshape(N * L, D).astype(jnp.float32)
    pos_tiled = jnp.tile(params["pos"].astype(jnp.float32), (TN, 1))    # (TN*L, D)
    proj = params["proj"].astype(jnp.bfloat16)

    kernel = partial(fused_text_encoder_kernel, bf16_gate=_bf16_gelu_gate_ok())

    return pl.pallas_call(
        kernel,
        out_shape=jax.ShapeDtypeStruct((N, E), jnp.float32),
        grid_spec=pltpu.PrefetchScalarGridSpec(
            num_scalar_prefetch=1,                          # EOT indices -> SMEM
            grid=(NB, LAYERS),                              # batch tiles outer, layers inner
            in_specs=[
                pl.BlockSpec((MT, D), lambda b, l, eot: (b, 0)),               # prompts (flat, per tile)
                pl.BlockSpec((MT, D), lambda b, l, eot: (0, 0)),               # pos emb (tiled over TN)
                pl.BlockSpec((1, D, 3 * D), lambda b, l, eot: (l, 0, 0)),      # w_qkv  (bf16)
                pl.BlockSpec((1, D, D), lambda b, l, eot: (l, 0, 0)),          # w_o    (bf16)
                pl.BlockSpec((1, D, 4 * D), lambda b, l, eot: (l, 0, 0)),      # w_fc   (bf16)
                pl.BlockSpec((1, 4 * D, D), lambda b, l, eot: (l, 0, 0)),      # w_pr   (bf16)
                pl.BlockSpec((1, 1, 3 * D), lambda b, l, eot: (l, 0, 0)),      # b_qkv  (f32)
                pl.BlockSpec((1, 1, D), lambda b, l, eot: (l, 0, 0)),          # b_o    (f32)
                pl.BlockSpec((1, 1, 4 * D), lambda b, l, eot: (l, 0, 0)),      # b_fc   (f32)
                pl.BlockSpec((1, 1, D), lambda b, l, eot: (l, 0, 0)),          # b_pr   (f32)
                pl.BlockSpec((1, 4, D), lambda b, l, eot: (l, 0, 0)),          # ln1/ln2 params (f32)
                pl.BlockSpec((1, D), lambda b, l, eot: (0, 0)),                # ln_final gamma
                pl.BlockSpec((1, D), lambda b, l, eot: (0, 0)),                # ln_final beta
                pl.BlockSpec((D, E), lambda b, l, eot: (0, 0)),                # text_projection (bf16)
            ],
            out_specs=pl.BlockSpec((TN, E), lambda b, l, eot: (b, 0)),
            scratch_shapes=[pltpu.VMEM((MT, D), jnp.float32),                  # residual stream (per tile)
                            pltpu.VMEM((TN, D), jnp.float32)],                 # gathered EOT rows
        ),
        compiler_params=pltpu.CompilerParams(
            dimension_semantics=("parallel", "arbitrary"),  # batch tiles independent; layer axis carries x
            vmem_limit_bytes=32 * 1024 * 1024),             # size from 2x per-layer weights + tile slabs at real shapes
    )(eot, prompts_flat, pos_tiled, w_qkv, w_o, w_fc, w_pr,
      b_qkv, b_o, b_fc, b_pr, lnp, params["lnf_g"], params["lnf_b"], proj)


# -----------------------------------------------------------------------------
# Pure-JAX f32 reference (mirrors the PyTorch semantics) for verification
# -----------------------------------------------------------------------------
def ref_forward(prompts, tok, params):
    x = prompts + params["pos"][None]
    scale = 1.0 / (DH ** 0.5)
    causal = jnp.tril(jnp.ones((L, L), bool))
    for p in params["layers"]:
        xn = _ln(x, p["ln1_g"], p["ln1_b"])
        qkv = xn @ p["w_qkv"] + p["b_qkv"]
        q, k, v = jnp.split(qkv, 3, axis=-1)
        q = q.reshape(N, L, H, DH) * scale
        k = k.reshape(N, L, H, DH)
        v = v.reshape(N, L, H, DH)
        s = jnp.einsum("nqhd,nkhd->nhqk", q, k)
        s = jnp.where(causal[None, None], s, NEG_INF)
        s = s - jnp.max(s, axis=-1, keepdims=True)
        e = jnp.exp(s)
        a = e / jnp.sum(e, axis=-1, keepdims=True)
        o = jnp.einsum("nhqk,nkhd->nqhd", a, v).reshape(N, L, D)
        x = x + o @ p["w_o"] + p["b_o"]
        xn2 = _ln(x, p["ln2_g"], p["ln2_b"])
        h1 = xn2 @ p["w_fc"] + p["b_fc"]
        h1 = h1 * jax.nn.sigmoid(1.702 * h1)
        x = x + h1 @ p["w_pr"] + p["b_pr"]
    xn = _ln(x, params["lnf_g"], params["lnf_b"])
    eot = jnp.argmax(tok, axis=-1)
    sel = xn[jnp.arange(N), eot]
    return sel @ params["proj"]


# -----------------------------------------------------------------------------
# Deterministic parameter init (synthetic weights; distinct keys per tensor)
# -----------------------------------------------------------------------------
def init_params(key):
    def rnd(k, shape, s=0.02):
        return (s * jax.random.normal(k, shape)).astype(jnp.float32)

    per_layer = 12
    keys = jax.random.split(key, 4 + per_layer * LAYERS)
    layers = []
    for l in range(LAYERS):
        k = keys[4 + per_layer * l: 4 + per_layer * (l + 1)]
        layers.append(dict(
            ln1_g=1.0 + rnd(k[0], (1, D), 0.05), ln1_b=rnd(k[1], (1, D), 0.05),
            w_qkv=rnd(k[2], (D, 3 * D)),         b_qkv=rnd(k[3], (1, 3 * D)),
            w_o=rnd(k[4], (D, D)),               b_o=rnd(k[5], (1, D)),
            ln2_g=1.0 + rnd(k[6], (1, D), 0.05), ln2_b=rnd(k[7], (1, D), 0.05),
            w_fc=rnd(k[8], (D, 4 * D)),          b_fc=rnd(k[9], (1, 4 * D)),
            w_pr=rnd(k[10], (4 * D, D)),         b_pr=rnd(k[11], (1, D)),
        ))
    return dict(
        pos=rnd(keys[0], (L, D), 0.01),
        layers=layers,
        lnf_g=1.0 + rnd(keys[1], (1, D), 0.05),
        lnf_b=rnd(keys[2], (1, D), 0.05),
        proj=rnd(keys[3], (D, E)),
    )


if __name__ == "__main__":
    key = jax.random.PRNGKey(0)
    kp, kx, kt = jax.random.split(key, 3)
    params = init_params(kp)

    # prompts: learned context + token embeddings analogue, (N, L, D)
    prompts = (0.1 * jax.random.normal(kx, (N, L, D))).astype(jnp.float32)
    # tokenized_prompts: ints; EOT token (largest id) at a different position per prompt
    tok = jax.random.randint(kt, (N, L), 1, 100, dtype=jnp.int32)
    for i in range(N):
        tok = tok.at[i, (3 + 2 * i) % L].set(1000)

    out = jax.block_until_ready(text_encoder_forward(prompts, tok, params))

    # full-precision f32 reference (kernel uses bf16 MXU operands -> relaxed tolerance)
    with jax.default_matmul_precision("highest"):
        ref = jax.block_until_ready(ref_forward(prompts, tok, params))

    assert out.shape == (N, E)
    np.testing.assert_allclose(np.asarray(out), np.asarray(ref),
                               atol=5e-3, rtol=2e-2)
    print("KERNEL_OK")
</pallas_src>

<mosaic_0001>
module attributes {stable_mosaic.version = 11 : i64} {
  func.func @fused_text_encoder_kernel(%arg0: i32, %arg1: i32, %arg2: memref<16xi32, #tpu.memory_space<smem>>, %arg3: memref<64x32xf32, #tpu.memory_space<vmem>>, %arg4: memref<64x32xf32, #tpu.memory_space<vmem>>, %arg5: memref<1x32x96xbf16, #tpu.memory_space<vmem>>, %arg6: memref<1x32x32xbf16, #tpu.memory_space<vmem>>, %arg7: memref<1x32x128xbf16, #tpu.memory_space<vmem>>, %arg8: memref<1x128x32xbf16, #tpu.memory_space<vmem>>, %arg9: memref<1x1x96xf32, #tpu.memory_space<vmem>>, %arg10: memref<1x1x32xf32, #tpu.memory_space<vmem>>, %arg11: memref<1x1x128xf32, #tpu.memory_space<vmem>>, %arg12: memref<1x1x32xf32, #tpu.memory_space<vmem>>, %arg13: memref<1x4x32xf32, #tpu.memory_space<vmem>>, %arg14: memref<1x32xf32, #tpu.memory_space<vmem>>, %arg15: memref<1x32xf32, #tpu.memory_space<vmem>>, %arg16: memref<32x32xbf16, #tpu.memory_space<vmem>>, %arg17: memref<8x32xf32, #tpu.memory_space<vmem>>, %arg18: memref<64x32xf32, #tpu.memory_space<vmem>>, %arg19: memref<8x32xf32, #tpu.memory_space<vmem>>) attributes {dimension_semantics = [#tpu.dimension_semantics<parallel>, #tpu.dimension_semantics<arbitrary>], iteration_bounds = array<i64: 2, 2>, scalar_prefetch = 1 : i64, scratch_operands = 2 : i64, tpu.core_type = #tpu.core_type<tc>, window_params = [{transform_indices = @transform_0, window_bounds = array<i64: 64, 32>}, {pipeline_mode = #tpu.pipeline_mode<synchronous>, transform_indices = @transform_1, window_bounds = array<i64: 64, 32>}, {transform_indices = @transform_2, window_bounds = array<i64: 1, 32, 96>}, {transform_indices = @transform_3, window_bounds = array<i64: 1, 32, 32>}, {transform_indices = @transform_4, window_bounds = array<i64: 1, 32, 128>}, {transform_indices = @transform_5, window_bounds = array<i64: 1, 128, 32>}, {transform_indices = @transform_6, window_bounds = array<i64: 1, 1, 96>}, {transform_indices = @transform_7, window_bounds = array<i64: 1, 1, 32>}, {transform_indices = @transform_8, window_bounds = array<i64: 1, 1, 128>}, {transform_indices = @transform_9, window_bounds = array<i64: 1, 1, 32>}, {transform_indices = @transform_10, window_bounds = array<i64: 1, 4, 32>}, {pipeline_mode = #tpu.pipeline_mode<synchronous>, transform_indices = @transform_11, window_bounds = array<i64: 1, 32>}, {pipeline_mode = #tpu.pipeline_mode<synchronous>, transform_indices = @transform_12, window_bounds = array<i64: 1, 32>}, {pipeline_mode = #tpu.pipeline_mode<synchronous>, transform_indices = @transform_13, window_bounds = array<i64: 32, 32>}, {transform_indices = @transform_14, window_bounds = array<i64: 8, 32>}]} {
    %c0_i32 = arith.constant 0 : i32
    %0 = arith.cmpi eq, %arg1, %c0_i32 : i32
    %1 = arith.extui %0 : i1 to i32
    %c0_i32_0 = arith.constant 0 : i32
    %2 = arith.cmpi ne, %1, %c0_i32_0 : i32
    scf.if %2 {
      %c0_69 = arith.constant 0 : index
      %c0_70 = arith.constant 0 : index
      %212 = vector.load %arg3[%c0_69, %c0_70] : memref<64x32xf32, #tpu.memory_space<vmem>>, vector<64x32xf32>
      %c0_71 = arith.constant 0 : index
      %c0_72 = arith.constant 0 : index
      %213 = vector.load %arg4[%c0_71, %c0_72] : memref<64x32xf32, #tpu.memory_space<vmem>>, vector<64x32xf32>
      %214 = arith.addf %212, %213 : vector<64x32xf32>
      %c0_73 = arith.constant 0 : index
      %c0_74 = arith.constant 0 : index
      %215 = vector.load %arg18[%c0_73, %c0_74] : memref<64x32xf32, #tpu.memory_space<vmem>>, vector<64x32xf32>
      tpu.vector_store %arg18[%c0_73, %c0_74], %214 {strides = array<i32>} : memref<64x32xf32, #tpu.memory_space<vmem>>, vector<64x32xf32>,
    } else {
    }
    %c0 = arith.constant 0 : index
    %c0_1 = arith.constant 0 : index
    %c0_2 = arith.constant 0 : index
    %3 = vector.load %arg13[%c0, %c0_1, %c0_2] : memref<1x4x32xf32, #tpu.memory_space<vmem>>, vector<1x4x32xf32>
    %4 = vector.shape_cast %3 : vector<1x4x32xf32> to vector<4x32xf32>
    %5 = vector.extract_strided_slice %4 {offsets = [0, 0], sizes = [1, 32], strides = [1, 1]} : vector<4x32xf32> to vector<1x32xf32>
    %6 = vector.extract_strided_slice %4 {offsets = [1, 0], sizes = [1, 32], strides = [1, 1]} : vector<4x32xf32> to vector<1x32xf32>
    %7 = vector.extract_strided_slice %4 {offsets = [2, 0], sizes = [1, 32], strides = [1, 1]} : vector<4x32xf32> to vector<1x32xf32>
    %8 = vector.extract_strided_slice %4 {offsets = [3, 0], sizes = [1, 32], strides = [1, 1]} : vector<4x32xf32> to vector<1x32xf32>
    %c0_3 = arith.constant 0 : index
    %c0_4 = arith.constant 0 : index
    %9 = vector.load %arg18[%c0_3, %c0_4] : memref<64x32xf32, #tpu.memory_space<vmem>>, vector<64x32xf32>
    %cst = arith.constant dense<0.000000e+00> : vector<64xf32>
    %10 = vector.multi_reduction <add>, %9, %cst [1] : vector<64x32xf32> to vector<64xf32>
    %11 = vector.shape_cast %10 : vector<64xf32> to vector<64x1xf32>
    %cst_5 = arith.constant 3.200000e+01 : f32
    %12 = vector.broadcast %cst_5 : f32 to vector<64x1xf32>
    %13 = arith.divf %11, %12 : vector<64x1xf32>
    %14 = vector.broadcast %13 : vector<64x1xf32> to vector<64x32xf32>
    %15 = arith.subf %9, %14 : vector<64x32xf32>
    %16 = arith.mulf %15, %15 : vector<64x32xf32>
    %cst_6 = arith.constant dense<0.000000e+00> : vector<64xf32>
    %17 = vector.multi_reduction <add>, %16, %cst_6 [1] : vector<64x32xf32> to vector<64xf32>
    %18 = vector.shape_cast %17 : vector<64xf32> to vector<64x1xf32>
    %cst_7 = arith.constant 3.200000e+01 : f32
    %19 = vector.broadcast %cst_7 : f32 to vector<64x1xf32>
    %20 = arith.divf %18, %19 : vector<64x1xf32>
    %21 = vector.broadcast %13 : vector<64x1xf32> to vector<64x32xf32>
    %22 = arith.subf %9, %21 : vector<64x32xf32>
    %cst_8 = arith.constant 9.99999974E-6 : f32
    %23 = vector.broadcast %cst_8 : f32 to vector<64x1xf32>
    %24 = arith.addf %20, %23 : vector<64x1xf32>
    %25 = math.rsqrt %24 : vector<64x1xf32>
    %26 = vector.broadcast %25 : vector<64x1xf32> to vector<64x32xf32>
    %27 = arith.mulf %22, %26 : vector<64x32xf32>
    %28 = vector.broadcast %5 : vector<1x32xf32> to vector<64x32xf32>
    %29 = arith.mulf %27, %28 : vector<64x32xf32>
    %30 = vector.broadcast %6 : vector<1x32xf32> to vector<64x32xf32>
    %31 = arith.addf %29, %30 : vector<64x32xf32>
    %32 = arith.truncf %31 : vector<64x32xf32> to vector<64x32xbf16>
    %c0_9 = arith.constant 0 : index
    %c0_10 = arith.constant 0 : index
    %c0_11 = arith.constant 0 : index
    %33 = vector.load %arg5[%c0_9, %c0_10, %c0_11] : memref<1x32x96xbf16, #tpu.memory_space<vmem>>, vector<1x32x96xbf16>
    %34 = vector.shape_cast %33 : vector<1x32x96xbf16> to vector<32x96xbf16>
    %cst_12 = arith.constant dense<0.000000e+00> : vector<64x96xf32>
    %35 = tpu.matmul %32, %34, %cst_12 {dimension_numbers = #tpu.dot_dimension_numbers<[1], [0], [0], [1], [0, 0, 1, 1], [], []>} : vector<64x32xbf16>, vector<32x96xbf16>, vector<64x96xf32> -> vector<64x96xf32>
    %c0_13 = arith.constant 0 : index
    %c0_14 = arith.constant 0 : index
    %c0_15 = arith.constant 0 : index
    %36 = vector.load %arg9[%c0_13, %c0_14, %c0_15] : memref<1x1x96xf32, #tpu.memory_space<vmem>>, vector<1x1x96xf32>
    %37 = vector.shape_cast %36 : vector<1x1x96xf32> to vector<1x96xf32>
    %38 = vector.broadcast %37 : vector<1x96xf32> to vector<64x96xf32>
    %39 = arith.addf %35, %38 : vector<64x96xf32>
    %40 = vector.extract_strided_slice %39 {offsets = [0, 0], sizes = [64, 32], strides = [1, 1]} : vector<64x96xf32> to vector<64x32xf32>
    %41 = vector.shape_cast %40 : vector<64x32xf32> to vector<8x8x32xf32>
    %42 = vector.extract_strided_slice %39 {offsets = [0, 32], sizes = [64, 32], strides = [1, 1]} : vector<64x96xf32> to vector<64x32xf32>
    %43 = vector.shape_cast %42 : vector<64x32xf32> to vector<8x8x32xf32>
    %44 = vector.extract_strided_slice %39 {offsets = [0, 64], sizes = [64, 32], strides = [1, 1]} : vector<64x96xf32> to vector<64x32xf32>
    %45 = vector.shape_cast %44 : vector<64x32xf32> to vector<8x8x32xf32>
    %46 = tpu.iota {dimensions = array<i32: 0>} : vector<8x8xi32>
    %47 = tpu.iota {dimensions = array<i32: 1>} : vector<8x8xi32>
    %48 = arith.cmpi sge, %46, %47 : vector<8x8xi32>
    %cst_16 = arith.constant 0.000000e+00 : f32
    %cst_17 = arith.constant -1.000000e+30 : f32
    %49 = vector.broadcast %cst_16 : f32 to vector<8x8xf32>
    %50 = vector.broadcast %cst_17 : f32 to vector<8x8xf32>
    %51 = arith.select %48, %49, %50 : vector<8x8xi1>, vector<8x8xf32>
    %52 = vector.extract_strided_slice %41 {offsets = [0, 0, 0], sizes = [8, 8, 8], strides = [1, 1, 1]} : vector<8x8x32xf32> to vector<8x8x8xf32>
    %53 = arith.truncf %52 : vector<8x8x8xf32> to vector<8x8x8xbf16>
    %54 = vector.extract_strided_slice %43 {offsets = [0, 0, 0], sizes = [8, 8, 8], strides = [1, 1, 1]} : vector<8x8x32xf32> to vector<8x8x8xf32>
    %55 = arith.truncf %54 : vector<8x8x8xf32> to vector<8x8x8xbf16>
    %56 = vector.extract_strided_slice %45 {offsets = [0, 0, 0], sizes = [8, 8, 8], strides = [1, 1, 1]} : vector<8x8x32xf32> to vector<8x8x8xf32>
    %57 = arith.truncf %56 : vector<8x8x8xf32> to vector<8x8x8xbf16>
    "tpu.trace_start"() <{level = 10 : i32, message = "nqd,nkd->nqk"}> : () -> ()
    %cst_18 = arith.constant dense<0.000000e+00> : vector<8x8x8xf32>
    %58 = tpu.matmul %53, %55, %cst_18 {dimension_numbers = #tpu.dot_dimension_numbers<[2], [2], [1], [1], [0, 0, 0, 1, 1, 1], [0], [0]>} : vector<8x8x8xbf16>, vector<8x8x8xbf16>, vector<8x8x8xf32> -> vector<8x8x8xf32>
    "tpu.trace_stop"() : () -> ()
    %cst_19 = arith.constant 0.353553385 : f32
    %59 = vector.broadcast %cst_19 : f32 to vector<8x8x8xf32>
    %60 = arith.mulf %58, %59 : vector<8x8x8xf32>
    %61 = vector.shape_cast %51 : vector<8x8xf32> to vector<1x8x8xf32>
    %62 = vector.broadcast %61 : vector<1x8x8xf32> to vector<8x8x8xf32>
    %63 = arith.addf %60, %62 : vector<8x8x8xf32>
    %cst_20 = arith.constant dense<0xFF800000> : vector<8x8xf32>
    %64 = vector.multi_reduction <maximumf>, %63, %cst_20 [2] : vector<8x8x8xf32> to vector<8x8xf32>
    %65 = vector.shape_cast %64 : vector<8x8xf32> to vector<8x8x1xf32>
    %66 = vector.broadcast %65 : vector<8x8x1xf32> to vector<8x8x8xf32>
    %67 = arith.subf %63, %66 : vector<8x8x8xf32>
    %68 = math.exp %67 : vector<8x8x8xf32>
    %cst_21 = arith.constant dense<0.000000e+00> : vector<8x8xf32>
    %69 = vector.multi_reduction <add>, %68, %cst_21 [2] : vector<8x8x8xf32> to vector<8x8xf32>
    %70 = vector.shape_cast %69 : vector<8x8xf32> to vector<8x8x1xf32>
    %71 = tpu.reciprocal %70 {approx = true} : vector<8x8x1xf32> -> vector<8x8x1xf32>
    %72 = vector.broadcast %71 : vector<8x8x1xf32> to vector<8x8x8xf32>
    %73 = arith.mulf %68, %72 : vector<8x8x8xf32>
    %74 = arith.truncf %73 : vector<8x8x8xf32> to vector<8x8x8xbf16>
    "tpu.trace_start"() <{level = 10 : i32, message = "nqk,nkd->nqd"}> : () -> ()
    %cst_22 = arith.constant dense<0.000000e+00> : vector<8x8x8xf32>
    %75 = tpu.matmul %74, %57, %cst_22 {dimension_numbers = #tpu.dot_dimension_numbers<[2], [1], [1], [2], [0, 0, 0, 1, 1, 2], [0], [0]>} : vector<8x8x8xbf16>, vector<8x8x8xbf16>, vector<8x8x8xf32> -> vector<8x8x8xf32>
    "tpu.trace_stop"() : () -> ()
    %76 = vector.extract_strided_slice %41 {offsets = [0, 0, 8], sizes = [8, 8, 8], strides = [1, 1, 1]} : vector<8x8x32xf32> to vector<8x8x8xf32>
    %77 = arith.truncf %76 : vector<8x8x8xf32> to vector<8x8x8xbf16>
    %78 = vector.extract_strided_slice %43 {offsets = [0, 0, 8], sizes = [8, 8, 8], strides = [1, 1, 1]} : vector<8x8x32xf32> to vector<8x8x8xf32>
    %79 = arith.truncf %78 : vector<8x8x8xf32> to vector<8x8x8xbf16>
    %80 = vector.extract_strided_slice %45 {offsets = [0, 0, 8], sizes = [8, 8, 8], strides = [1, 1, 1]} : vector<8x8x32xf32> to vector<8x8x8xf32>
    %81 = arith.truncf %80 : vector<8x8x8xf32> to vector<8x8x8xbf16>
    "tpu.trace_start"() <{level = 10 : i32, message = "nqd,nkd->nqk"}> : () -> ()
    %cst_23 = arith.constant dense<0.000000e+00> : vector<8x8x8xf32>
    %82 = tpu.matmul %77, %79, %cst_23 {dimension_numbers = #tpu.dot_dimension_numbers<[2], [2], [1], [1], [0, 0, 0, 1, 1, 1], [0], [0]>} : vector<8x8x8xbf16>, vector<8x8x8xbf16>, vector<8x8x8xf32> -> vector<8x8x8xf32>
    "tpu.trace_stop"() : () -> ()
    %cst_24 = arith.constant 0.353553385 : f32
    %83 = vector.broadcast %cst_24 : f32 to vector<8x8x8xf32>
    %84 = arith.mulf %82, %83 : vector<8x8x8xf32>
    %85 = vector.shape_cast %51 : vector<8x8xf32> to vector<1x8x8xf32>
    %86 = vector.broadcast %85 : vector<1x8x8xf32> to vector<8x8x8xf32>
    %87 = arith.addf %84, %86 : vector<8x8x8xf32>
    %cst_25 = arith.constant dense<0xFF800000> : vector<8x8xf32>
    %88 = vector.multi_reduction <maximumf>, %87, %cst_25 [2] : vector<8x8x8xf32> to vector<8x8xf32>
    %89 = vector.shape_cast %88 : vector<8x8xf32> to vector<8x8x1xf32>
    %90 = vector.broadcast %89 : vector<8x8x1xf32> to vector<8x8x8xf32>
    %91 = arith.subf %87, %90 : vector<8x8x8xf32>
    %92 = math.exp %91 : vector<8x8x8xf32>
    %cst_26 = arith.constant dense<0.000000e+00> : vector<8x8xf32>
    %93 = vector.multi_reduction <add>, %92, %cst_26 [2] : vector<8x8x8xf32> to vector<8x8xf32>
    %94 = vector.shape_cast %93 : vector<8x8xf32> to vector<8x8x1xf32>
    %95 = tpu.reciprocal %94 {approx = true} : vector<8x8x1xf32> -> vector<8x8x1xf32>
    %96 = vector.broadcast %95 : vector<8x8x1xf32> to vector<8x8x8xf32>
    %97 = arith.mulf %92, %96 : vector<8x8x8xf32>
    %98 = arith.truncf %97 : vector<8x8x8xf32> to vector<8x8x8xbf16>
    "tpu.trace_start"() <{level = 10 : i32, message = "nqk,nkd->nqd"}> : () -> ()
    %cst_27 = arith.constant dense<0.000000e+00> : vector<8x8x8xf32>
    %99 = tpu.matmul %98, %81, %cst_27 {dimension_numbers = #tpu.dot_dimension_numbers<[2], [1], [1], [2], [0, 0, 0, 1, 1, 2], [0], [0]>} : vector<8x8x8xbf16>, vector<8x8x8xbf16>, vector<8x8x8xf32> -> vector<8x8x8xf32>
    "tpu.trace_stop"() : () -> ()
    %100 = vector.extract_strided_slice %41 {offsets = [0, 0, 16], sizes = [8, 8, 8], strides = [1, 1, 1]} : vector<8x8x32xf32> to vector<8x8x8xf32>
    %101 = arith.truncf %100 : vector<8x8x8xf32> to vector<8x8x8xbf16>
    %102 = vector.extract_strided_slice %43 {offsets = [0, 0, 16], sizes = [8, 8, 8], strides = [1, 1, 1]} : vector<8x8x32xf32> to vector<8x8x8xf32>
    %103 = arith.truncf %102 : vector<8x8x8xf32> to vector<8x8x8xbf16>
    %104 = vector.extract_strided_slice %45 {offsets = [0, 0, 16], sizes = [8, 8, 8], strides = [1, 1, 1]} : vector<8x8x32xf32> to vector<8x8x8xf32>
    %105 = arith.truncf %104 : vector<8x8x8xf32> to vector<8x8x8xbf16>
    "tpu.trace_start"() <{level = 10 : i32, message = "nqd,nkd->nqk"}> : () -> ()
    %cst_28 = arith.constant dense<0.000000e+00> : vector<8x8x8xf32>
    %106 = tpu.matmul %101, %103, %cst_28 {dimension_numbers = #tpu.dot_dimension_numbers<[2], [2], [1], [1], [0, 0, 0, 1, 1, 1], [0], [0]>} : vector<8x8x8xbf16>, vector<8x8x8xbf16>, vector<8x8x8xf32> -> vector<8x8x8xf32>
    "tpu.trace_stop"() : () -> ()
    %cst_29 = arith.constant 0.353553385 : f32
    %107 = vector.broadcast %cst_29 : f32 to vector<8x8x8xf32>
    %108 = arith.mulf %106, %107 : vector<8x8x8xf32>
    %109 = vector.shape_cast %51 : vector<8x8xf32> to vector<1x8x8xf32>
    %110 = vector.broadcast %109 : vector<1x8x8xf32> to vector<8x8x8xf32>
    %111 = arith.addf %108, %110 : vector<8x8x8xf32>
    %cst_30 = arith.constant dense<0xFF800000> : vector<8x8xf32>
    %112 = vector.multi_reduction <maximumf>, %111, %cst_30 [2] : vector<8x8x8xf32> to vector<8x8xf32>
    %113 = vector.shape_cast %112 : vector<8x8xf32> to vector<8x8x1xf32>
    %114 = vector.broadcast %113 : vector<8x8x1xf32> to vector<8x8x8xf32>
    %115 = arith.subf %111, %114 : vector<8x8x8xf32>
    %116 = math.exp %115 : vector<8x8x8xf32>
    %cst_31 = arith.constant dense<0.000000e+00> : vector<8x8xf32>
    %117 = vector.multi_reduction <add>, %116, %cst_31 [2] : vector<8x8x8xf32> to vector<8x8xf32>
    %118 = vector.shape_cast %117 : vector<8x8xf32> to vector<8x8x1xf32>
    %119 = tpu.reciprocal %118 {approx = true} : vector<8x8x1xf32> -> vector<8x8x1xf32>
    %120 = vector.broadcast %119 : vector<8x8x1xf32> to vector<8x8x8xf32>
    %121 = arith.mulf %116, %120 : vector<8x8x8xf32>
    %122 = arith.truncf %121 : vector<8x8x8xf32> to vector<8x8x8xbf16>
    "tpu.trace_start"() <{level = 10 : i32, message = "nqk,nkd->nqd"}> : () -> ()
    %cst_32 = arith.constant dense<0.000000e+00> : vector<8x8x8xf32>
    %123 = tpu.matmul %122, %105, %cst_32 {dimension_numbers = #tpu.dot_dimension_numbers<[2], [1], [1], [2], [0, 0, 0, 1, 1, 2], [0], [0]>} : vector<8x8x8xbf16>, vector<8x8x8xbf16>, vector<8x8x8xf32> -> vector<8x8x8xf32>
    "tpu.trace_stop"() : () -> ()
    %124 = vector.extract_strided_slice %41 {offsets = [0, 0, 24], sizes = [8, 8, 8], strides = [1, 1, 1]} : vector<8x8x32xf32> to vector<8x8x8xf32>
    %125 = arith.truncf %124 : vector<8x8x8xf32> to vector<8x8x8xbf16>
    %126 = vector.extract_strided_slice %43 {offsets = [0, 0, 24], sizes = [8, 8, 8], strides = [1, 1, 1]} : vector<8x8x32xf32> to vector<8x8x8xf32>
    %127 = arith.truncf %126 : vector<8x8x8xf32> to vector<8x8x8xbf16>
    %128 = vector.extract_strided_slice %45 {offsets = [0, 0, 24], sizes = [8, 8, 8], strides = [1, 1, 1]} : vector<8x8x32xf32> to vector<8x8x8xf32>
    %129 = arith.truncf %128 : vector<8x8x8xf32> to vector<8x8x8xbf16>
    "tpu.trace_start"() <{level = 10 : i32, message = "nqd,nkd->nqk"}> : () -> ()
    %cst_33 = arith.constant dense<0.000000e+00> : vector<8x8x8xf32>
    %130 = tpu.matmul %125, %127, %cst_33 {dimension_numbers = #tpu.dot_dimension_numbers<[2], [2], [1], [1], [0, 0, 0, 1, 1, 1], [0], [0]>} : vector<8x8x8xbf16>, vector<8x8x8xbf16>, vector<8x8x8xf32> -> vector<8x8x8xf32>
    "tpu.trace_stop"() : () -> ()
    %cst_34 = arith.constant 0.353553385 : f32
    %131 = vector.broadcast %cst_34 : f32 to vector<8x8x8xf32>
    %132 = arith.mulf %130, %131 : vector<8x8x8xf32>
    %133 = vector.shape_cast %51 : vector<8x8xf32> to vector<1x8x8xf32>
    %134 = vector.broadcast %133 : vector<1x8x8xf32> to vector<8x8x8xf32>
    %135 = arith.addf %132, %134 : vector<8x8x8xf32>
    %cst_35 = arith.constant dense<0xFF800000> : vector<8x8xf32>
    %136 = vector.multi_reduction <maximumf>, %135, %cst_35 [2] : vector<8x8x8xf32> to vector<8x8xf32>
    %137 = vector.shape_cast %136 : vector<8x8xf32> to vector<8x8x1xf32>
    %138 = vector.broadcast %137 : vector<8x8x1xf32> to vector<8x8x8xf32>
    %139 = arith.subf %135, %138 : vector<8x8x8xf32>
    %140 = math.exp %139 : vector<8x8x8xf32>
    %cst_36 = arith.constant dense<0.000000e+00> : vector<8x8xf32>
    %141 = vector.multi_reduction <add>, %140, %cst_36 [2] : vector<8x8x8xf32> to vector<8x8xf32>
    %142 = vector.shape_cast %141 : vector<8x8xf32> to vector<8x8x1xf32>
    %143 = tpu.reciprocal %142 {approx = true} : vector<8x8x1xf32> -> vector<8x8x1xf32>
    %144 = vector.broadcast %143 : vector<8x8x1xf32> to vector<8x8x8xf32>
    %145 = arith.mulf %140, %144 : vector<8x8x8xf32>
    %146 = arith.truncf %145 : vector<8x8x8xf32> to vector<8x8x8xbf16>
    "tpu.trace_start"() <{level = 10 : i32, message = "nqk,nkd->nqd"}> : () -> ()
    %cst_37 = arith.constant dense<0.000000e+00> : vector<8x8x8xf32>
    %147 = tpu.matmul %146, %129, %cst_37 {dimension_numbers = #tpu.dot_dimension_numbers<[2], [1], [1], [2], [0, 0, 0, 1, 1, 2], [0], [0]>} : vector<8x8x8xbf16>, vector<8x8x8xbf16>, vector<8x8x8xf32> -> vector<8x8x8xf32>
    "tpu.trace_stop"() : () -> ()
    %148 = tpu.concatenate %75, %99, %123, %147 in 2 : vector<8x8x8xf32>, vector<8x8x8xf32>, vector<8x8x8xf32>, vector<8x8x8xf32> -> vector<8x8x32xf32>
    %149 = vector.shape_cast %148 : vector<8x8x32xf32> to vector<64x32xf32>
    %150 = arith.truncf %149 : vector<64x32xf32> to vector<64x32xbf16>
    %c0_38 = arith.constant 0 : index
    %c0_39 = arith.constant 0 : index
    %c0_40 = arith.constant 0 : index
    %151 = vector.load %arg6[%c0_38, %c0_39, %c0_40] : memref<1x32x32xbf16, #tpu.memory_space<vmem>>, vector<1x32x32xbf16>
    %152 = vector.shape_cast %151 : vector<1x32x32xbf16> to vector<32x32xbf16>
    %cst_41 = arith.constant dense<0.000000e+00> : vector<64x32xf32>
    %153 = tpu.matmul %150, %152, %cst_41 {dimension_numbers = #tpu.dot_dimension_numbers<[1], [0], [0], [1], [0, 0, 1, 1], [], []>} : vector<64x32xbf16>, vector<32x32xbf16>, vector<64x32xf32> -> vector<64x32xf32>
    %c0_42 = arith.constant 0 : index
    %c0_43 = arith.constant 0 : index
    %c0_44 = arith.constant 0 : index
    %154 = vector.load %arg10[%c0_42, %c0_43, %c0_44] : memref<1x1x32xf32, #tpu.memory_space<vmem>>, vector<1x1x32xf32>
    %155 = vector.shape_cast %154 : vector<1x1x32xf32> to vector<1x32xf32>
    %156 = vector.broadcast %155 : vector<1x32xf32> to vector<64x32xf32>
    %157 = arith.addf %153, %156 : vector<64x32xf32>
    %158 = arith.addf %9, %157 : vector<64x32xf32>
    %cst_45 = arith.constant dense<0.000000e+00> : vector<64xf32>
    %159 = vector.multi_reduction <add>, %158, %cst_45 [1] : vector<64x32xf32> to vector<64xf32>
    %160 = vector.shape_cast %159 : vector<64xf32> to vector<64x1xf32>
    %cst_46 = arith.constant 3.200000e+01 : f32
    %161 = vector.broadcast %cst_46 : f32 to vector<64x1xf32>
    %162 = arith.divf %160, %161 : vector<64x1xf32>
    %163 = vector.broadcast %162 : vector<64x1xf32> to vector<64x32xf32>
    %164 = arith.subf %158, %163 : vector<64x32xf32>
    %165 = arith.mulf %164, %164 : vector<64x32xf32>
    %cst_47 = arith.constant dense<0.000000e+00> : vector<64xf32>
    %166 = vector.multi_reduction <add>, %165, %cst_47 [1] : vector<64x32xf32> to vector<64xf32>
    %167 = vector.shape_cast %166 : vector<64xf32> to vector<64x1xf32>
    %cst_48 = arith.constant 3.200000e+01 : f32
    %168 = vector.broadcast %cst_48 : f32 to vector<64x1xf32>
    %169 = arith.divf %167, %168 : vector<64x1xf32>
    %170 = vector.broadcast %162 : vector<64x1xf32> to vector<64x32xf32>
    %171 = arith.subf %158, %170 : vector<64x32xf32>
    %cst_49 = arith.constant 9.99999974E-6 : f32
    %172 = vector.broadcast %cst_49 : f32 to vector<64x1xf32>
    %173 = arith.addf %169, %172 : vector<64x1xf32>
    %174 = math.rsqrt %173 : vector<64x1xf32>
    %175 = vector.broadcast %174 : vector<64x1xf32> to vector<64x32xf32>
    %176 = arith.mulf %171, %175 : vector<64x32xf32>
    %177 = vector.broadcast %7 : vector<1x32xf32> to vector<64x32xf32>
    %178 = arith.mulf %176, %177 : vector<64x32xf32>
    %179 = vector.broadcast %8 : vector<1x32xf32> to vector<64x32xf32>
    %180 = arith.addf %178, %179 : vector<64x32xf32>
    %181 = arith.truncf %180 : vector<64x32xf32> to vector<64x32xbf16>
    %c0_50 = arith.constant 0 : index
    %c0_51 = arith.constant 0 : index
    %c0_52 = arith.constant 0 : index
    %182 = vector.load %arg7[%c0_50, %c0_51, %c0_52] : memref<1x32x128xbf16, #tpu.memory_space<vmem>>, vector<1x32x128xbf16>
    %183 = vector.shape_cast %182 : vector<1x32x128xbf16> to vector<32x128xbf16>
    %cst_53 = arith.constant dense<0.000000e+00> : vector<64x128xf32>
    %184 = tpu.matmul %181, %183, %cst_53 {dimension_numbers = #tpu.dot_dimension_numbers<[1], [0], [0], [1], [0, 0, 1, 1], [], []>} : vector<64x32xbf16>, vector<32x128xbf16>, vector<64x128xf32> -> vector<64x128xf32>
    %c0_54 = arith.constant 0 : index
    %c0_55 = arith.constant 0 : index
    %c0_56 = arith.constant 0 : index
    %185 = vector.load %arg11[%c0_54, %c0_55, %c0_56] : memref<1x1x128xf32, #tpu.memory_space<vmem>>, vector<1x1x128xf32>
    %186 = vector.shape_cast %185 : vector<1x1x128xf32> to vector<1x128xf32>
    %187 = vector.broadcast %186 : vector<1x128xf32> to vector<64x128xf32>
    %188 = arith.addf %184, %187 : vector<64x128xf32>
    %cst_57 = arith.constant 1.702000e+00 : f32
    %189 = vector.broadcast %cst_57 : f32 to vector<64x128xf32>
    %190 = arith.mulf %189, %188 : vector<64x128xf32>
    %191 = arith.truncf %190 : vector<64x128xf32> to vector<64x128xbf16>
    %192 = arith.negf %191 : vector<64x128xbf16>
    %193 = math.exp %192 : vector<64x128xbf16>
    %cst_58 = arith.constant 1.000000e+00 : bf16
    %194 = vector.broadcast %cst_58 : bf16 to vector<64x128xbf16>
    %195 = arith.addf %194, %193 : vector<64x128xbf16>
    %196 = arith.divf %194, %195 : vector<64x128xbf16>
    %197 = arith.extf %196 : vector<64x128xbf16> to vector<64x128xf32>
    %198 = arith.mulf %188, %197 : vector<64x128xf32>
    %199 = arith.truncf %198 : vector<64x128xf32> to vector<64x128xbf16>
    %c0_59 = arith.constant 0 : index
    %c0_60 = arith.constant 0 : index
    %c0_61 = arith.constant 0 : index
    %200 = vector.load %arg8[%c0_59, %c0_60, %c0_61] : memref<1x128x32xbf16, #tpu.memory_space<vmem>>, vector<1x128x32xbf16>
    %201 = vector.shape_cast %200 : vector<1x128x32xbf16> to vector<128x32xbf16>
    %cst_62 = arith.constant dense<0.000000e+00> : vector<64x32xf32>
    %202 = tpu.matmul %199, %201, %cst_62 {dimension_numbers = #tpu.dot_dimension_numbers<[1], [0], [0], [1], [0, 0, 1, 1], [], []>} : vector<64x128xbf16>, vector<128x32xbf16>, vector<64x32xf32> -> vector<64x32xf32>
    %c0_63 = arith.constant 0 : index
    %c0_64 = arith.constant 0 : index
    %c0_65 = arith.constant 0 : index
    %203 = vector.load %arg12[%c0_63, %c0_64, %c0_65] : memref<1x1x32xf32, #tpu.memory_space<vmem>>, vector<1x1x32xf32>
    %204 = vector.shape_cast %203 : vector<1x1x32xf32> to vector<1x32xf32>
    %205 = vector.broadcast %204 : vector<1x32xf32> to vector<64x32xf32>
    %206 = arith.addf %202, %205 : vector<64x32xf32>
    %207 = arith.addf %158, %206 : vector<64x32xf32>
    %c0_66 = arith.constant 0 : index
    %c0_67 = arith.constant 0 : index
    %208 = vector.load %arg18[%c0_66, %c0_67] : memref<64x32xf32, #tpu.memory_space<vmem>>, vector<64x32xf32>
    tpu.vector_store %arg18[%c0_66, %c0_67], %207 {strides = array<i32>} : memref<64x32xf32, #tpu.memory_space<vmem>>, vector<64x32xf32>,
    %c1_i32 = arith.constant 1 : i32
    %209 = arith.cmpi eq, %arg1, %c1_i32 : i32
    %210 = arith.extui %209 : i1 to i32
    %c0_i32_68 = arith.constant 0 : i32
    %211 = arith.cmpi ne, %210, %c0_i32_68 : i32
    scf.if %211 {
      %c0_i32_69 = arith.constant 0 : i32
      %c8_i32 = arith.constant 8 : i32
      %212 = arith.addi %c0_i32_69, %c8_i32 : i32
      %c1_i32_70 = arith.constant 1 : i32
      scf.for %arg20 = %c0_i32_69 to %212 step %c1_i32_70  : i32 {
        %c1_i32_88 = arith.constant 1 : i32
        %242 = arith.muli %arg20, %c1_i32_88 : i32
        %c0_i32_89 = arith.constant 0 : i32
        %243 = arith.addi %c0_i32_89, %242 : i32
        %c8_i32_90 = arith.constant 8 : i32
        %244 = arith.muli %arg0, %c8_i32_90 : i32
        %245 = arith.addi %244, %243 : i32
        %c8_i32_91 = arith.constant 8 : i32
        %246 = arith.muli %243, %c8_i32_91 : i32
        %247 = arith.index_cast %245 : i32 to index
        %248 = memref.load %arg2[%247] : memref<16xi32, #tpu.memory_space<smem>>
        %249 = arith.addi %246, %248 : i32
        %250 = arith.index_cast %249 : i32 to index
        %c0_92 = arith.constant 0 : index
        %251 = vector.load %arg18[%250, %c0_92] : memref<64x32xf32, #tpu.memory_space<vmem>>, vector<1x32xf32>
        %252 = arith.index_cast %243 : i32 to index
        %c0_93 = arith.constant 0 : index
        %253 = vector.load %arg19[%252, %c0_93] : memref<8x32xf32, #tpu.memory_space<vmem>>, vector<1x32xf32>
        tpu.vector_store %arg19[%252, %c0_93], %251 {strides = array<i32>} : memref<8x32xf32, #tpu.memory_space<vmem>>, vector<1x32xf32>,
      }
      %c8_i32_71 = arith.constant 8 : i32
      %c0_72 = arith.constant 0 : index
      %c0_73 = arith.constant 0 : index
      %213 = vector.load %arg19[%c0_72, %c0_73] : memref<8x32xf32, #tpu.memory_space<vmem>>, vector<8x32xf32>
      %c0_74 = arith.constant 0 : index
      %c0_75 = arith.constant 0 : index
      %214 = vector.load %arg14[%c0_74, %c0_75] : memref<1x32xf32, #tpu.memory_space<vmem>>, vector<1x32xf32>
      %c0_76 = arith.constant 0 : index
      %c0_77 = arith.constant 0 : index
      %215 = vector.load %arg15[%c0_76, %c0_77] : memref<1x32xf32, #tpu.memory_space<vmem>>, vector<1x32xf32>
      %cst_78 = arith.constant dense<0.000000e+00> : vector<8xf32>
      %216 = vector.multi_reduction <add>, %213, %cst_78 [1] : vector<8x32xf32> to vector<8xf32>
      %217 = vector.shape_cast %216 : vector<8xf32> to vector<8x1xf32>
      %cst_79 = arith.constant 3.200000e+01 : f32
      %218 = vector.broadcast %cst_79 : f32 to vector<8x1xf32>
      %219 = arith.divf %217, %218 : vector<8x1xf32>
      %220 = vector.broadcast %219 : vector<8x1xf32> to vector<8x32xf32>
      %221 = arith.subf %213, %220 : vector<8x32xf32>
      %222 = arith.mulf %221, %221 : vector<8x32xf32>
      %cst_80 = arith.constant dense<0.000000e+00> : vector<8xf32>
      %223 = vector.multi_reduction <add>, %222, %cst_80 [1] : vector<8x32xf32> to vector<8xf32>
      %224 = vector.shape_cast %223 : vector<8xf32> to vector<8x1xf32>
      %cst_81 = arith.constant 3.200000e+01 : f32
      %225 = vector.broadcast %cst_81 : f32 to vector<8x1xf32>
      %226 = arith.divf %224, %225 : vector<8x1xf32>
      %227 = vector.broadcast %219 : vector<8x1xf32> to vector<8x32xf32>
      %228 = arith.subf %213, %227 : vector<8x32xf32>
      %cst_82 = arith.constant 9.99999974E-6 : f32
      %229 = vector.broadcast %cst_82 : f32 to vector<8x1xf32>
      %230 = arith.addf %226, %229 : vector<8x1xf32>
      %231 = math.rsqrt %230 : vector<8x1xf32>
      %232 = vector.broadcast %231 : vector<8x1xf32> to vector<8x32xf32>
      %233 = arith.mulf %228, %232 : vector<8x32xf32>
      %234 = vector.broadcast %214 : vector<1x32xf32> to vector<8x32xf32>
      %235 = arith.mulf %233, %234 : vector<8x32xf32>
      %236 = vector.broadcast %215 : vector<1x32xf32> to vector<8x32xf32>
      %237 = arith.addf %235, %236 : vector<8x32xf32>
      %238 = arith.truncf %237 : vector<8x32xf32> to vector<8x32xbf16>
      %c0_83 = arith.constant 0 : index
      %c0_84 = arith.constant 0 : index
      %239 = vector.load %arg16[%c0_83, %c0_84] : memref<32x32xbf16, #tpu.memory_space<vmem>>, vector<32x32xbf16>
      %cst_85 = arith.constant dense<0.000000e+00> : vector<8x32xf32>
      %240 = tpu.matmul %238, %239, %cst_85 {dimension_numbers = #tpu.dot_dimension_numbers<[1], [0], [0], [1], [0, 0, 1, 1], [], []>} : vector<8x32xbf16>, vector<32x32xbf16>, vector<8x32xf32> -> vector<8x32xf32>
      %c0_86 = arith.constant 0 : index
      %c0_87 = arith.constant 0 : index
      %241 = vector.load %arg17[%c0_86, %c0_87] : memref<8x32xf32, #tpu.memory_space<vmem>>, vector<8x32xf32>
      tpu.vector_store %arg17[%c0_86, %c0_87], %240 {strides = array<i32>} : memref<8x32xf32, #tpu.memory_space<vmem>>, vector<8x32xf32>,
    } else {
    }
    return
  }
  func.func @transform_0(%arg0: i32, %arg1: i32, %arg2: memref<16xi32, #tpu.memory_space<smem>>) -> (i32, i32) {
    %c0_i32 = arith.constant 0 : i32
    %c0_i32_0 = arith.constant 0 : i32
    return %arg0, %c0_i32 : i32, i32
  }
  func.func @transform_1(%arg0: i32, %arg1: i32, %arg2: memref<16xi32, #tpu.memory_space<smem>>) -> (i32, i32) {
    %c0_i32 = arith.constant 0 : i32
    %c0_i32_0 = arith.constant 0 : i32
    %c0_i32_1 = arith.constant 0 : i32
    return %c0_i32, %c0_i32_0 : i32, i32
  }
  func.func @transform_2(%arg0: i32, %arg1: i32, %arg2: memref<16xi32, #tpu.memory_space<smem>>) -> (i32, i32, i32) {
    %c0_i32 = arith.constant 0 : i32
    %c0_i32_0 = arith.constant 0 : i32
    %c0_i32_1 = arith.constant 0 : i32
    return %arg1, %c0_i32, %c0_i32_0 : i32, i32, i32
  }
  func.func @transform_3(%arg0: i32, %arg1: i32, %arg2: memref<16xi32, #tpu.memory_space<smem>>) -> (i32, i32, i32) {
    %c0_i32 = arith.constant 0 : i32
    %c0_i32_0 = arith.constant 0 : i32
    %c0_i32_1 = arith.constant 0 : i32
    return %arg1, %c0_i32, %c0_i32_0 : i32, i32, i32
  }
  func.func @transform_4(%arg0: i32, %arg1: i32, %arg2: memref<16xi32, #tpu.memory_space<smem>>) -> (i32, i32, i32) {
    %c0_i32 = arith.constant 0 : i32
    %c0_i32_0 = arith.constant 0 : i32
    %c0_i32_1 = arith.constant 0 : i32
    return %arg1, %c0_i32, %c0_i32_0 : i32, i32, i32
  }
  func.func @transform_5(%arg0: i32, %arg1: i32, %arg2: memref<16xi32, #tpu.memory_space<smem>>) -> (i32, i32, i32) {
    %c0_i32 = arith.constant 0 : i32
    %c0_i32_0 = arith.constant 0 : i32
    %c0_i32_1 = arith.constant 0 : i32
    return %arg1, %c0_i32, %c0_i32_0 : i32, i32, i32
  }
  func.func @transform_6(%arg0: i32, %arg1: i32, %arg2: memref<16xi32, #tpu.memory_space<smem>>) -> (i32, i32, i32) {
    %c0_i32 = arith.constant 0 : i32
    %c0_i32_0 = arith.constant 0 : i32
    %c0_i32_1 = arith.constant 0 : i32
    return %arg1, %c0_i32, %c0_i32_0 : i32, i32, i32
  }
  func.func @transform_7(%arg0: i32, %arg1: i32, %arg2: memref<16xi32, #tpu.memory_space<smem>>) -> (i32, i32, i32) {
    %c0_i32 = arith.constant 0 : i32
    %c0_i32_0 = arith.constant 0 : i32
    %c0_i32_1 = arith.constant 0 : i32
    return %arg1, %c0_i32, %c0_i32_0 : i32, i32, i32
  }
  func.func @transform_8(%arg0: i32, %arg1: i32, %arg2: memref<16xi32, #tpu.memory_space<smem>>) -> (i32, i32, i32) {
    %c0_i32 = arith.constant 0 : i32
    %c0_i32_0 = arith.constant 0 : i32
    %c0_i32_1 = arith.constant 0 : i32
    return %arg1, %c0_i32, %c0_i32_0 : i32, i32, i32
  }
  func.func @transform_9(%arg0: i32, %arg1: i32, %arg2: memref<16xi32, #tpu.memory_space<smem>>) -> (i32, i32, i32) {
    %c0_i32 = arith.constant 0 : i32
    %c0_i32_0 = arith.constant 0 : i32
    %c0_i32_1 = arith.constant 0 : i32
    return %arg1, %c0_i32, %c0_i32_0 : i32, i32, i32
  }
  func.func @transform_10(%arg0: i32, %arg1: i32, %arg2: memref<16xi32, #tpu.memory_space<smem>>) -> (i32, i32, i32) {
    %c0_i32 = arith.constant 0 : i32
    %c0_i32_0 = arith.constant 0 : i32
    %c0_i32_1 = arith.constant 0 : i32
    return %arg1, %c0_i32, %c0_i32_0 : i32, i32, i32
  }
  func.func @transform_11(%arg0: i32, %arg1: i32, %arg2: memref<16xi32, #tpu.memory_space<smem>>) -> (i32, i32) {
    %c0_i32 = arith.constant 0 : i32
    %c0_i32_0 = arith.constant 0 : i32
    %c0_i32_1 = arith.constant 0 : i32
    return %c0_i32, %c0_i32_0 : i32, i32
  }
  func.func @transform_12(%arg0: i32, %arg1: i32, %arg2: memref<16xi32, #tpu.memory_space<smem>>) -> (i32, i32) {
    %c0_i32 = arith.constant 0 : i32
    %c0_i32_0 = arith.constant 0 : i32
    %c0_i32_1 = arith.constant 0 : i32
    return %c0_i32, %c0_i32_0 : i32, i32
  }
  func.func @transform_13(%arg0: i32, %arg1: i32, %arg2: memref<16xi32, #tpu.memory_space<smem>>) -> (i32, i32) {
    %c0_i32 = arith.constant 0 : i32
    %c0_i32_0 = arith.constant 0 : i32
    %c0_i32_1 = arith.constant 0 : i32
    return %c0_i32, %c0_i32_0 : i32, i32
  }
  func.func @transform_14(%arg0: i32, %arg1: i32, %arg2: memref<16xi32, #tpu.memory_space<smem>>) -> (i32, i32) {
    %c0_i32 = arith.constant 0 : i32
    %c0_i32_0 = arith.constant 0 : i32
    return %arg0, %c0_i32 : i32, i32
  }
}

</mosaic_0001>

<llo_original>
// kernel: tpu_custom_call.1
$region0: #{tpu_custom_call.1}
  #allocation0 [shape = 'u32[]', space=smem, size = 0x4, offset = 0x4, fixed_abs, tag = 'smem constant byte address 0x4 - core index']
  #allocation1 [shape = 'u32[144,128]{1,0:T(1,128)}', space=vmem, size = 0x12000, scoped, tag = 'internal scratch']
  #allocation2 [shape = 'f32[64,32]{1,0:T(8,128)}', space=vmem, size = 0x8000, scoped, tag = 'scratch operand']
  #allocation3 [shape = 'f32[8,32]{1,0:T(8,128)}', space=vmem, size = 0x1000, scoped, tag = 'scratch operand']
  #allocation4 [shape = 's32[1]{0}', space=sflag, size = 0x4, scoped, tag = 'scoped memory for tpu_custom_call.1']
  #allocation5 [shape = 'u8[512]{0}', space=smem, size = 0x200, scoped, tag = 'prefetched SMEM operand 0']
  %s0 = inlined_call_operand.vmem [shape: s32[16], index: 0, kind: input, shape index: {}]
  %s1 = inlined_call_operand.vmem [shape: f32[128,32], index: 1, kind: input, shape index: {}]
  %s2 = inlined_call_operand.vmem [shape: f32[64,32], index: 2, kind: input, shape index: {}]
  %s3 = inlined_call_operand.vmem [shape: bf16[2,32,96], index: 3, kind: input, shape index: {}]
  %s4 = inlined_call_operand.vmem [shape: bf16[2,32,32], index: 4, kind: input, shape index: {}]
  %s5 = inlined_call_operand.vmem [shape: bf16[2,32,128], index: 5, kind: input, shape index: {}]
  %s6 = inlined_call_operand.vmem [shape: bf16[2,128,32], index: 6, kind: input, shape index: {}]
  %s7 = inlined_call_operand.vmem [shape: f32[2,1,96], index: 7, kind: input, shape index: {}]
  %s8 = inlined_call_operand.vmem [shape: f32[2,1,32], index: 8, kind: input, shape index: {}]
  %s9 = inlined_call_operand.vmem [shape: f32[2,1,128], index: 9, kind: input, shape index: {}]
  %s10 = inlined_call_operand.vmem [shape: f32[2,1,32], index: 10, kind: input, shape index: {}]
  %s11 = inlined_call_operand.vmem [shape: f32[2,4,32], index: 11, kind: input, shape index: {}]
  %s12 = inlined_call_operand.vmem [shape: f32[1,32], index: 12, kind: input, shape index: {}]
  %s13 = inlined_call_operand.vmem [shape: f32[1,32], index: 13, kind: input, shape index: {}]
  %s14 = inlined_call_operand.vmem [shape: bf16[32,32], index: 14, kind: input, shape index: {}]
  %s15 = inlined_call_operand.hbm [shape: f32[16,32], index: 15, kind: output, shape index: {}]
  %s16 = sld [smem:[#allocation0]]
  $region104: #{tpu_custom_call.1} parent=0
    _
  %s18 = ssub.s32 1, %s16
  %s19 = scalar_select 0, %s18, %s16
  %s20 = sshll.u32 %s0, 4
  %s21 = int_to_ptr.vmem [resolvable:$true] %s20
  %23 = dma.vmem_to_smem %s21, 16, [#allocation5], [#allocation4]
  %24 = dma.done [#allocation4], 16
  %25 = sfence
  $region1: #{tpu_custom_call.1} parent=0
    #allocation6 [shape = 'u8[8192]{0}', space=vmem, size = 0x2000, scoped, tag = 'output window, operand 0']
    #allocation7 [shape = 's32[2]{0}', space=sflag, size = 0x8, scoped, tag = 'scoped memory for tpu_custom_call.1']
    %26 = vsyncpa [#allocation7], 0
    %s27 = scalar_lea.sflag [#allocation7], 1
    %28 = vsyncpa %s27, 0
    loop: start=0, step=1, limit=6
    $region2: #{tpu_custom_call.1} parent=1 // loop_pre_header
      _
    $region3: #{tpu_custom_call.1} parent=1 // loop_header
      %s30 = sphi 0, %s34
      %p31 = scmp.ge.s32.totalorder %s30, 6
      %s37 = sphi 0, %s49
      %s38 = sphi 0, %s45
      %s39 = sphi 0, %s37
      %s40 = sphi 0, %s38
      %s41 = sphi 0, %s39
      %s42 = sphi 0, %s40
      %s52 = sphi 0, %s54
      %s55 = sphi 0, %s52
      %s56 = sphi 0, %s55
      %s72 = sphi 0, %s56
      %s76 = sphi 0, %s76
      %s78 = sphi 0, %s76
      %s79 = sphi 0, %s78
      %s93 = sphi 0, %s79
      %s99 = sphi 0, %s101
      %s102 = sphi 0, %s99
      %s103 = sphi 0, %s102
      %s119 = sphi 0, %s103
      %s125 = sphi 0, %s127
      %s128 = sphi 0, %s125
      %s129 = sphi 0, %s128
      %s145 = sphi 0, %s129
      %s151 = sphi 0, %s153
      %s154 = sphi 0, %s151
      %s155 = sphi 0, %s154
      %s171 = sphi 0, %s155
      %s177 = sphi 0, %s179
      %s180 = sphi 0, %s177
      %s181 = sphi 0, %s180
      %s197 = sphi 0, %s181
      %s203 = sphi 0, %s205
      %s206 = sphi 0, %s203
      %s207 = sphi 0, %s206
      %s223 = sphi 0, %s207
      %s229 = sphi 0, %s231
      %s232 = sphi 0, %s229
      %s233 = sphi 0, %s232
      %s249 = sphi 0, %s233
      %s255 = sphi 0, %s257
      %s258 = sphi 0, %s255
      %s259 = sphi 0, %s258
      %s275 = sphi 0, %s259
      %s281 = sphi 0, %s283
      %s284 = sphi 0, %s281
      %s285 = sphi 0, %s284
      %s301 = sphi 0, %s285
      %s307 = sphi 0, %s309
      %s310 = sphi 0, %s307
      %s311 = sphi 0, %s310
      %s327 = sphi 0, %s311
      %s331 = sphi 0, %s331
      %s333 = sphi 0, %s331
      %s334 = sphi 0, %s333
      %s348 = sphi 0, %s334
      %s352 = sphi 0, %s352
      %s354 = sphi 0, %s352
      %s355 = sphi 0, %s354
      %s369 = sphi 0, %s355
      %s373 = sphi 0, %s373
      %s375 = sphi 0, %s373
      %s376 = sphi 0, %s375
      %s390 = sphi 0, %s376
      %s396 = sphi 0, %s398
      %s399 = sphi 0, %s396
      %s400 = sphi 0, %s399
      %s416 = sphi 0, %s400
    $region4: #{tpu_custom_call.1} parent=1 // loop_header_branch
      %33 = sbr.rel (%p31) target = $region8
    $region5: #{tpu_custom_call.1} parent=1 // loop_body
      %s35 = ssub.s32 %s30, 1
      %s36 = ssub.s32 %s30, 2
      %s43 = sadd.s32 1, %s38
      %p44 = scmp.ge.s32.totalorder %s43, 2
      %s45 = scalar_select %p44, 0, %s43
      %s46 = sadd.s32 1, %s37
      %s47 = scalar_select %p44, %s46, %s37
      %p48 = scmp.ge.s32.totalorder %s47, 2
      %s49 = scalar_select %p48, 0, %s47
      %s50 = ssub.s32 %s37, %s49
      %p51 = scmp.eq.s32.totalorder %s50, 0
      %s53 = sadd.s32 %s52, 1
      %s54 = scalar_select %p51, %s52, %s53
      %p57 = pneg %p51
      %p58 = scmp.eq.s32.totalorder %s30, 3
      %p59 = por %p57, %p58
      %p60 = scmp.ne.s32.totalorder %s52, %s55
      %p61 = scmp.eq.s32.totalorder %s30, 0
      %p62 = por %p60, %p61
      %p63 = scmp.ne.s32.totalorder %s52, %s55
      %p64 = scmp.eq.s32.totalorder %s35, 3
      %p65 = por %p63, %p64
      %p66 = scmp.ne.s32.totalorder %s55, %s56
      %p67 = scmp.eq.s32.totalorder %s35, 0
      %p68 = por %p66, %p67
      %p69 = scmp.ne.s32.totalorder %s55, %s56
      %p70 = scmp.eq.s32.totalorder %s36, 3
      %p71 = por %p69, %p70
      %p73 = scmp.ne.s32.totalorder %s56, %s72
      %p74 = scmp.eq.s32.totalorder %s36, 0
      %p75 = por %p73, %p74
      %s77 = sadd.s32 %s76, 1
      %p80 = scmp.eq.s32.totalorder %s30, 3
      %p81 = scmp.ne.s32.totalorder %s76, %s78
      %p82 = scmp.eq.s32.totalorder %s30, 0
      %p83 = por %p81, %p82
      %p84 = scmp.ne.s32.totalorder %s76, %s78
      %p85 = scmp.eq.s32.totalorder %s35, 3
      %p86 = por %p84, %p85
      %p87 = scmp.ne.s32.totalorder %s78, %s79
      %p88 = scmp.eq.s32.totalorder %s35, 0
      %p89 = por %p87, %p88
      %p90 = scmp.ne.s32.totalorder %s78, %s79
      %p91 = scmp.eq.s32.totalorder %s36, 3
      %p92 = por %p90, %p91
      %p94 = scmp.ne.s32.totalorder %s79, %s93
      %p95 = scmp.eq.s32.totalorder %s36, 0
      %p96 = por %p94, %p95
      %s97 = ssub.s32 %s38, %s45
      %p98 = scmp.eq.s32.totalorder %s97, 0
      %s100 = sadd.s32 %s99, 1
      %s101 = scalar_select %p98, %s99, %s100
      %p104 = pneg %p98
      %p105 = scmp.eq.s32.totalorder %s30, 3
      %p106 = por %p104, %p105
      %p107 = scmp.ne.s32.totalorder %s99, %s102
      %p108 = scmp.eq.s32.totalorder %s30, 0
      %p109 = por %p107, %p108
      %p110 = scmp.ne.s32.totalorder %s99, %s102
      %p111 = scmp.eq.s32.totalorder %s35, 3
      %p112 = por %p110, %p111
      %p113 = scmp.ne.s32.totalorder %s102, %s103
      %p114 = scmp.eq.s32.totalorder %s35, 0
      %p115 = por %p113, %p114
      %p116 = scmp.ne.s32.totalorder %s102, %s103
      %p117 = scmp.eq.s32.totalorder %s36, 3
      %p118 = por %p116, %p117
      %p120 = scmp.ne.s32.totalorder %s103, %s119
      %p121 = scmp.eq.s32.totalorder %s36, 0
      %p122 = por %p120, %p121
      %s123 = ssub.s32 %s38, %s45
      %p124 = scmp.eq.s32.totalorder %s123, 0
      %s126 = sadd.s32 %s125, 1
      %s127 = scalar_select %p124, %s125, %s126
      %p130 = pneg %p124
      %p131 = scmp.eq.s32.totalorder %s30, 3
      %p132 = por %p130, %p131
      %p133 = scmp.ne.s32.totalorder %s125, %s128
      %p134 = scmp.eq.s32.totalorder %s30, 0
      %p135 = por %p133, %p134
      %p136 = scmp.ne.s32.totalorder %s125, %s128
      %p137 = scmp.eq.s32.totalorder %s35, 3
      %p138 = por %p136, %p137
      %p139 = scmp.ne.s32.totalorder %s128, %s129
      %p140 = scmp.eq.s32.totalorder %s35, 0
      %p141 = por %p139, %p140
      %p142 = scmp.ne.s32.totalorder %s128, %s129
      %p143 = scmp.eq.s32.totalorder %s36, 3
      %p144 = por %p142, %p143
      %p146 = scmp.ne.s32.totalorder %s129, %s145
      %p147 = scmp.eq.s32.totalorder %s36, 0
      %p148 = por %p146, %p147
      %s149 = ssub.s32 %s38, %s45
      %p150 = scmp.eq.s32.totalorder %s149, 0
      %s152 = sadd.s32 %s151, 1
      %s153 = scalar_select %p150, %s151, %s152
      %p156 = pneg %p150
      %p157 = scmp.eq.s32.totalorder %s30, 3
      %p158 = por %p156, %p157
      %p159 = scmp.ne.s32.totalorder %s151, %s154
      %p160 = scmp.eq.s32.totalorder %s30, 0
      %p161 = por %p159, %p160
      %p162 = scmp.ne.s32.totalorder %s151, %s154
      %p163 = scmp.eq.s32.totalorder %s35, 3
      %p164 = por %p162, %p163
      %p165 = scmp.ne.s32.totalorder %s154, %s155
      %p166 = scmp.eq.s32.totalorder %s35, 0
      %p167 = por %p165, %p166
      %p168 = scmp.ne.s32.totalorder %s154, %s155
      %p169 = scmp.eq.s32.totalorder %s36, 3
      %p170 = por %p168, %p169
      %p172 = scmp.ne.s32.totalorder %s155, %s171
      %p173 = scmp.eq.s32.totalorder %s36, 0
      %p174 = por %p172, %p173
      %s175 = ssub.s32 %s38, %s45
      %p176 = scmp.eq.s32.totalorder %s175, 0
      %s178 = sadd.s32 %s177, 1
      %s179 = scalar_select %p176, %s177, %s178
      %p182 = pneg %p176
      %p183 = scmp.eq.s32.totalorder %s30, 3
      %p184 = por %p182, %p183
      %p185 = scmp.ne.s32.totalorder %s177, %s180
      %p186 = scmp.eq.s32.totalorder %s30, 0
      %p187 = por %p185, %p186
      %p188 = scmp.ne.s32.totalorder %s177, %s180
      %p189 = scmp.eq.s32.totalorder %s35, 3
      %p190 = por %p188, %p189
      %p191 = scmp.ne.s32.totalorder %s180, %s181
      %p192 = scmp.eq.s32.totalorder %s35, 0
      %p193 = por %p191, %p192
      %p194 = scmp.ne.s32.totalorder %s180, %s181
      %p195 = scmp.eq.s32.totalorder %s36, 3
      %p196 = por %p194, %p195
      %p198 = scmp.ne.s32.totalorder %s181, %s197
      %p199 = scmp.eq.s32.totalorder %s36, 0
      %p200 = por %p198, %p199
      %s201 = ssub.s32 %s38, %s45
      %p202 = scmp.eq.s32.totalorder %s201, 0
      %s204 = sadd.s32 %s203, 1
      %s205 = scalar_select %p202, %s203, %s204
      %p208 = pneg %p202
      %p209 = scmp.eq.s32.totalorder %s30, 3
      %p210 = por %p208, %p209
      %p211 = scmp.ne.s32.totalorder %s203, %s206
      %p212 = scmp.eq.s32.totalorder %s30, 0
      %p213 = por %p211, %p212
      %p214 = scmp.ne.s32.totalorder %s203, %s206
      %p215 = scmp.eq.s32.totalorder %s35, 3
      %p216 = por %p214, %p215
      %p217 = scmp.ne.s32.totalorder %s206, %s207
      %p218 = scmp.eq.s32.totalorder %s35, 0
      %p219 = por %p217, %p218
      %p220 = scmp.ne.s32.totalorder %s206, %s207
      %p221 = scmp.eq.s32.totalorder %s36, 3
      %p222 = por %p220, %p221
      %p224 = scmp.ne.s32.totalorder %s207, %s223
      %p225 = scmp.eq.s32.totalorder %s36, 0
      %p226 = por %p224, %p225
      %s227 = ssub.s32 %s38, %s45
      %p228 = scmp.eq.s32.totalorder %s227, 0
      %s230 = sadd.s32 %s229, 1
      %s231 = scalar_select %p228, %s229, %s230
      %p234 = pneg %p228
      %p235 = scmp.eq.s32.totalorder %s30, 3
      %p236 = por %p234, %p235
      %p237 = scmp.ne.s32.totalorder %s229, %s232
      %p238 = scmp.eq.s32.totalorder %s30, 0
      %p239 = por %p237, %p238
      %p240 = scmp.ne.s32.totalorder %s229, %s232
      %p241 = scmp.eq.s32.totalorder %s35, 3
      %p242 = por %p240, %p241
      %p243 = scmp.ne.s32.totalorder %s232, %s233
      %p244 = scmp.eq.s32.totalorder %s35, 0
      %p245 = por %p243, %p244
      %p246 = scmp.ne.s32.totalorder %s232, %s233
      %p247 = scmp.eq.s32.totalorder %s36, 3
      %p248 = por %p246, %p247
      %p250 = scmp.ne.s32.totalorder %s233, %s249
      %p251 = scmp.eq.s32.totalorder %s36, 0
      %p252 = por %p250, %p251
      %s253 = ssub.s32 %s38, %s45
      %p254 = scmp.eq.s32.totalorder %s253, 0
      %s256 = sadd.s32 %s255, 1
      %s257 = scalar_select %p254, %s255, %s256
      %p260 = pneg %p254
      %p261 = scmp.eq.s32.totalorder %s30, 3
      %p262 = por %p260, %p261
      %p263 = scmp.ne.s32.totalorder %s255, %s258
      %p264 = scmp.eq.s32.totalorder %s30, 0
      %p265 = por %p263, %p264
      %p266 = scmp.ne.s32.totalorder %s255, %s258
      %p267 = scmp.eq.s32.totalorder %s35, 3
      %p268 = por %p266, %p267
      %p269 = scmp.ne.s32.totalorder %s258, %s259
      %p270 = scmp.eq.s32.totalorder %s35, 0
      %p271 = por %p269, %p270
      %p272 = scmp.ne.s32.totalorder %s258, %s259
      %p273 = scmp.eq.s32.totalorder %s36, 3
      %p274 = por %p272, %p273
      %p276 = scmp.ne.s32.totalorder %s259, %s275
      %p277 = scmp.eq.s32.totalorder %s36, 0
      %p278 = por %p276, %p277
      %s279 = ssub.s32 %s38, %s45
      %p280 = scmp.eq.s32.totalorder %s279, 0
      %s282 = sadd.s32 %s281, 1
      %s283 = scalar_select %p280, %s281, %s282
      %p286 = pneg %p280
      %p287 = scmp.eq.s32.totalorder %s30, 3
      %p288 = por %p286, %p287
      %p289 = scmp.ne.s32.totalorder %s281, %s284
      %p290 = scmp.eq.s32.totalorder %s30, 0
      %p291 = por %p289, %p290
      %p292 = scmp.ne.s32.totalorder %s281, %s284
      %p293 = scmp.eq.s32.totalorder %s35, 3
      %p294 = por %p292, %p293
      %p295 = scmp.ne.s32.totalorder %s284, %s285
      %p296 = scmp.eq.s32.totalorder %s35, 0
      %p297 = por %p295, %p296
      %p298 = scmp.ne.s32.totalorder %s284, %s285
      %p299 = scmp.eq.s32.totalorder %s36, 3
      %p300 = por %p298, %p299
      %p302 = scmp.ne.s32.totalorder %s285, %s301
      %p303 = scmp.eq.s32.totalorder %s36, 0
      %p304 = por %p302, %p303
      %s305 = ssub.s32 %s38, %s45
      %p306 = scmp.eq.s32.totalorder %s305, 0
      %s308 = sadd.s32 %s307, 1
      %s309 = scalar_select %p306, %s307, %s308
      %p312 = pneg %p306
      %p313 = scmp.eq.s32.totalorder %s30, 3
      %p314 = por %p312, %p313
      %p315 = scmp.ne.s32.totalorder %s307, %s310
      %p316 = scmp.eq.s32.totalorder %s30, 0
      %p317 = por %p315, %p316
      %p318 = scmp.ne.s32.totalorder %s307, %s310
      %p319 = scmp.eq.s32.totalorder %s35, 3
      %p320 = por %p318, %p319
      %p321 = scmp.ne.s32.totalorder %s310, %s311
      %p322 = scmp.eq.s32.totalorder %s35, 0
      %p323 = por %p321, %p322
      %p324 = scmp.ne.s32.totalorder %s310, %s311
      %p325 = scmp.eq.s32.totalorder %s36, 3
      %p326 = por %p324, %p325
      %p328 = scmp.ne.s32.totalorder %s311, %s327
      %p329 = scmp.eq.s32.totalorder %s36, 0
      %p330 = por %p328, %p329
      %s332 = sadd.s32 %s331, 1
      %p335 = scmp.eq.s32.totalorder %s30, 3
      %p336 = scmp.ne.s32.totalorder %s331, %s333
      %p337 = scmp.eq.s32.totalorder %s30, 0
      %p338 = por %p336, %p337
      %p339 = scmp.ne.s32.totalorder %s331, %s333
      %p340 = scmp.eq.s32.totalorder %s35, 3
      %p341 = por %p339, %p340
      %p342 = scmp.ne.s32.totalorder %s333, %s334
      %p343 = scmp.eq.s32.totalorder %s35, 0
      %p344 = por %p342, %p343
      %p345 = scmp.ne.s32.totalorder %s333, %s334
      %p346 = scmp.eq.s32.totalorder %s36, 3
      %p347 = por %p345, %p346
      %p349 = scmp.ne.s32.totalorder %s334, %s348
      %p350 = scmp.eq.s32.totalorder %s36, 0
      %p351 = por %p349, %p350
      %s353 = sadd.s32 %s352, 1
      %p356 = scmp.eq.s32.totalorder %s30, 3
      %p357 = scmp.ne.s32.totalorder %s352, %s354
      %p358 = scmp.eq.s32.totalorder %s30, 0
      %p359 = por %p357, %p358
      %p360 = scmp.ne.s32.totalorder %s352, %s354
      %p361 = scmp.eq.s32.totalorder %s35, 3
      %p362 = por %p360, %p361
      %p363 = scmp.ne.s32.totalorder %s354, %s355
      %p364 = scmp.eq.s32.totalorder %s35, 0
      %p365 = por %p363, %p364
      %p366 = scmp.ne.s32.totalorder %s354, %s355
      %p367 = scmp.eq.s32.totalorder %s36, 3
      %p368 = por %p366, %p367
      %p370 = scmp.ne.s32.totalorder %s355, %s369
      %p371 = scmp.eq.s32.totalorder %s36, 0
      %p372 = por %p370, %p371
      %s374 = sadd.s32 %s373, 1
      %p377 = scmp.eq.s32.totalorder %s30, 3
      %p378 = scmp.ne.s32.totalorder %s373, %s375
      %p379 = scmp.eq.s32.totalorder %s30, 0
      %p380 = por %p378, %p379
      %p381 = scmp.ne.s32.totalorder %s373, %s375
      %p382 = scmp.eq.s32.totalorder %s35, 3
      %p383 = por %p381, %p382
      %p384 = scmp.ne.s32.totalorder %s375, %s376
      %p385 = scmp.eq.s32.totalorder %s35, 0
      %p386 = por %p384, %p385
      %p387 = scmp.ne.s32.totalorder %s375, %s376
      %p388 = scmp.eq.s32.totalorder %s36, 3
      %p389 = por %p387, %p388
      %p391 = scmp.ne.s32.totalorder %s376, %s390
      %p392 = scmp.eq.s32.totalorder %s36, 0
      %p393 = por %p391, %p392
      %s394 = ssub.s32 %s37, %s49
      %p395 = scmp.eq.s32.totalorder %s394, 0
      %s397 = sadd.s32 %s396, 1
      %s398 = scalar_select %p395, %s396, %s397
      %p401 = pneg %p395
      %p402 = scmp.eq.s32.totalorder %s30, 3
      %p403 = por %p401, %p402
      %p404 = scmp.ne.s32.totalorder %s396, %s399
      %p405 = scmp.eq.s32.totalorder %s30, 0
      %p406 = por %p404, %p405
      %p407 = scmp.ne.s32.totalorder %s396, %s399
      %p408 = scmp.eq.s32.totalorder %s35, 3
      %p409 = por %p407, %p408
      %p410 = scmp.ne.s32.totalorder %s399, %s400
      %p411 = scmp.eq.s32.totalorder %s35, 0
      %p412 = por %p410, %p411
      %p413 = scmp.ne.s32.totalorder %s399, %s400
      %p414 = scmp.eq.s32.totalorder %s36, 3
      %p415 = por %p413, %p414
      %p417 = scmp.ne.s32.totalorder %s400, %s416
      %p418 = scmp.eq.s32.totalorder %s36, 0
      %p419 = por %p417, %p418
      %p420 = scmp.le.s32.totalorder 1, %s30
      %p421 = scmp.lt.s32.totalorder %s30, 5
      %p422 = pnand %p420, %p421
      %p423 = pneg %p422
      // Predicated region
      $region9: #{tpu_custom_call.1} parent=5 // pred_check
        _
      $region10: #{tpu_custom_call.1} parent=5 // pred_check_branch
        %425 = sbr.rel (%p422) target = $region12
      $region11: #{tpu_custom_call.1} parent=5 // pred_region
        %s426 = ssub.s32 %s30, 1
        // Predicated region
        $region13: #{tpu_custom_call.1} parent=11 // pred_check
          %p427 = pneg %p89
        $region14: #{tpu_custom_call.1} parent=11 // pred_check_branch
          %429 = sbr.rel (%p427) target = $region16
        $region15: #{tpu_custom_call.1} parent=11 // pred_region
          _
        $region16: #{tpu_custom_call.1} parent=11 // pred_fallthru
          _
        // Predicated region
        $region17: #{tpu_custom_call.1} parent=11 // pred_check
          %p430 = pneg %p344
        $region18: #{tpu_custom_call.1} parent=11 // pred_check_branch
          %432 = sbr.rel (%p430) target = $region20
        $region19: #{tpu_custom_call.1} parent=11 // pred_region
          _
        $region20: #{tpu_custom_call.1} parent=11 // pred_fallthru
          _
        // Predicated region
        $region21: #{tpu_custom_call.1} parent=11 // pred_check
          %p433 = pneg %p365
        $region22: #{tpu_custom_call.1} parent=11 // pred_check_branch
          %435 = sbr.rel (%p433) target = $region24
        $region23: #{tpu_custom_call.1} parent=11 // pred_region
          _
        $region24: #{tpu_custom_call.1} parent=11 // pred_fallthru
          _
        // Predicated region
        $region25: #{tpu_custom_call.1} parent=11 // pred_check
          %p436 = pneg %p386
        $region26: #{tpu_custom_call.1} parent=11 // pred_check_branch
          %438 = sbr.rel (%p436) target = $region28
        $region27: #{tpu_custom_call.1} parent=11 // pred_region
          _
        $region28: #{tpu_custom_call.1} parent=11 // pred_fallthru
          _
      $region12: #{tpu_custom_call.1} parent=5 // pred_fallthru
        _
      %p439 = scmp.lt.s32.totalorder %s30, 4
      // Predicated region
      $region29: #{tpu_custom_call.1} parent=5 // pred_check
        %p440 = pneg %p439
      $region30: #{tpu_custom_call.1} parent=5 // pred_check_branch
        %442 = sbr.rel (%p440) target = $region32
      $region31: #{tpu_custom_call.1} parent=5 // pred_region
        // Predicated region
        $region33: #{tpu_custom_call.1} parent=31 // pred_check
          %p443 = pneg %p62
        $region34: #{tpu_custom_call.1} parent=31 // pred_check_branch
          %445 = sbr.rel (%p443) target = $region36
        $region35: #{tpu_custom_call.1} parent=31 // pred_region
          %s446 = smul.u32 8, %s37
          %p447 = scmp.lt.s32.totalorder %s446, 15
          %s448 = scalar_select %p447, %s446, 15
          %s449 = smul.addr %s448, 8
          %s450 = scalar_lea.vmem %s1, %s449
          %s451 = smul.u32 8, %s37
        $region36: #{tpu_custom_call.1} parent=31 // pred_fallthru
          _
        // Predicated region
        $region37: #{tpu_custom_call.1} parent=31 // pred_check
          %p452 = pneg %p109
        $region38: #{tpu_custom_call.1} parent=31 // pred_check_branch
          %454 = sbr.rel (%p452) target = $region40
        $region39: #{tpu_custom_call.1} parent=31 // pred_region
          %p455 = scmp.lt.s32.totalorder %s38, 1
          %s456 = scalar_select %p455, %s38, 1
          %s457 = smul.addr %s456, 4
          %s458 = smul.addr %s457, 4
          %s459 = scalar_lea.vmem %s3, %s458
        $region40: #{tpu_custom_call.1} parent=31 // pred_fallthru
          _
        // Predicated region
        $region41: #{tpu_custom_call.1} parent=31 // pred_check
          %p460 = pneg %p135
        $region42: #{tpu_custom_call.1} parent=31 // pred_check_branch
          %462 = sbr.rel (%p460) target = $region44
        $region43: #{tpu_custom_call.1} parent=31 // pred_region
          %p463 = scmp.lt.s32.totalorder %s38, 1
          %s464 = scalar_select %p463, %s38, 1
          %s465 = smul.addr %s464, 4
          %s466 = smul.addr %s465, 4
          %s467 = scalar_lea.vmem %s4, %s466
        $region44: #{tpu_custom_call.1} parent=31 // pred_fallthru
          _
        // Predicated region
        $region45: #{tpu_custom_call.1} parent=31 // pred_check
          %p468 = pneg %p161
        $region46: #{tpu_custom_call.1} parent=31 // pred_check_branch
          %470 = sbr.rel (%p468) target = $region48
        $region47: #{tpu_custom_call.1} parent=31 // pred_region
          %p471 = scmp.lt.s32.totalorder %s38, 1
          %s472 = scalar_select %p471, %s38, 1
          %s473 = smul.addr %s472, 4
          %s474 = smul.addr %s473, 4
          %s475 = scalar_lea.vmem %s5, %s474
        $region48: #{tpu_custom_call.1} parent=31 // pred_fallthru
          _
        // Predicated region
        $region49: #{tpu_custom_call.1} parent=31 // pred_check
          %p476 = pneg %p187
        $region50: #{tpu_custom_call.1} parent=31 // pred_check_branch
          %478 = sbr.rel (%p476) target = $region52
        $region51: #{tpu_custom_call.1} parent=31 // pred_region
          %p479 = scmp.lt.s32.totalorder %s38, 1
          %s480 = scalar_select %p479, %s38, 1
          %s481 = smul.addr %s480, 16
          %s482 = smul.addr %s481, 4
          %s483 = scalar_lea.vmem %s6, %s482
        $region52: #{tpu_custom_call.1} parent=31 // pred_fallthru
          _
        // Predicated region
        $region53: #{tpu_custom_call.1} parent=31 // pred_check
          %p484 = pneg %p213
        $region54: #{tpu_custom_call.1} parent=31 // pred_check_branch
          %486 = sbr.rel (%p484) target = $region56
        $region55: #{tpu_custom_call.1} parent=31 // pred_region
          %p487 = scmp.lt.s32.totalorder %s38, 1
          %s488 = scalar_select %p487, %s38, 1
          %s489 = scalar_lea.vmem %s7, %s488
        $region56: #{tpu_custom_call.1} parent=31 // pred_fallthru
          _
        // Predicated region
        $region57: #{tpu_custom_call.1} parent=31 // pred_check
          %p490 = pneg %p239
        $region58: #{tpu_custom_call.1} parent=31 // pred_check_branch
          %492 = sbr.rel (%p490) target = $region60
        $region59: #{tpu_custom_call.1} parent=31 // pred_region
          %p493 = scmp.lt.s32.totalorder %s38, 1
          %s494 = scalar_select %p493, %s38, 1
          %s495 = scalar_lea.vmem %s8, %s494
        $region60: #{tpu_custom_call.1} parent=31 // pred_fallthru
          _
        // Predicated region
        $region61: #{tpu_custom_call.1} parent=31 // pred_check
          %p496 = pneg %p265
        $region62: #{tpu_custom_call.1} parent=31 // pred_check_branch
          %498 = sbr.rel (%p496) target = $region64
        $region63: #{tpu_custom_call.1} parent=31 // pred_region
          %p499 = scmp.lt.s32.totalorder %s38, 1
          %s500 = scalar_select %p499, %s38, 1
          %s501 = scalar_lea.vmem %s9, %s500
        $region64: #{tpu_custom_call.1} parent=31 // pred_fallthru
          _
        // Predicated region
        $region65: #{tpu_custom_call.1} parent=31 // pred_check
          %p502 = pneg %p291
        $region66: #{tpu_custom_call.1} parent=31 // pred_check_branch
          %504 = sbr.rel (%p502) target = $region68
        $region67: #{tpu_custom_call.1} parent=31 // pred_region
          %p505 = scmp.lt.s32.totalorder %s38, 1
          %s506 = scalar_select %p505, %s38, 1
          %s507 = scalar_lea.vmem %s10, %s506
        $region68: #{tpu_custom_call.1} parent=31 // pred_fallthru
          _
        // Predicated region
        $region69: #{tpu_custom_call.1} parent=31 // pred_check
          %p508 = pneg %p317
        $region70: #{tpu_custom_call.1} parent=31 // pred_check_branch
          %510 = sbr.rel (%p508) target = $region72
        $region71: #{tpu_custom_call.1} parent=31 // pred_region
          %p511 = scmp.lt.s32.totalorder %s38, 1
          %s512 = scalar_select %p511, %s38, 1
          %s513 = smul.addr %s512, 4
          %s514 = scalar_lea.vmem %s11, %s513
        $region72: #{tpu_custom_call.1} parent=31 // pred_fallthru
          _
      $region32: #{tpu_custom_call.1} parent=5 // pred_fallthru
        _
      %p515 = scmp.le.s32.totalorder 1, %s30
      %p516 = scmp.lt.s32.totalorder %s30, 5
      %p517 = pnand %p515, %p516
      %p518 = pneg %p517
      // Predicated region
      $region73: #{tpu_custom_call.1} parent=5 // pred_check
        _
      $region74: #{tpu_custom_call.1} parent=5 // pred_check_branch
        %520 = sbr.rel (%p517) target = $region76
      $region75: #{tpu_custom_call.1} parent=5 // pred_region
        %s521 = ssub.s32 %s30, 1
        %s522 = smul.u32 8, %s39
        %p523 = scmp.lt.s32.totalorder %s522, 15
        %s524 = scalar_select %p523, %s522, 15
        %s525 = smul.addr %s524, 8
        %s526 = scalar_lea.vmem %s1, %s525
        %p527 = pneg %p68
        %p528 = pneg %p65
        %p529 = pneg %p89
        %p530 = pneg %p86
        %p531 = scmp.lt.s32.totalorder %s40, 1
        %s532 = scalar_select %p531, %s40, 1
        %s533 = smul.addr %s532, 4
        %s534 = smul.addr %s533, 4
        %s535 = scalar_lea.vmem %s3, %s534
        %p536 = pneg %p115
        %p537 = pneg %p112
        %p538 = scmp.lt.s32.totalorder %s40, 1
        %s539 = scalar_select %p538, %s40, 1
        %s540 = smul.addr %s539, 4
        %s541 = smul.addr %s540, 4
        %s542 = scalar_lea.vmem %s4, %s541
        %p543 = pneg %p141
        %p544 = pneg %p138
        %p545 = scmp.lt.s32.totalorder %s40, 1
        %s546 = scalar_select %p545, %s40, 1
        %s547 = smul.addr %s546, 4
        %s548 = smul.addr %s547, 4
        %s549 = scalar_lea.vmem %s5, %s548
        %p550 = pneg %p167
        %p551 = pneg %p164
        %p552 = scmp.lt.s32.totalorder %s40, 1
        %s553 = scalar_select %p552, %s40, 1
        %s554 = smul.addr %s553, 16
        %s555 = smul.addr %s554, 4
        %s556 = scalar_lea.vmem %s6, %s555
        %p557 = pneg %p193
        %p558 = pneg %p190
        %p559 = scmp.lt.s32.totalorder %s40, 1
        %s560 = scalar_select %p559, %s40, 1
        %s561 = scalar_lea.vmem %s7, %s560
        %p562 = pneg %p219
        %p563 = pneg %p216
        %p564 = scmp.lt.s32.totalorder %s40, 1
        %s565 = scalar_select %p564, %s40, 1
        %s566 = scalar_lea.vmem %s8, %s565
        %p567 = pneg %p245
        %p568 = pneg %p242
        %p569 = scmp.lt.s32.totalorder %s40, 1
        %s570 = scalar_select %p569, %s40, 1
        %s571 = scalar_lea.vmem %s9, %s570
        %p572 = pneg %p271
        %p573 = pneg %p268
        %p574 = scmp.lt.s32.totalorder %s40, 1
        %s575 = scalar_select %p574, %s40, 1
        %s576 = scalar_lea.vmem %s10, %s575
        %p577 = pneg %p297
        %p578 = pneg %p294
        %p579 = scmp.lt.s32.totalorder %s40, 1
        %s580 = scalar_select %p579, %s40, 1
        %s581 = smul.addr %s580, 4
        %s582 = scalar_lea.vmem %s11, %s581
        %p583 = pneg %p323
        %p584 = pneg %p320
        %p585 = pneg %p344
        %p586 = pneg %p341
        %p587 = pneg %p365
        %p588 = pneg %p362
        %p589 = pneg %p386
        %p590 = pneg %p383
        %p591 = pneg %p412
        %p592 = pneg %p409
        %s593 = sand.u32 %s399, 1
        %s594 = scalar_lea.sflag [#allocation7], %s593
        %s595 = sand.u32 %s399, 1
        %s596 = smul.addr %s595, 8
        %s597 = scalar_lea.vmem [#allocation6], %s596
        %s598 = smul.u32 8, %s39
        %p599 = scmp.lt.s32.totalorder %s598, 15
        %s600 = scalar_select %p599, %s598, 15
        %s601 = smul.addr %s600, 8
        %s602 = scalar_lea.vmem %s1, %s601
        %s603 = smul.u32 8, %s39
        %p604 = scmp.lt.s32.totalorder %s40, 1
        %s605 = scalar_select %p604, %s40, 1
        %s606 = smul.addr %s605, 4
        %s607 = smul.addr %s606, 4
        %s608 = scalar_lea.vmem %s3, %s607
        %p609 = scmp.lt.s32.totalorder %s40, 1
        %s610 = scalar_select %p609, %s40, 1
        %s611 = smul.addr %s610, 4
        %s612 = smul.addr %s611, 4
        %s613 = scalar_lea.vmem %s4, %s612
        %p614 = scmp.lt.s32.totalorder %s40, 1
        %s615 = scalar_select %p614, %s40, 1
        %s616 = smul.addr %s615, 4
        %s617 = smul.addr %s616, 4
        %s618 = scalar_lea.vmem %s5, %s617
        %p619 = scmp.lt.s32.totalorder %s40, 1
        %s620 = scalar_select %p619, %s40, 1
        %s621 = smul.addr %s620, 16
        %s622 = smul.addr %s621, 4
        %s623 = scalar_lea.vmem %s6, %s622
        %p624 = scmp.lt.s32.totalorder %s40, 1
        %s625 = scalar_select %p624, %s40, 1
        %s626 = scalar_lea.vmem %s7, %s625
        %p627 = scmp.lt.s32.totalorder %s40, 1
        %s628 = scalar_select %p627, %s40, 1
        %s629 = scalar_lea.vmem %s8, %s628
        %p630 = scmp.lt.s32.totalorder %s40, 1
        %s631 = scalar_select %p630, %s40, 1
        %s632 = scalar_lea.vmem %s9, %s631
        %p633 = scmp.lt.s32.totalorder %s40, 1
        %s634 = scalar_select %p633, %s40, 1
        %s635 = scalar_lea.vmem %s10, %s634
        %p636 = scmp.lt.s32.totalorder %s40, 1
        %s637 = scalar_select %p636, %s40, 1
        %s638 = smul.addr %s637, 4
        %s639 = scalar_lea.vmem %s11, %s638
        %p642 = scmp.eq.s32.totalorder %s40, 0
        // Predicated region
        $region77: #{tpu_custom_call.1} parent=75 // pred_check
          %p643 = pneg %p642
        $region78: #{tpu_custom_call.1} parent=75 // pred_check_branch
          %645 = sbr.rel (%p643) target = $region80
        $region79: #{tpu_custom_call.1} parent=75 // pred_region
          %v646 = vld [vmem:[%s602] sm:$0xff]
          %v647 = vld [vmem:[%s602 + $0x8] sm:$0xff]
          %v648 = vld [vmem:[%s602 + $0x10] sm:$0xff]
          %v649 = vld [vmem:[%s602 + $0x18] sm:$0xff]
          %v650 = vld [vmem:[%s602 + $0x20] sm:$0xff]
          %v651 = vld [vmem:[%s602 + $0x28] sm:$0xff]
          %v652 = vld [vmem:[%s602 + $0x30] sm:$0xff]
          %v653 = vld [vmem:[%s602 + $0x38] sm:$0xff]
          %v654 = vld [vmem:[%s2] sm:$0xff]
          %v655 = vld [vmem:[%s2 + $0x8] sm:$0xff]
          %v656 = vld [vmem:[%s2 + $0x10] sm:$0xff]
          %v657 = vld [vmem:[%s2 + $0x18] sm:$0xff]
          %v658 = vld [vmem:[%s2 + $0x20] sm:$0xff]
          %v659 = vld [vmem:[%s2 + $0x28] sm:$0xff]
          %v660 = vld [vmem:[%s2 + $0x30] sm:$0xff]
          %v661 = vld [vmem:[%s2 + $0x38] sm:$0xff]
          %v662 = vadd.f32 %v646, %v654
          %v663 = vadd.f32 %v647, %v655
          %v664 = vadd.f32 %v648, %v656
          %v665 = vadd.f32 %v649, %v657
          %v666 = vadd.f32 %v650, %v658
          %v667 = vadd.f32 %v651, %v659
          %v668 = vadd.f32 %v652, %v660
          %v669 = vadd.f32 %v653, %v661
          %vm670 = vcmask 261120
          %671 = vst.msk [vmem:[#allocation2] sm:$0xff] %vm670, %v662
          %672 = vst.msk [vmem:[#allocation2 + $0x8] sm:$0xff] %vm670, %v663
          %673 = vst.msk [vmem:[#allocation2 + $0x10] sm:$0xff] %vm670, %v664
          %674 = vst.msk [vmem:[#allocation2 + $0x18] sm:$0xff] %vm670, %v665
          %675 = vst.msk [vmem:[#allocation2 + $0x20] sm:$0xff] %vm670, %v666
          %676 = vst.msk [vmem:[#allocation2 + $0x28] sm:$0xff] %vm670, %v667
          %677 = vst.msk [vmem:[#allocation2 + $0x30] sm:$0xff] %vm670, %v668
          %678 = vst.msk [vmem:[#allocation2 + $0x38] sm:$0xff] %vm670, %v669
        $region80: #{tpu_custom_call.1} parent=75 // pred_fallthru
          _
        %v679 = vld [vmem:[%s639] sm:$0xf]
        %v680 = vld [vmem:[#allocation2] sm:$0xff]
        %v681 = vld [vmem:[#allocation2 + $0x8] sm:$0xff]
        %v682 = vld [vmem:[#allocation2 + $0x10] sm:$0xff]
        %v683 = vld [vmem:[#allocation2 + $0x18] sm:$0xff]
        %v684 = vld [vmem:[#allocation2 + $0x20] sm:$0xff]
        %v685 = vld [vmem:[#allocation2 + $0x28] sm:$0xff]
        %v686 = vld [vmem:[#allocation2 + $0x30] sm:$0xff]
        %v687 = vld [vmem:[#allocation2 + $0x38] sm:$0xff]
        %vm688 = vcmask 261120
        %v689 = vsel %vm688, %v680, 0.0
        %690 = vadd.xlane.f32.xlu0 %v689
        %v691 = vpop.xlane.xlu0 %690
        %v692 = vsel %vm688, %v681, 0.0
        %693 = vadd.xlane.f32.xlu0 %v692
        %v694 = vpop.xlane.xlu0 %693
        %v695 = vsel %vm688, %v682, 0.0
        %696 = vadd.xlane.f32.xlu0 %v695
        %v697 = vpop.xlane.xlu0 %696
        %v698 = vsel %vm688, %v683, 0.0
        %699 = vadd.xlane.f32.xlu0 %v698
        %v700 = vpop.xlane.xlu0 %699
        %v701 = vsel %vm688, %v684, 0.0
        %702 = vadd.xlane.f32.xlu0 %v701
        %v703 = vpop.xlane.xlu0 %702
        %v704 = vsel %vm688, %v685, 0.0
        %705 = vadd.xlane.f32.xlu0 %v704
        %v706 = vpop.xlane.xlu0 %705
        %v707 = vsel %vm688, %v686, 0.0
        %708 = vadd.xlane.f32.xlu0 %v707
        %v709 = vpop.xlane.xlu0 %708
        %v710 = vsel %vm688, %v687, 0.0
        %711 = vadd.xlane.f32.xlu0 %v710
        %v712 = vpop.xlane.xlu0 %711
        %v713 = vrcp.pop 32.0
        %v714 = vmul.f32 %v691, %v713
        %v715 = vmul.f32 %v694, %v713
        %v716 = vmul.f32 %v697, %v713
        %v717 = vmul.f32 %v700, %v713
        %v718 = vmul.f32 %v703, %v713
        %v719 = vmul.f32 %v706, %v713
        %v720 = vmul.f32 %v709, %v713
        %v721 = vmul.f32 %v712, %v713
        %v722 = vsub.f32 %v680, %v714
        %v723 = vsub.f32 %v681, %v715
        %v724 = vsub.f32 %v682, %v716
        %v725 = vsub.f32 %v683, %v717
        %v726 = vsub.f32 %v684, %v718
        %v727 = vsub.f32 %v685, %v719
        %v728 = vsub.f32 %v686, %v720
        %v729 = vsub.f32 %v687, %v721
        %v730 = vmul.f32 %v722, %v722
        %v731 = vmul.f32 %v723, %v723
        %v732 = vmul.f32 %v724, %v724
        %v733 = vmul.f32 %v725, %v725
        %v734 = vmul.f32 %v726, %v726
        %v735 = vmul.f32 %v727, %v727
        %v736 = vmul.f32 %v728, %v728
        %v737 = vmul.f32 %v729, %v729
        %v738 = vsel %vm688, %v730, 0.0
        %739 = vadd.xlane.f32.xlu0 %v738
        %v740 = vpop.xlane.xlu0 %739
        %v741 = vsel %vm688, %v731, 0.0
        %742 = vadd.xlane.f32.xlu0 %v741
        %v743 = vpop.xlane.xlu0 %742
        %v744 = vsel %vm688, %v732, 0.0
        %745 = vadd.xlane.f32.xlu0 %v744
        %v746 = vpop.xlane.xlu0 %745
        %v747 = vsel %vm688, %v733, 0.0
        %748 = vadd.xlane.f32.xlu0 %v747
        %v749 = vpop.xlane.xlu0 %748
        %v750 = vsel %vm688, %v734, 0.0
        %751 = vadd.xlane.f32.xlu0 %v750
        %v752 = vpop.xlane.xlu0 %751
        %v753 = vsel %vm688, %v735, 0.0
        %754 = vadd.xlane.f32.xlu0 %v753
        %v755 = vpop.xlane.xlu0 %754
        %v756 = vsel %vm688, %v736, 0.0
        %757 = vadd.xlane.f32.xlu0 %v756
        %v758 = vpop.xlane.xlu0 %757
        %v759 = vsel %vm688, %v737, 0.0
        %760 = vadd.xlane.f32.xlu0 %v759
        %v761 = vpop.xlane.xlu0 %760
        %v762 = vmul.f32 %v740, %v713
        %v763 = vmul.f32 %v743, %v713
        %v764 = vmul.f32 %v746, %v713
        %v765 = vmul.f32 %v749, %v713
        %v766 = vmul.f32 %v752, %v713
        %v767 = vmul.f32 %v755, %v713
        %v768 = vmul.f32 %v758, %v713
        %v769 = vmul.f32 %v761, %v713
        %v770 = vadd.f32 %v762, 1e-05
        %v771 = vadd.f32 %v763, 1e-05
        %v772 = vadd.f32 %v764, 1e-05
        %v773 = vadd.f32 %v765, 1e-05
        %v774 = vadd.f32 %v766, 1e-05
        %v775 = vadd.f32 %v767, 1e-05
        %v776 = vadd.f32 %v768, 1e-05
        %v777 = vadd.f32 %v769, 1e-05
        %v778 = vrsqrt.pop %v770
        %v779 = vrsqrt.pop %v771
        %v780 = vrsqrt.pop %v772
        %v781 = vrsqrt.pop %v773
        %v782 = vrsqrt.pop %v774
        %v783 = vrsqrt.pop %v775
        %v784 = vrsqrt.pop %v776
        %v785 = vrsqrt.pop %v777
        %v786 = vmul.f32 %v722, %v778
        %v787 = vmul.f32 %v723, %v779
        %v788 = vmul.f32 %v724, %v780
        %v789 = vmul.f32 %v725, %v781
        %v790 = vmul.f32 %v726, %v782
        %v791 = vmul.f32 %v727, %v783
        %v792 = vmul.f32 %v728, %v784
        %v793 = vmul.f32 %v729, %v785
        %v794 = vlaneseq
        %v795 = vshrl.u32 %v794, 7
        %v796 = vsub.s32 0, %v795
        %v797 = vrot.slane %v679, %v796
        %v798 = vmul.f32 %v786, %v797
        %v799 = vmul.f32 %v787, %v797
        %v800 = vmul.f32 %v788, %v797
        %v801 = vmul.f32 %v789, %v797
        %v802 = vmul.f32 %v790, %v797
        %v803 = vmul.f32 %v791, %v797
        %v804 = vmul.f32 %v792, %v797
        %v805 = vmul.f32 %v793, %v797
        %v806 = vlaneseq
        %v807 = vshrl.u32 %v806, 7
        %v808 = vsub.s32 1, %v807
        %v809 = vrot.slane %v679, %v808
        %v810 = vadd.f32 %v798, %v809
        %v811 = vadd.f32 %v799, %v809
        %v812 = vadd.f32 %v800, %v809
        %v813 = vadd.f32 %v801, %v809
        %v814 = vadd.f32 %v802, %v809
        %v815 = vadd.f32 %v803, %v809
        %v816 = vadd.f32 %v804, %v809
        %v817 = vadd.f32 %v805, %v809
        %v818 = vpack.c.bf16 %v811, %v810
        %v819 = vpack.c.bf16 %v813, %v812
        %v820 = vpack.c.bf16 %v815, %v814
        %v821 = vpack.c.bf16 %v817, %v816
        %v822 = vld [vmem:[%s608] sm:$0xf]
        %v823 = vld [vmem:[%s608 + $0x4] sm:$0xf]
        %v824 = vld [vmem:[%s608 + $0x8] sm:$0xf]
        %v825 = vld [vmem:[%s608 + $0xc] sm:$0xf]
        %v826 = vld [vmem:[%s626] sm:$0x1]
        %v828 = vlaneseq
        %v829 = vshrl.u32 %v828, 7
        %v830 = vsub.s32 0, %v829
        %v831 = vrot.slane %v826, %v830
        %v837 = vunpack.c.l.b16 %v822
        %v838 = vunpack.c.l.b16 %v823
        %v839 = vunpack.c.l.b16 %v824
        %v840 = vunpack.c.l.b16 %v825
        %v841 = vpack.c.b16 %v838, %v837
        %v842 = vpack.c.b16 %v840, %v839
        %v846 = vsel %vm688, %v818, 0
        %v849 = vsel %vm688, %v819, 0
        %v852 = vsel %vm688, %v820, 0
        %v855 = vsel %vm688, %v821, 0
        %857 = vmatprep.subr.bf16.mxu0 0
        %858 = vmatpush1.bf16.msra.mxu0 %v841
        %859 = vmatprep.subr.bf16.mxu0 0
        %860 = vmatpush1.bf16.msra.mxu0 %v842
        %861 = vmatprep.subr.bf16.mxu0 0
        %862 = vmatpush1.bf16.msra.mxu0 0
        %863 = vmatprep.subr.bf16.mxu0 0
        %864 = vmatpush1.bf16.msra.mxu0 0
        %865 = vmatprep.subr.bf16.mxu0 0
        %866 = vmatpush1.bf16.msra.mxu0 0
        %867 = vmatprep.subr.bf16.mxu0 0
        %868 = vmatpush1.bf16.msra.mxu0 0
        %869 = vmatprep.subr.bf16.mxu0 0
        %870 = vmatpush1.bf16.msra.mxu0 0
        %871 = vmatprep.subr.bf16.mxu0 0
        %872 = vmatpush1.bf16.msra.mxu0 0
        %873 = vmatprep.subr.bf16.mxu0 0
        %874 = vmatpush1.bf16.msra.mxu0 0
        %875 = vmatprep.subr.bf16.mxu0 0
        %876 = vmatpush1.bf16.msra.mxu0 0
        %877 = vmatprep.subr.bf16.mxu0 0
        %878 = vmatpush1.bf16.msra.mxu0 0
        %879 = vmatprep.subr.bf16.mxu0 0
        %880 = vmatpush1.bf16.msra.mxu0 0
        %881 = vmatprep.subr.bf16.mxu0 0
        %882 = vmatpush1.bf16.msra.mxu0 0
        %883 = vmatprep.subr.bf16.mxu0 0
        %884 = vmatpush1.bf16.msra.mxu0 0
        %885 = vmatprep.subr.bf16.mxu0 0
        %886 = vmatpush1.bf16.msra.mxu0 0
        %887 = vmatprep.subr.bf16.mxu0 0
        %888 = vmatpush1.bf16.msra.mxu0 0
        %889 = vmatprep.mubr.bf16.mxu0 0
        %890 = vmatmul.mubr.bf16.gmra.mrb[0].mxu0 %v846
        %v891 = vpop.f32.mrb[0].mxu0
        %v892 = vadd.f32 %v831, %v891
        %v893 = vpop.f32.mrb[0].mxu0
        %v894 = vpop.f32.mrb[0].mxu0
        %v895 = vadd.f32 %v831, %v894
        %v896 = vpop.f32.mrb[0].mxu0
        %897 = vmatprep.mubr.bf16.mxu0 0
        %898 = vmatmul.mubr.bf16.gmra.mrb[0].mxu0 %v849
        %v899 = vpop.f32.mrb[0].mxu0
        %v900 = vadd.f32 %v831, %v899
        %v901 = vpop.f32.mrb[0].mxu0
        %v902 = vpop.f32.mrb[0].mxu0
        %v903 = vadd.f32 %v831, %v902
        %v904 = vpop.f32.mrb[0].mxu0
        %905 = vmatprep.mubr.bf16.mxu0 0
        %906 = vmatmul.mubr.bf16.gmra.mrb[0].mxu0 %v852
        %v907 = vpop.f32.mrb[0].mxu0
        %v908 = vadd.f32 %v831, %v907
        %v909 = vpop.f32.mrb[0].mxu0
        %v910 = vpop.f32.mrb[0].mxu0
        %v911 = vadd.f32 %v831, %v910
        %v912 = vpop.f32.mrb[0].mxu0
        %913 = vmatprep.mubr.bf16.mxu0 0
        %914 = vmatmul.mubr.bf16.gmra.mrb[0].mxu0 %v855
        %v915 = vpop.f32.mrb[0].mxu0
        %v916 = vadd.f32 %v831, %v915
        %v917 = vpop.f32.mrb[0].mxu0
        %v918 = vpop.f32.mrb[0].mxu0
        %v919 = vadd.f32 %v831, %v918
        %v920 = vpop.f32.mrb[0].mxu0
        %921 = vdwg.mxu0
        %v922 = vlaneseq
        %v923 = vshrl.u32 %v922, 7
        %v924 = vlaneseq
        %v925 = vand.u32 %v924, 127
        %vm926 = vcmp.ge.s32.totalorder %v923, %v925
        %v927 = vsel %vm926, 0.0, -1e+30
        %v928 = vpack.c.bf16 %v892, %v892
        %v929 = vpack.c.bf16 %v895, %v895
        %v930 = vpack.c.bf16 %v900, %v900
        %v931 = vpack.c.bf16 %v903, %v903
        %v932 = vpack.c.bf16 %v908, %v908
        %v933 = vpack.c.bf16 %v911, %v911
        %v934 = vpack.c.bf16 %v916, %v916
        %v935 = vpack.c.bf16 %v919, %v919
        %937 = vrot.lane.b32.xlu0 %v928, 96
        %v938 = vpop.permute.xlu0 %937
        %vm939 = vcmask 64512
        %v941 = vsel %vm939, %v928, 0
        %v944 = vsel %vm939, %v938, 0
        %946 = vmatprep.subr.bf16.mxu0 0
        %947 = vmatpush1.bf16.xpose.msra.mxu0 %v944
        %948 = vmatprep.subr.bf16.mxu0 0
        %949 = vmatpush1.bf16.xpose.msra.mxu0 0
        %950 = vmatprep.subr.bf16.mxu0 0
        %951 = vmatpush1.bf16.xpose.msra.mxu0 0
        %952 = vmatprep.subr.bf16.mxu0 0
        %953 = vmatpush1.bf16.xpose.msra.mxu0 0
        %954 = vmatprep.subr.bf16.mxu0 0
        %955 = vmatpush1.bf16.xpose.msra.mxu0 0
        %956 = vmatprep.subr.bf16.mxu0 0
        %957 = vmatpush1.bf16.xpose.msra.mxu0 0
        %958 = vmatprep.subr.bf16.mxu0 0
        %959 = vmatpush1.bf16.xpose.msra.mxu0 0
        %960 = vmatprep.subr.bf16.mxu0 0
        %961 = vmatpush1.bf16.xpose.msra.mxu0 0
        %962 = vmatprep.subr.bf16.mxu0 0
        %963 = vmatpush1.bf16.xpose.msra.mxu0 0
        %964 = vmatprep.subr.bf16.mxu0 0
        %965 = vmatpush1.bf16.xpose.msra.mxu0 0
        %966 = vmatprep.subr.bf16.mxu0 0
        %967 = vmatpush1.bf16.xpose.msra.mxu0 0
        %968 = vmatprep.subr.bf16.mxu0 0
        %969 = vmatpush1.bf16.xpose.msra.mxu0 0
        %970 = vmatprep.subr.bf16.mxu0 0
        %971 = vmatpush1.bf16.xpose.msra.mxu0 0
        %972 = vmatprep.subr.bf16.mxu0 0
        %973 = vmatpush1.bf16.xpose.msra.mxu0 0
        %974 = vmatprep.subr.bf16.mxu0 0
        %975 = vmatpush1.bf16.xpose.msra.mxu0 0
        %976 = vmatprep.subr.bf16.mxu0 0
        %977 = vmatpush1.bf16.xpose.msra.mxu0 0
        %978 = vmatprep.mubr.bf16.mxu0 0
        %979 = vmatmul.mubr.bf16.gmra.mrb[0].mxu0 %v941
        %v980 = vpop.f32.mrb[0].mxu0
        %v981 = vadd.f32 0.0, %v980
        %v982 = vpop.f32.mrb[0].mxu0
        %v983 = vpop.f32.mrb[0].mxu0
        %v984 = vpop.f32.mrb[0].mxu0
        %985 = vdwg.mxu0
        %987 = vrot.lane.b32.xlu0 %v929, 96
        %v988 = vpop.permute.xlu0 %987
        %v990 = vsel %vm939, %v929, 0
        %v993 = vsel %vm939, %v988, 0
        %995 = vmatprep.subr.bf16.mxu0 0
        %996 = vmatpush1.bf16.xpose.msra.mxu0 %v993
        %997 = vmatprep.subr.bf16.mxu0 0
        %998 = vmatpush1.bf16.xpose.msra.mxu0 0
        %999 = vmatprep.subr.bf16.mxu0 0
        %1000 = vmatpush1.bf16.xpose.msra.mxu0 0
        %1001 = vmatprep.subr.bf16.mxu0 0
        %1002 = vmatpush1.bf16.xpose.msra.mxu0 0
        %1003 = vmatprep.subr.bf16.mxu0 0
        %1004 = vmatpush1.bf16.xpose.msra.mxu0 0
        %1005 = vmatprep.subr.bf16.mxu0 0
        %1006 = vmatpush1.bf16.xpose.msra.mxu0 0
        %1007 = vmatprep.subr.bf16.mxu0 0
        %1008 = vmatpush1.bf16.xpose.msra.mxu0 0
        %1009 = vmatprep.subr.bf16.mxu0 0
        %1010 = vmatpush1.bf16.xpose.msra.mxu0 0
        %1011 = vmatprep.subr.bf16.mxu0 0
        %1012 = vmatpush1.bf16.xpose.msra.mxu0 0
        %1013 = vmatprep.subr.bf16.mxu0 0
        %1014 = vmatpush1.bf16.xpose.msra.mxu0 0
        %1015 = vmatprep.subr.bf16.mxu0 0
        %1016 = vmatpush1.bf16.xpose.msra.mxu0 0
        %1017 = vmatprep.subr.bf16.mxu0 0
        %1018 = vmatpush1.bf16.xpose.msra.mxu0 0
        %1019 = vmatprep.subr.bf16.mxu0 0
        %1020 = vmatpush1.bf16.xpose.msra.mxu0 0
        %1021 = vmatprep.subr.bf16.mxu0 0
        %1022 = vmatpush1.bf16.xpose.msra.mxu0 0
        %1023 = vmatprep.subr.bf16.mxu0 0
        %1024 = vmatpush1.bf16.xpose.msra.mxu0 0
        %1025 = vmatprep.subr.bf16.mxu0 0
        %1026 = vmatpush1.bf16.xpose.msra.mxu0 0
        %1027 = vmatprep.mubr.bf16.mxu0 0
        %1028 = vmatmul.mubr.bf16.gmra.mrb[0].mxu0 %v990
        %v1029 = vpop.f32.mrb[0].mxu0
        %v1030 = vadd.f32 0.0, %v1029
        %v1031 = vpop.f32.mrb[0].mxu0
        %v1032 = vpop.f32.mrb[0].mxu0
        %v1033 = vpop.f32.mrb[0].mxu0
        %1034 = vdwg.mxu0
        %1036 = vrot.lane.b32.xlu0 %v930, 96
        %v1037 = vpop.permute.xlu0 %1036
        %v1039 = vsel %vm939, %v930, 0
        %v1042 = vsel %vm939, %v1037, 0
        %1044 = vmatprep.subr.bf16.mxu0 0
        %1045 = vmatpush1.bf16.xpose.msra.mxu0 %v1042
        %1046 = vmatprep.subr.bf16.mxu0 0
        %1047 = vmatpush1.bf16.xpose.msra.mxu0 0
        %1048 = vmatprep.subr.bf16.mxu0 0
        %1049 = vmatpush1.bf16.xpose.msra.mxu0 0
        %1050 = vmatprep.subr.bf16.mxu0 0
        %1051 = vmatpush1.bf16.xpose.msra.mxu0 0
        %1052 = vmatprep.subr.bf16.mxu0 0
        %1053 = vmatpush1.bf16.xpose.msra.mxu0 0
        %1054 = vmatprep.subr.bf16.mxu0 0
        %1055 = vmatpush1.bf16.xpose.msra.mxu0 0
        %1056 = vmatprep.subr.bf16.mxu0 0
        %1057 = vmatpush1.bf16.xpose.msra.mxu0 0
        %1058 = vmatprep.subr.bf16.mxu0 0
        %1059 = vmatpush1.bf16.xpose.msra.mxu0 0
        %1060 = vmatprep.subr.bf16.mxu0 0
        %1061 = vmatpush1.bf16.xpose.msra.mxu0 0
        %1062 = vmatprep.subr.bf16.mxu0 0
        %1063 = vmatpush1.bf16.xpose.msra.mxu0 0
        %1064 = vmatprep.subr.bf16.mxu0 0
        %1065 = vmatpush1.bf16.xpose.msra.mxu0 0
        %1066 = vmatprep.subr.bf16.mxu0 0
        %1067 = vmatpush1.bf16.xpose.msra.mxu0 0
        %1068 = vmatprep.subr.bf16.mxu0 0
        %1069 = vmatpush1.bf16.xpose.msra.mxu0 0
        %1070 = vmatprep.subr.bf16.mxu0 0
        %1071 = vmatpush1.bf16.xpose.msra.mxu0 0
        %1072 = vmatprep.subr.bf16.mxu0 0
        %1073 = vmatpush1.bf16.xpose.msra.mxu0 0
        %1074 = vmatprep.subr.bf16.mxu0 0
        %1075 = vmatpush1.bf16.xpose.msra.mxu0 0
        %1076 = vmatprep.mubr.bf16.mxu0 0
        %1077 = vmatmul.mubr.bf16.gmra.mrb[0].mxu0 %v1039
        %v1078 = vpop.f32.mrb[0].mxu0
        %v1079 = vadd.f32 0.0, %v1078
        %v1080 = vpop.f32.mrb[0].mxu0
        %v1081 = vpop.f32.mrb[0].mxu0
        %v1082 = vpop.f32.mrb[0].mxu0
        %1083 = vdwg.mxu0
        %1085 = vrot.lane.b32.xlu0 %v931, 96
        %v1086 = vpop.permute.xlu0 %1085
        %v1088 = vsel %vm939, %v931, 0
        %v1091 = vsel %vm939, %v1086, 0
        %1093 = vmatprep.subr.bf16.mxu0 0
        %1094 = vmatpush1.bf16.xpose.msra.mxu0 %v1091
        %1095 = vmatprep.subr.bf16.mxu0 0
        %1096 = vmatpush1.bf16.xpose.msra.mxu0 0
        %1097 = vmatprep.subr.bf16.mxu0 0
        %1098 = vmatpush1.bf16.xpose.msra.mxu0 0
        %1099 = vmatprep.subr.bf16.mxu0 0
        %1100 = vmatpush1.bf16.xpose.msra.mxu0 0
        %1101 = vmatprep.subr.bf16.mxu0 0
        %1102 = vmatpush1.bf16.xpose.msra.mxu0 0
        %1103 = vmatprep.subr.bf16.mxu0 0
        %1104 = vmatpush1.bf16.xpose.msra.mxu0 0
        %1105 = vmatprep.subr.bf16.mxu0 0
        %1106 = vmatpush1.bf16.xpose.msra.mxu0 0
        %1107 = vmatprep.subr.bf16.mxu0 0
        %1108 = vmatpush1.bf16.xpose.msra.mxu0 0
        %1109 = vmatprep.subr.bf16.mxu0 0
        %1110 = vmatpush1.bf16.xpose.msra.mxu0 0
        %1111 = vmatprep.subr.bf16.mxu0 0
        %1112 = vmatpush1.bf16.xpose.msra.mxu0 0
        %1113 = vmatprep.subr.bf16.mxu0 0
        %1114 = vmatpush1.bf16.xpose.msra.mxu0 0
        %1115 = vmatprep.subr.bf16.mxu0 0
        %1116 = vmatpush1.bf16.xpose.msra.mxu0 0
        %1117 = vmatprep.subr.bf16.mxu0 0
        %1118 = vmatpush1.bf16.xpose.msra.mxu0 0
        %1119 = vmatprep.subr.bf16.mxu0 0
        %1120 = vmatpush1.bf16.xpose.msra.mxu0 0
        %1121 = vmatprep.subr.bf16.mxu0 0
        %1122 = vmatpush1.bf16.xpose.msra.mxu0 0
        %1123 = vmatprep.subr.bf16.mxu0 0
        %1124 = vmatpush1.bf16.xpose.msra.mxu0 0
        %1125 = vmatprep.mubr.bf16.mxu0 0
        %1126 = vmatmul.mubr.bf16.gmra.mrb[0].mxu0 %v1088
        %v1127 = vpop.f32.mrb[0].mxu0
        %v1128 = vadd.f32 0.0, %v1127
        %v1129 = vpop.f32.mrb[0].mxu0
        %v1130 = vpop.f32.mrb[0].mxu0
        %v1131 = vpop.f32.mrb[0].mxu0
        %1132 = vdwg.mxu0
        %1134 = vrot.lane.b32.xlu0 %v932, 96
        %v1135 = vpop.permute.xlu0 %1134
        %v1137 = vsel %vm939, %v932, 0
        %v1140 = vsel %vm939, %v1135, 0
        %1142 = vmatprep.subr.bf16.mxu0 0
        %1143 = vmatpush1.bf16.xpose.msra.mxu0 %v1140
        %1144 = vmatprep.subr.bf16.mxu0 0
        %1145 = vmatpush1.bf16.xpose.msra.mxu0 0
        %1146 = vmatprep.subr.bf16.mxu0 0
        %1147 = vmatpush1.bf16.xpose.msra.mxu0 0
        %1148 = vmatprep.subr.bf16.mxu0 0
        %1149 = vmatpush1.bf16.xpose.msra.mxu0 0
        %1150 = vmatprep.subr.bf16.mxu0 0
        %1151 = vmatpush1.bf16.xpose.msra.mxu0 0
        %1152 = vmatprep.subr.bf16.mxu0 0
        %1153 = vmatpush1.bf16.xpose.msra.mxu0 0
        %1154 = vmatprep.subr.bf16.mxu0 0
        %1155 = vmatpush1.bf16.xpose.msra.mxu0 0
        %1156 = vmatprep.subr.bf16.mxu0 0
        %1157 = vmatpush1.bf16.xpose.msra.mxu0 0
        %1158 = vmatprep.subr.bf16.mxu0 0
        %1159 = vmatpush1.bf16.xpose.msra.mxu0 0
        %1160 = vmatprep.subr.bf16.mxu0 0
        %1161 = vmatpush1.bf16.xpose.msra.mxu0 0
        %1162 = vmatprep.subr.bf16.mxu0 0
        %1163 = vmatpush1.bf16.xpose.msra.mxu0 0
        %1164 = vmatprep.subr.bf16.mxu0 0
        %1165 = vmatpush1.bf16.xpose.msra.mxu0 0
        %1166 = vmatprep.subr.bf16.mxu0 0
        %1167 = vmatpush1.bf16.xpose.msra.mxu0 0
        %1168 = vmatprep.subr.bf16.mxu0 0
        %1169 = vmatpush1.bf16.xpose.msra.mxu0 0
        %1170 = vmatprep.subr.bf16.mxu0 0
        %1171 = vmatpush1.bf16.xpose.msra.mxu0 0
        %1172 = vmatprep.subr.bf16.mxu0 0
        %1173 = vmatpush1.bf16.xpose.msra.mxu0 0
        %1174 = vmatprep.mubr.bf16.mxu0 0
        %1175 = vmatmul.mubr.bf16.gmra.mrb[0].mxu0 %v1137
        %v1176 = vpop.f32.mrb[0].mxu0
        %v1177 = vadd.f32 0.0, %v1176
        %v1178 = vpop.f32.mrb[0].mxu0
        %v1179 = vpop.f32.mrb[0].mxu0
        %v1180 = vpop.f32.mrb[0].mxu0
        %1181 = vdwg.mxu0
        %1183 = vrot.lane.b32.xlu0 %v933, 96
        %v1184 = vpop.permute.xlu0 %1183
        %v1186 = vsel %vm939, %v933, 0
        %v1189 = vsel %vm939, %v1184, 0
        %1191 = vmatprep.subr.bf16.mxu0 0
        %1192 = vmatpush1.bf16.xpose.msra.mxu0 %v1189
        %1193 = vmatprep.subr.bf16.mxu0 0
        %1194 = vmatpush1.bf16.xpose.msra.mxu0 0
        %1195 = vmatprep.subr.bf16.mxu0 0
        %1196 = vmatpush1.bf16.xpose.msra.mxu0 0
        %1197 = vmatprep.subr.bf16.mxu0 0
        %1198 = vmatpush1.bf16.xpose.msra.mxu0 0
        %1199 = vmatprep.subr.bf16.mxu0 0
        %1200 = vmatpush1.bf16.xpose.msra.mxu0 0
        %1201 = vmatprep.subr.bf16.mxu0 0
        %1202 = vmatpush1.bf16.xpose.msra.mxu0 0
        %1203 = vmatprep.subr.bf16.mxu0 0
        %1204 = vmatpush1.bf16.xpose.msra.mxu0 0
        %1205 = vmatprep.subr.bf16.mxu0 0
        %1206 = vmatpush1.bf16.xpose.msra.mxu0 0
        %1207 = vmatprep.subr.bf16.mxu0 0
        %1208 = vmatpush1.bf16.xpose.msra.mxu0 0
        %1209 = vmatprep.subr.bf16.mxu0 0
        %1210 = vmatpush1.bf16.xpose.msra.mxu0 0
        %1211 = vmatprep.subr.bf16.mxu0 0
        %1212 = vmatpush1.bf16.xpose.msra.mxu0 0
        %1213 = vmatprep.subr.bf16.mxu0 0
        %1214 = vmatpush1.bf16.xpose.msra.mxu0 0
        %1215 = vmatprep.subr.bf16.mxu0 0
        %1216 = vmatpush1.bf16.xpose.msra.mxu0 0
        %1217 = vmatprep.subr.bf16.mxu0 0
        %1218 = vmatpush1.bf16.xpose.msra.mxu0 0
        %1219 = vmatprep.subr.bf16.mxu0 0
        %1220 = vmatpush1.bf16.xpose.msra.mxu0 0
        %1221 = vmatprep.subr.bf16.mxu0 0
        %1222 = vmatpush1.bf16.xpose.msra.mxu0 0
        %1223 = vmatprep.mubr.bf16.mxu0 0
        %1224 = vmatmul.mubr.bf16.gmra.mrb[0].mxu0 %v1186
        %v1225 = vpop.f32.mrb[0].mxu0
        %v1226 = vadd.f32 0.0, %v1225
        %v1227 = vpop.f32.mrb[0].mxu0
        %v1228 = vpop.f32.mrb[0].mxu0
        %v1229 = vpop.f32.mrb[0].mxu0
        %1230 = vdwg.mxu0
        %1232 = vrot.lane.b32.xlu0 %v934, 96
        %v1233 = vpop.permute.xlu0 %1232
        %v1235 = vsel %vm939, %v934, 0
        %v1238 = vsel %vm939, %v1233, 0
        %1240 = vmatprep.subr.bf16.mxu0 0
        %1241 = vmatpush1.bf16.xpose.msra.mxu0 %v1238
        %1242 = vmatprep.subr.bf16.mxu0 0
        %1243 = vmatpush1.bf16.xpose.msra.mxu0 0
        %1244 = vmatprep.subr.bf16.mxu0 0
        %1245 = vmatpush1.bf16.xpose.msra.mxu0 0
        %1246 = vmatprep.subr.bf16.mxu0 0
        %1247 = vmatpush1.bf16.xpose.msra.mxu0 0
        %1248 = vmatprep.subr.bf16.mxu0 0
        %1249 = vmatpush1.bf16.xpose.msra.mxu0 0
        %1250 = vmatprep.subr.bf16.mxu0 0
        %1251 = vmatpush1.bf16.xpose.msra.mxu0 0
        %1252 = vmatprep.subr.bf16.mxu0 0
        %1253 = vmatpush1.bf16.xpose.msra.mxu0 0
        %1254 = vmatprep.subr.bf16.mxu0 0
        %1255 = vmatpush1.bf16.xpose.msra.mxu0 0
        %1256 = vmatprep.subr.bf16.mxu0 0
        %1257 = vmatpush1.bf16.xpose.msra.mxu0 0
        %1258 = vmatprep.subr.bf16.mxu0 0
        %1259 = vmatpush1.bf16.xpose.msra.mxu0 0
        %1260 = vmatprep.subr.bf16.mxu0 0
        %1261 = vmatpush1.bf16.xpose.msra.mxu0 0
        %1262 = vmatprep.subr.bf16.mxu0 0
        %1263 = vmatpush1.bf16.xpose.msra.mxu0 0
        %1264 = vmatprep.subr.bf16.mxu0 0
        %1265 = vmatpush1.bf16.xpose.msra.mxu0 0
        %1266 = vmatprep.subr.bf16.mxu0 0
        %1267 = vmatpush1.bf16.xpose.msra.mxu0 0
        %1268 = vmatprep.subr.bf16.mxu0 0
        %1269 = vmatpush1.bf16.xpose.msra.mxu0 0
        %1270 = vmatprep.subr.bf16.mxu0 0
        %1271 = vmatpush1.bf16.xpose.msra.mxu0 0
        %1272 = vmatprep.mubr.bf16.mxu0 0
        %1273 = vmatmul.mubr.bf16.gmra.mrb[0].mxu0 %v1235
        %v1274 = vpop.f32.mrb[0].mxu0
        %v1275 = vadd.f32 0.0, %v1274
        %v1276 = vpop.f32.mrb[0].mxu0
        %v1277 = vpop.f32.mrb[0].mxu0
        %v1278 = vpop.f32.mrb[0].mxu0
        %1279 = vdwg.mxu0
        %1281 = vrot.lane.b32.xlu0 %v935, 96
        %v1282 = vpop.permute.xlu0 %1281
        %v1284 = vsel %vm939, %v935, 0
        %v1287 = vsel %vm939, %v1282, 0
        %1289 = vmatprep.subr.bf16.mxu0 0
        %1290 = vmatpush1.bf16.xpose.msra.mxu0 %v1287
        %1291 = vmatprep.subr.bf16.mxu0 0
        %1292 = vmatpush1.bf16.xpose.msra.mxu0 0
        %1293 = vmatprep.subr.bf16.mxu0 0
        %1294 = vmatpush1.bf16.xpose.msra.mxu0 0
        %1295 = vmatprep.subr.bf16.mxu0 0
        %1296 = vmatpush1.bf16.xpose.msra.mxu0 0
        %1297 = vmatprep.subr.bf16.mxu0 0
        %1298 = vmatpush1.bf16.xpose.msra.mxu0 0
        %1299 = vmatprep.subr.bf16.mxu0 0
        %1300 = vmatpush1.bf16.xpose.msra.mxu0 0
        %1301 = vmatprep.subr.bf16.mxu0 0
        %1302 = vmatpush1.bf16.xpose.msra.mxu0 0
        %1303 = vmatprep.subr.bf16.mxu0 0
        %1304 = vmatpush1.bf16.xpose.msra.mxu0 0
        %1305 = vmatprep.subr.bf16.mxu0 0
        %1306 = vmatpush1.bf16.xpose.msra.mxu0 0
        %1307 = vmatprep.subr.bf16.mxu0 0
        %1308 = vmatpush1.bf16.xpose.msra.mxu0 0
        %1309 = vmatprep.subr.bf16.mxu0 0
        %1310 = vmatpush1.bf16.xpose.msra.mxu0 0
        %1311 = vmatprep.subr.bf16.mxu0 0
        %1312 = vmatpush1.bf16.xpose.msra.mxu0 0
        %1313 = vmatprep.subr.bf16.mxu0 0
        %1314 = vmatpush1.bf16.xpose.msra.mxu0 0
        %1315 = vmatprep.subr.bf16.mxu0 0
        %1316 = vmatpush1.bf16.xpose.msra.mxu0 0
        %1317 = vmatprep.subr.bf16.mxu0 0
        %1318 = vmatpush1.bf16.xpose.msra.mxu0 0
        %1319 = vmatprep.subr.bf16.mxu0 0
        %1320 = vmatpush1.bf16.xpose.msra.mxu0 0
        %1321 = vmatprep.mubr.bf16.mxu0 0
        %1322 = vmatmul.mubr.bf16.gmra.mrb[0].mxu0 %v1284
        %v1323 = vpop.f32.mrb[0].mxu0
        %v1324 = vadd.f32 0.0, %v1323
        %v1325 = vpop.f32.mrb[0].mxu0
        %v1326 = vpop.f32.mrb[0].mxu0
        %v1327 = vpop.f32.mrb[0].mxu0
        %1328 = vdwg.mxu0
        %v1329 = vmul.f32 %v981, 0.35355338
        %v1330 = vmul.f32 %v1030, 0.35355338
        %v1331 = vmul.f32 %v1079, 0.35355338
        %v1332 = vmul.f32 %v1128, 0.35355338
        %v1333 = vmul.f32 %v1177, 0.35355338
        %v1334 = vmul.f32 %v1226, 0.35355338
        %v1335 = vmul.f32 %v1275, 0.35355338
        %v1336 = vmul.f32 %v1324, 0.35355338
        %v1337 = vadd.f32 %v1329, %v927
        %v1338 = vadd.f32 %v1330, %v927
        %v1339 = vadd.f32 %v1331, %v927
        %v1340 = vadd.f32 %v1332, %v927
        %v1341 = vadd.f32 %v1333, %v927
        %v1342 = vadd.f32 %v1334, %v927
        %v1343 = vadd.f32 %v1335, %v927
        %v1344 = vadd.f32 %v1336, %v927
        %v1345 = vsel %vm939, %v1337, -inf
        %1346 = vmax.xlane.f32.xlu0 %v1345
        %v1347 = vpop.xlane.xlu0 %1346
        %v1348 = vsel %vm939, %v1338, -inf
        %1349 = vmax.xlane.f32.xlu0 %v1348
        %v1350 = vpop.xlane.xlu0 %1349
        %v1351 = vsel %vm939, %v1339, -inf
        %1352 = vmax.xlane.f32.xlu0 %v1351
        %v1353 = vpop.xlane.xlu0 %1352
        %v1354 = vsel %vm939, %v1340, -inf
        %1355 = vmax.xlane.f32.xlu0 %v1354
        %v1356 = vpop.xlane.xlu0 %1355
        %v1357 = vsel %vm939, %v1341, -inf
        %1358 = vmax.xlane.f32.xlu0 %v1357
        %v1359 = vpop.xlane.xlu0 %1358
        %v1360 = vsel %vm939, %v1342, -inf
        %1361 = vmax.xlane.f32.xlu0 %v1360
        %v1362 = vpop.xlane.xlu0 %1361
        %v1363 = vsel %vm939, %v1343, -inf
        %1364 = vmax.xlane.f32.xlu0 %v1363
        %v1365 = vpop.xlane.xlu0 %1364
        %v1366 = vsel %vm939, %v1344, -inf
        %1367 = vmax.xlane.f32.xlu0 %v1366
        %v1368 = vpop.xlane.xlu0 %1367
        %v1369 = vsub.f32 %v1337, %v1347
        %v1370 = vsub.f32 %v1338, %v1350
        %v1371 = vsub.f32 %v1339, %v1353
        %v1372 = vsub.f32 %v1340, %v1356
        %v1373 = vsub.f32 %v1341, %v1359
        %v1374 = vsub.f32 %v1342, %v1362
        %v1375 = vsub.f32 %v1343, %v1365
        %v1376 = vsub.f32 %v1344, %v1368
        %v1377 = vmul.f32 %v1369, 1.442695
        %v1378 = vpow.pop %v1377
        %v1379 = vmul.f32 %v1370, 1.442695
        %v1380 = vpow.pop %v1379
        %v1381 = vmul.f32 %v1371, 1.442695
        %v1382 = vpow.pop %v1381
        %v1383 = vmul.f32 %v1372, 1.442695
        %v1384 = vpow.pop %v1383
        %v1385 = vmul.f32 %v1373, 1.442695
        %v1386 = vpow.pop %v1385
        %v1387 = vmul.f32 %v1374, 1.442695
        %v1388 = vpow.pop %v1387
        %v1389 = vmul.f32 %v1375, 1.442695
        %v1390 = vpow.pop %v1389
        %v1391 = vmul.f32 %v1376, 1.442695
        %v1392 = vpow.pop %v1391
        %v1393 = vsel %vm939, %v1378, 0.0
        %1394 = vadd.xlane.f32.xlu0 %v1393
        %v1395 = vpop.xlane.xlu0 %1394
        %v1396 = vsel %vm939, %v1380, 0.0
        %1397 = vadd.xlane.f32.xlu0 %v1396
        %v1398 = vpop.xlane.xlu0 %1397
        %v1399 = vsel %vm939, %v1382, 0.0
        %1400 = vadd.xlane.f32.xlu0 %v1399
        %v1401 = vpop.xlane.xlu0 %1400
        %v1402 = vsel %vm939, %v1384, 0.0
        %1403 = vadd.xlane.f32.xlu0 %v1402
        %v1404 = vpop.xlane.xlu0 %1403
        %v1405 = vsel %vm939, %v1386, 0.0
        %1406 = vadd.xlane.f32.xlu0 %v1405
        %v1407 = vpop.xlane.xlu0 %1406
        %v1408 = vsel %vm939, %v1388, 0.0
        %1409 = vadd.xlane.f32.xlu0 %v1408
        %v1410 = vpop.xlane.xlu0 %1409
        %v1411 = vsel %vm939, %v1390, 0.0
        %1412 = vadd.xlane.f32.xlu0 %v1411
        %v1413 = vpop.xlane.xlu0 %1412
        %v1414 = vsel %vm939, %v1392, 0.0
        %1415 = vadd.xlane.f32.xlu0 %v1414
        %v1416 = vpop.xlane.xlu0 %1415
        %v1417 = vrcp.pop %v1395
        %v1418 = vrcp.pop %v1398
        %v1419 = vrcp.pop %v1401
        %v1420 = vrcp.pop %v1404
        %v1421 = vrcp.pop %v1407
        %v1422 = vrcp.pop %v1410
        %v1423 = vrcp.pop %v1413
        %v1424 = vrcp.pop %v1416
        %v1425 = vmul.f32 %v1378, %v1417
        %v1426 = vmul.f32 %v1380, %v1418
        %v1427 = vmul.f32 %v1382, %v1419
        %v1428 = vmul.f32 %v1384, %v1420
        %v1429 = vmul.f32 %v1386, %v1421
        %v1430 = vmul.f32 %v1388, %v1422
        %v1431 = vmul.f32 %v1390, %v1423
        %v1432 = vmul.f32 %v1392, %v1424
        %v1433 = vpack.c.bf16 %v1425, %v1425
        %v1434 = vpack.c.bf16 %v1426, %v1426
        %v1435 = vpack.c.bf16 %v1427, %v1427
        %v1436 = vpack.c.bf16 %v1428, %v1428
        %v1437 = vpack.c.bf16 %v1429, %v1429
        %v1438 = vpack.c.bf16 %v1430, %v1430
        %v1439 = vpack.c.bf16 %v1431, %v1431
        %v1440 = vpack.c.bf16 %v1432, %v1432
        %1441 = vrot.lane.b32.xlu0 %v928, 64
        %v1442 = vpop.permute.xlu0 %1441
        %v1444 = vsel %vm939, %v1433, 0
        %vm1446 = vcmask 1043456
        %v1448 = vsel %vm1446, %v1442, 0
        %1450 = vmatprep.subr.bf16.mxu0 0
        %1451 = vmatpush1.bf16.msra.mxu0 %v1448
        %1452 = vmatprep.subr.bf16.mxu0 0
        %1453 = vmatpush1.bf16.msra.mxu0 0
        %1454 = vmatprep.subr.bf16.mxu0 0
        %1455 = vmatpush1.bf16.msra.mxu0 0
        %1456 = vmatprep.subr.bf16.mxu0 0
        %1457 = vmatpush1.bf16.msra.mxu0 0
        %1458 = vmatprep.subr.bf16.mxu0 0
        %1459 = vmatpush1.bf16.msra.mxu0 0
        %1460 = vmatprep.subr.bf16.mxu0 0
        %1461 = vmatpush1.bf16.msra.mxu0 0
        %1462 = vmatprep.subr.bf16.mxu0 0
        %1463 = vmatpush1.bf16.msra.mxu0 0
        %1464 = vmatprep.subr.bf16.mxu0 0
        %1465 = vmatpush1.bf16.msra.mxu0 0
        %1466 = vmatprep.subr.bf16.mxu0 0
        %1467 = vmatpush1.bf16.msra.mxu0 0
        %1468 = vmatprep.subr.bf16.mxu0 0
        %1469 = vmatpush1.bf16.msra.mxu0 0
        %1470 = vmatprep.subr.bf16.mxu0 0
        %1471 = vmatpush1.bf16.msra.mxu0 0
        %1472 = vmatprep.subr.bf16.mxu0 0
        %1473 = vmatpush1.bf16.msra.mxu0 0
        %1474 = vmatprep.subr.bf16.mxu0 0
        %1475 = vmatpush1.bf16.msra.mxu0 0
        %1476 = vmatprep.subr.bf16.mxu0 0
        %1477 = vmatpush1.bf16.msra.mxu0 0
        %1478 = vmatprep.subr.bf16.mxu0 0
        %1479 = vmatpush1.bf16.msra.mxu0 0
        %1480 = vmatprep.subr.bf16.mxu0 0
        %1481 = vmatpush1.bf16.msra.mxu0 0
        %1482 = vmatprep.mubr.bf16.mxu0 0
        %1483 = vmatmul.mubr.bf16.gmra.mrb[0].mxu0 %v1444
        %v1484 = vpop.f32.mrb[0].mxu0
        %v1485 = vadd.f32 0.0, %v1484
        %v1486 = vpop.f32.mrb[0].mxu0
        %v1487 = vpop.f32.mrb[0].mxu0
        %v1488 = vpop.f32.mrb[0].mxu0
        %1489 = vdwg.mxu0
        %1490 = vrot.lane.b32.xlu0 %v929, 64
        %v1491 = vpop.permute.xlu0 %1490
        %v1493 = vsel %vm939, %v1434, 0
        %v1496 = vsel %vm1446, %v1491, 0
        %1498 = vmatprep.subr.bf16.mxu0 0
        %1499 = vmatpush1.bf16.msra.mxu0 %v1496
        %1500 = vmatprep.subr.bf16.mxu0 0
        %1501 = vmatpush1.bf16.msra.mxu0 0
        %1502 = vmatprep.subr.bf16.mxu0 0
        %1503 = vmatpush1.bf16.msra.mxu0 0
        %1504 = vmatprep.subr.bf16.mxu0 0
        %1505 = vmatpush1.bf16.msra.mxu0 0
        %1506 = vmatprep.subr.bf16.mxu0 0
        %1507 = vmatpush1.bf16.msra.mxu0 0
        %1508 = vmatprep.subr.bf16.mxu0 0
        %1509 = vmatpush1.bf16.msra.mxu0 0
        %1510 = vmatprep.subr.bf16.mxu0 0
        %1511 = vmatpush1.bf16.msra.mxu0 0
        %1512 = vmatprep.subr.bf16.mxu0 0
        %1513 = vmatpush1.bf16.msra.mxu0 0
        %1514 = vmatprep.subr.bf16.mxu0 0
        %1515 = vmatpush1.bf16.msra.mxu0 0
        %1516 = vmatprep.subr.bf16.mxu0 0
        %1517 = vmatpush1.bf16.msra.mxu0 0
        %1518 = vmatprep.subr.bf16.mxu0 0
        %1519 = vmatpush1.bf16.msra.mxu0 0
        %1520 = vmatprep.subr.bf16.mxu0 0
        %1521 = vmatpush1.bf16.msra.mxu0 0
        %1522 = vmatprep.subr.bf16.mxu0 0
        %1523 = vmatpush1.bf16.msra.mxu0 0
        %1524 = vmatprep.subr.bf16.mxu0 0
        %1525 = vmatpush1.bf16.msra.mxu0 0
        %1526 = vmatprep.subr.bf16.mxu0 0
        %1527 = vmatpush1.bf16.msra.mxu0 0
        %1528 = vmatprep.subr.bf16.mxu0 0
        %1529 = vmatpush1.bf16.msra.mxu0 0
        %1530 = vmatprep.mubr.bf16.mxu0 0
        %1531 = vmatmul.mubr.bf16.gmra.mrb[0].mxu0 %v1493
        %v1532 = vpop.f32.mrb[0].mxu0
        %v1533 = vadd.f32 0.0, %v1532
        %v1534 = vpop.f32.mrb[0].mxu0
        %v1535 = vpop.f32.mrb[0].mxu0
        %v1536 = vpop.f32.mrb[0].mxu0
        %1537 = vdwg.mxu0
        %1538 = vrot.lane.b32.xlu0 %v930, 64
        %v1539 = vpop.permute.xlu0 %1538
        %v1541 = vsel %vm939, %v1435, 0
        %v1544 = vsel %vm1446, %v1539, 0
        %1546 = vmatprep.subr.bf16.mxu0 0
        %1547 = vmatpush1.bf16.msra.mxu0 %v1544
        %1548 = vmatprep.subr.bf16.mxu0 0
        %1549 = vmatpush1.bf16.msra.mxu0 0
        %1550 = vmatprep.subr.bf16.mxu0 0
        %1551 = vmatpush1.bf16.msra.mxu0 0
        %1552 = vmatprep.subr.bf16.mxu0 0
        %1553 = vmatpush1.bf16.msra.mxu0 0
        %1554 = vmatprep.subr.bf16.mxu0 0
        %1555 = vmatpush1.bf16.msra.mxu0 0
        %1556 = vmatprep.subr.bf16.mxu0 0
        %1557 = vmatpush1.bf16.msra.mxu0 0
        %1558 = vmatprep.subr.bf16.mxu0 0
        %1559 = vmatpush1.bf16.msra.mxu0 0
        %1560 = vmatprep.subr.bf16.mxu0 0
        %1561 = vmatpush1.bf16.msra.mxu0 0
        %1562 = vmatprep.subr.bf16.mxu0 0
        %1563 = vmatpush1.bf16.msra.mxu0 0
        %1564 = vmatprep.subr.bf16.mxu0 0
        %1565 = vmatpush1.bf16.msra.mxu0 0
        %1566 = vmatprep.subr.bf16.mxu0 0
        %1567 = vmatpush1.bf16.msra.mxu0 0
        %1568 = vmatprep.subr.bf16.mxu0 0
        %1569 = vmatpush1.bf16.msra.mxu0 0
        %1570 = vmatprep.subr.bf16.mxu0 0
        %1571 = vmatpush1.bf16.msra.mxu0 0
        %1572 = vmatprep.subr.bf16.mxu0 0
        %1573 = vmatpush1.bf16.msra.mxu0 0
        %1574 = vmatprep.subr.bf16.mxu0 0
        %1575 = vmatpush1.bf16.msra.mxu0 0
        %1576 = vmatprep.subr.bf16.mxu0 0
        %1577 = vmatpush1.bf16.msra.mxu0 0
        %1578 = vmatprep.mubr.bf16.mxu0 0
        %1579 = vmatmul.mubr.bf16.gmra.mrb[0].mxu0 %v1541
        %v1580 = vpop.f32.mrb[0].mxu0
        %v1581 = vadd.f32 0.0, %v1580
        %v1582 = vpop.f32.mrb[0].mxu0
        %v1583 = vpop.f32.mrb[0].mxu0
        %v1584 = vpop.f32.mrb[0].mxu0
        %1585 = vdwg.mxu0
        %1586 = vrot.lane.b32.xlu0 %v931, 64
        %v1587 = vpop.permute.xlu0 %1586
        %v1589 = vsel %vm939, %v1436, 0
        %v1592 = vsel %vm1446, %v1587, 0
        %1594 = vmatprep.subr.bf16.mxu0 0
        %1595 = vmatpush1.bf16.msra.mxu0 %v1592
        %1596 = vmatprep.subr.bf16.mxu0 0
        %1597 = vmatpush1.bf16.msra.mxu0 0
        %1598 = vmatprep.subr.bf16.mxu0 0
        %1599 = vmatpush1.bf16.msra.mxu0 0
        %1600 = vmatprep.subr.bf16.mxu0 0
        %1601 = vmatpush1.bf16.msra.mxu0 0
        %1602 = vmatprep.subr.bf16.mxu0 0
        %1603 = vmatpush1.bf16.msra.mxu0 0
        %1604 = vmatprep.subr.bf16.mxu0 0
        %1605 = vmatpush1.bf16.msra.mxu0 0
        %1606 = vmatprep.subr.bf16.mxu0 0
        %1607 = vmatpush1.bf16.msra.mxu0 0
        %1608 = vmatprep.subr.bf16.mxu0 0
        %1609 = vmatpush1.bf16.msra.mxu0 0
        %1610 = vmatprep.subr.bf16.mxu0 0
        %1611 = vmatpush1.bf16.msra.mxu0 0
        %1612 = vmatprep.subr.bf16.mxu0 0
        %1613 = vmatpush1.bf16.msra.mxu0 0
        %1614 = vmatprep.subr.bf16.mxu0 0
        %1615 = vmatpush1.bf16.msra.mxu0 0
        %1616 = vmatprep.subr.bf16.mxu0 0
        %1617 = vmatpush1.bf16.msra.mxu0 0
        %1618 = vmatprep.subr.bf16.mxu0 0
        %1619 = vmatpush1.bf16.msra.mxu0 0
        %1620 = vmatprep.subr.bf16.mxu0 0
        %1621 = vmatpush1.bf16.msra.mxu0 0
        %1622 = vmatprep.subr.bf16.mxu0 0
        %1623 = vmatpush1.bf16.msra.mxu0 0
        %1624 = vmatprep.subr.bf16.mxu0 0
        %1625 = vmatpush1.bf16.msra.mxu0 0
        %1626 = vmatprep.mubr.bf16.mxu0 0
        %1627 = vmatmul.mubr.bf16.gmra.mrb[0].mxu0 %v1589
        %v1628 = vpop.f32.mrb[0].mxu0
        %v1629 = vadd.f32 0.0, %v1628
        %v1630 = vpop.f32.mrb[0].mxu0
        %v1631 = vpop.f32.mrb[0].mxu0
        %v1632 = vpop.f32.mrb[0].mxu0
        %1633 = vdwg.mxu0
        %1634 = vrot.lane.b32.xlu0 %v932, 64
        %v1635 = vpop.permute.xlu0 %1634
        %v1637 = vsel %vm939, %v1437, 0
        %v1640 = vsel %vm1446, %v1635, 0
        %1642 = vmatprep.subr.bf16.mxu0 0
        %1643 = vmatpush1.bf16.msra.mxu0 %v1640
        %1644 = vmatprep.subr.bf16.mxu0 0
        %1645 = vmatpush1.bf16.msra.mxu0 0
        %1646 = vmatprep.subr.bf16.mxu0 0
        %1647 = vmatpush1.bf16.msra.mxu0 0
        %1648 = vmatprep.subr.bf16.mxu0 0
        %1649 = vmatpush1.bf16.msra.mxu0 0
        %1650 = vmatprep.subr.bf16.mxu0 0
        %1651 = vmatpush1.bf16.msra.mxu0 0
        %1652 = vmatprep.subr.bf16.mxu0 0
        %1653 = vmatpush1.bf16.msra.mxu0 0
        %1654 = vmatprep.subr.bf16.mxu0 0
        %1655 = vmatpush1.bf16.msra.mxu0 0
        %1656 = vmatprep.subr.bf16.mxu0 0
        %1657 = vmatpush1.bf16.msra.mxu0 0
        %1658 = vmatprep.subr.bf16.mxu0 0
        %1659 = vmatpush1.bf16.msra.mxu0 0
        %1660 = vmatprep.subr.bf16.mxu0 0
        %1661 = vmatpush1.bf16.msra.mxu0 0
        %1662 = vmatprep.subr.bf16.mxu0 0
        %1663 = vmatpush1.bf16.msra.mxu0 0
        %1664 = vmatprep.subr.bf16.mxu0 0
        %1665 = vmatpush1.bf16.msra.mxu0 0
        %1666 = vmatprep.subr.bf16.mxu0 0
        %1667 = vmatpush1.bf16.msra.mxu0 0
        %1668 = vmatprep.subr.bf16.mxu0 0
        %1669 = vmatpush1.bf16.msra.mxu0 0
        %1670 = vmatprep.subr.bf16.mxu0 0
        %1671 = vmatpush1.bf16.msra.mxu0 0
        %1672 = vmatprep.subr.bf16.mxu0 0
        %1673 = vmatpush1.bf16.msra.mxu0 0
        %1674 = vmatprep.mubr.bf16.mxu0 0
        %1675 = vmatmul.mubr.bf16.gmra.mrb[0].mxu0 %v1637
        %v1676 = vpop.f32.mrb[0].mxu0
        %v1677 = vadd.f32 0.0, %v1676
        %v1678 = vpop.f32.mrb[0].mxu0
        %v1679 = vpop.f32.mrb[0].mxu0
        %v1680 = vpop.f32.mrb[0].mxu0
        %1681 = vdwg.mxu0
        %1682 = vrot.lane.b32.xlu0 %v933, 64
        %v1683 = vpop.permute.xlu0 %1682
        %v1685 = vsel %vm939, %v1438, 0
        %v1688 = vsel %vm1446, %v1683, 0
        %1690 = vmatprep.subr.bf16.mxu0 0
        %1691 = vmatpush1.bf16.msra.mxu0 %v1688
        %1692 = vmatprep.subr.bf16.mxu0 0
        %1693 = vmatpush1.bf16.msra.mxu0 0
        %1694 = vmatprep.subr.bf16.mxu0 0
        %1695 = vmatpush1.bf16.msra.mxu0 0
        %1696 = vmatprep.subr.bf16.mxu0 0
        %1697 = vmatpush1.bf16.msra.mxu0 0
        %1698 = vmatprep.subr.bf16.mxu0 0
        %1699 = vmatpush1.bf16.msra.mxu0 0
        %1700 = vmatprep.subr.bf16.mxu0 0
        %1701 = vmatpush1.bf16.msra.mxu0 0
        %1702 = vmatprep.subr.bf16.mxu0 0
        %1703 = vmatpush1.bf16.msra.mxu0 0
        %1704 = vmatprep.subr.bf16.mxu0 0
        %1705 = vmatpush1.bf16.msra.mxu0 0
        %1706 = vmatprep.subr.bf16.mxu0 0
        %1707 = vmatpush1.bf16.msra.mxu0 0
        %1708 = vmatprep.subr.bf16.mxu0 0
        %1709 = vmatpush1.bf16.msra.mxu0 0
        %1710 = vmatprep.subr.bf16.mxu0 0
        %1711 = vmatpush1.bf16.msra.mxu0 0
        %1712 = vmatprep.subr.bf16.mxu0 0
        %1713 = vmatpush1.bf16.msra.mxu0 0
        %1714 = vmatprep.subr.bf16.mxu0 0
        %1715 = vmatpush1.bf16.msra.mxu0 0
        %1716 = vmatprep.subr.bf16.mxu0 0
        %1717 = vmatpush1.bf16.msra.mxu0 0
        %1718 = vmatprep.subr.bf16.mxu0 0
        %1719 = vmatpush1.bf16.msra.mxu0 0
        %1720 = vmatprep.subr.bf16.mxu0 0
        %1721 = vmatpush1.bf16.msra.mxu0 0
        %1722 = vmatprep.mubr.bf16.mxu0 0
        %1723 = vmatmul.mubr.bf16.gmra.mrb[0].mxu0 %v1685
        %v1724 = vpop.f32.mrb[0].mxu0
        %v1725 = vadd.f32 0.0, %v1724
        %v1726 = vpop.f32.mrb[0].mxu0
        %v1727 = vpop.f32.mrb[0].mxu0
        %v1728 = vpop.f32.mrb[0].mxu0
        %1729 = vdwg.mxu0
        %1730 = vrot.lane.b32.xlu0 %v934, 64
        %v1731 = vpop.permute.xlu0 %1730
        %v1733 = vsel %vm939, %v1439, 0
        %v1736 = vsel %vm1446, %v1731, 0
        %1738 = vmatprep.subr.bf16.mxu0 0
        %1739 = vmatpush1.bf16.msra.mxu0 %v1736
        %1740 = vmatprep.subr.bf16.mxu0 0
        %1741 = vmatpush1.bf16.msra.mxu0 0
        %1742 = vmatprep.subr.bf16.mxu0 0
        %1743 = vmatpush1.bf16.msra.mxu0 0
        %1744 = vmatprep.subr.bf16.mxu0 0
        %1745 = vmatpush1.bf16.msra.mxu0 0
        %1746 = vmatprep.subr.bf16.mxu0 0
        %1747 = vmatpush1.bf16.msra.mxu0 0
        %1748 = vmatprep.subr.bf16.mxu0 0
        %1749 = vmatpush1.bf16.msra.mxu0 0
        %1750 = vmatprep.subr.bf16.mxu0 0
        %1751 = vmatpush1.bf16.msra.mxu0 0
        %1752 = vmatprep.subr.bf16.mxu0 0
        %1753 = vmatpush1.bf16.msra.mxu0 0
        %1754 = vmatprep.subr.bf16.mxu0 0
        %1755 = vmatpush1.bf16.msra.mxu0 0
        %1756 = vmatprep.subr.bf16.mxu0 0
        %1757 = vmatpush1.bf16.msra.mxu0 0
        %1758 = vmatprep.subr.bf16.mxu0 0
        %1759 = vmatpush1.bf16.msra.mxu0 0
        %1760 = vmatprep.subr.bf16.mxu0 0
        %1761 = vmatpush1.bf16.msra.mxu0 0
        %1762 = vmatprep.subr.bf16.mxu0 0
        %1763 = vmatpush1.bf16.msra.mxu0 0
        %1764 = vmatprep.subr.bf16.mxu0 0
        %1765 = vmatpush1.bf16.msra.mxu0 0
        %1766 = vmatprep.subr.bf16.mxu0 0
        %1767 = vmatpush1.bf16.msra.mxu0 0
        %1768 = vmatprep.subr.bf16.mxu0 0
        %1769 = vmatpush1.bf16.msra.mxu0 0
        %1770 = vmatprep.mubr.bf16.mxu0 0
        %1771 = vmatmul.mubr.bf16.gmra.mrb[0].mxu0 %v1733
        %v1772 = vpop.f32.mrb[0].mxu0
        %v1773 = vadd.f32 0.0, %v1772
        %v1774 = vpop.f32.mrb[0].mxu0
        %v1775 = vpop.f32.mrb[0].mxu0
        %v1776 = vpop.f32.mrb[0].mxu0
        %1777 = vdwg.mxu0
        %1778 = vrot.lane.b32.xlu0 %v935, 64
        %v1779 = vpop.permute.xlu0 %1778
        %v1781 = vsel %vm939, %v1440, 0
        %v1784 = vsel %vm1446, %v1779, 0
        %1786 = vmatprep.subr.bf16.mxu0 0
        %1787 = vmatpush1.bf16.msra.mxu0 %v1784
        %1788 = vmatprep.subr.bf16.mxu0 0
        %1789 = vmatpush1.bf16.msra.mxu0 0
        %1790 = vmatprep.subr.bf16.mxu0 0
        %1791 = vmatpush1.bf16.msra.mxu0 0
        %1792 = vmatprep.subr.bf16.mxu0 0
        %1793 = vmatpush1.bf16.msra.mxu0 0
        %1794 = vmatprep.subr.bf16.mxu0 0
        %1795 = vmatpush1.bf16.msra.mxu0 0
        %1796 = vmatprep.subr.bf16.mxu0 0
        %1797 = vmatpush1.bf16.msra.mxu0 0
        %1798 = vmatprep.subr.bf16.mxu0 0
        %1799 = vmatpush1.bf16.msra.mxu0 0
        %1800 = vmatprep.subr.bf16.mxu0 0
        %1801 = vmatpush1.bf16.msra.mxu0 0
        %1802 = vmatprep.subr.bf16.mxu0 0
        %1803 = vmatpush1.bf16.msra.mxu0 0
        %1804 = vmatprep.subr.bf16.mxu0 0
        %1805 = vmatpush1.bf16.msra.mxu0 0
        %1806 = vmatprep.subr.bf16.mxu0 0
        %1807 = vmatpush1.bf16.msra.mxu0 0
        %1808 = vmatprep.subr.bf16.mxu0 0
        %1809 = vmatpush1.bf16.msra.mxu0 0
        %1810 = vmatprep.subr.bf16.mxu0 0
        %1811 = vmatpush1.bf16.msra.mxu0 0
        %1812 = vmatprep.subr.bf16.mxu0 0
        %1813 = vmatpush1.bf16.msra.mxu0 0
        %1814 = vmatprep.subr.bf16.mxu0 0
        %1815 = vmatpush1.bf16.msra.mxu0 0
        %1816 = vmatprep.subr.bf16.mxu0 0
        %1817 = vmatpush1.bf16.msra.mxu0 0
        %1818 = vmatprep.mubr.bf16.mxu0 0
        %1819 = vmatmul.mubr.bf16.gmra.mrb[0].mxu0 %v1781
        %v1820 = vpop.f32.mrb[0].mxu0
        %v1821 = vadd.f32 0.0, %v1820
        %v1822 = vpop.f32.mrb[0].mxu0
        %v1823 = vpop.f32.mrb[0].mxu0
        %v1824 = vpop.f32.mrb[0].mxu0
        %1825 = vdwg.mxu0
        %1826 = vrot.lane.b32.xlu0 %v928, 120
        %v1827 = vpop.permute.xlu0 %1826
        %1828 = vrot.lane.b32.xlu0 %v928, 88
        %v1829 = vpop.permute.xlu0 %1828
        %v1831 = vsel %vm939, %v1827, 0
        %v1834 = vsel %vm939, %v1829, 0
        %1836 = vmatprep.subr.bf16.mxu0 0
        %1837 = vmatpush1.bf16.xpose.msra.mxu0 %v1834
        %1838 = vmatprep.subr.bf16.mxu0 0
        %1839 = vmatpush1.bf16.xpose.msra.mxu0 0
        %1840 = vmatprep.subr.bf16.mxu0 0
        %1841 = vmatpush1.bf16.xpose.msra.mxu0 0
        %1842 = vmatprep.subr.bf16.mxu0 0
        %1843 = vmatpush1.bf16.xpose.msra.mxu0 0
        %1844 = vmatprep.subr.bf16.mxu0 0
        %1845 = vmatpush1.bf16.xpose.msra.mxu0 0
        %1846 = vmatprep.subr.bf16.mxu0 0
        %1847 = vmatpush1.bf16.xpose.msra.mxu0 0
        %1848 = vmatprep.subr.bf16.mxu0 0
        %1849 = vmatpush1.bf16.xpose.msra.mxu0 0
        %1850 = vmatprep.subr.bf16.mxu0 0
        %1851 = vmatpush1.bf16.xpose.msra.mxu0 0
        %1852 = vmatprep.subr.bf16.mxu0 0
        %1853 = vmatpush1.bf16.xpose.msra.mxu0 0
        %1854 = vmatprep.subr.bf16.mxu0 0
        %1855 = vmatpush1.bf16.xpose.msra.mxu0 0
        %1856 = vmatprep.subr.bf16.mxu0 0
        %1857 = vmatpush1.bf16.xpose.msra.mxu0 0
        %1858 = vmatprep.subr.bf16.mxu0 0
        %1859 = vmatpush1.bf16.xpose.msra.mxu0 0
        %1860 = vmatprep.subr.bf16.mxu0 0
        %1861 = vmatpush1.bf16.xpose.msra.mxu0 0
        %1862 = vmatprep.subr.bf16.mxu0 0
        %1863 = vmatpush1.bf16.xpose.msra.mxu0 0
        %1864 = vmatprep.subr.bf16.mxu0 0
        %1865 = vmatpush1.bf16.xpose.msra.mxu0 0
        %1866 = vmatprep.subr.bf16.mxu0 0
        %1867 = vmatpush1.bf16.xpose.msra.mxu0 0
        %1868 = vmatprep.mubr.bf16.mxu0 0
        %1869 = vmatmul.mubr.bf16.gmra.mrb[0].mxu0 %v1831
        %v1870 = vpop.f32.mrb[0].mxu0
        %v1871 = vadd.f32 0.0, %v1870
        %v1872 = vpop.f32.mrb[0].mxu0
        %v1873 = vpop.f32.mrb[0].mxu0
        %v1874 = vpop.f32.mrb[0].mxu0
        %1875 = vdwg.mxu0
        %1876 = vrot.lane.b32.xlu0 %v929, 120
        %v1877 = vpop.permute.xlu0 %1876
        %1878 = vrot.lane.b32.xlu0 %v929, 88
        %v1879 = vpop.permute.xlu0 %1878
        %v1881 = vsel %vm939, %v1877, 0
        %v1884 = vsel %vm939, %v1879, 0
        %1886 = vmatprep.subr.bf16.mxu0 0
        %1887 = vmatpush1.bf16.xpose.msra.mxu0 %v1884
        %1888 = vmatprep.subr.bf16.mxu0 0
        %1889 = vmatpush1.bf16.xpose.msra.mxu0 0
        %1890 = vmatprep.subr.bf16.mxu0 0
        %1891 = vmatpush1.bf16.xpose.msra.mxu0 0
        %1892 = vmatprep.subr.bf16.mxu0 0
        %1893 = vmatpush1.bf16.xpose.msra.mxu0 0
        %1894 = vmatprep.subr.bf16.mxu0 0
        %1895 = vmatpush1.bf16.xpose.msra.mxu0 0
        %1896 = vmatprep.subr.bf16.mxu0 0
        %1897 = vmatpush1.bf16.xpose.msra.mxu0 0
        %1898 = vmatprep.subr.bf16.mxu0 0
        %1899 = vmatpush1.bf16.xpose.msra.mxu0 0
        %1900 = vmatprep.subr.bf16.mxu0 0
        %1901 = vmatpush1.bf16.xpose.msra.mxu0 0
        %1902 = vmatprep.subr.bf16.mxu0 0
        %1903 = vmatpush1.bf16.xpose.msra.mxu0 0
        %1904 = vmatprep.subr.bf16.mxu0 0
        %1905 = vmatpush1.bf16.xpose.msra.mxu0 0
        %1906 = vmatprep.subr.bf16.mxu0 0
        %1907 = vmatpush1.bf16.xpose.msra.mxu0 0
        %1908 = vmatprep.subr.bf16.mxu0 0
        %1909 = vmatpush1.bf16.xpose.msra.mxu0 0
        %1910 = vmatprep.subr.bf16.mxu0 0
        %1911 = vmatpush1.bf16.xpose.msra.mxu0 0
        %1912 = vmatprep.subr.bf16.mxu0 0
        %1913 = vmatpush1.bf16.xpose.msra.mxu0 0
        %1914 = vmatprep.subr.bf16.mxu0 0
        %1915 = vmatpush1.bf16.xpose.msra.mxu0 0
        %1916 = vmatprep.subr.bf16.mxu0 0
        %1917 = vmatpush1.bf16.xpose.msra.mxu0 0
        %1918 = vmatprep.mubr.bf16.mxu0 0
        %1919 = vmatmul.mubr.bf16.gmra.mrb[0].mxu0 %v1881
        %v1920 = vpop.f32.mrb[0].mxu0
        %v1921 = vadd.f32 0.0, %v1920
        %v1922 = vpop.f32.mrb[0].mxu0
        %v1923 = vpop.f32.mrb[0].mxu0
        %v1924 = vpop.f32.mrb[0].mxu0
        %1925 = vdwg.mxu0
        %1926 = vrot.lane.b32.xlu0 %v930, 120
        %v1927 = vpop.permute.xlu0 %1926
        %1928 = vrot.lane.b32.xlu0 %v930, 88
        %v1929 = vpop.permute.xlu0 %1928
        %v1931 = vsel %vm939, %v1927, 0
        %v1934 = vsel %vm939, %v1929, 0
        %1936 = vmatprep.subr.bf16.mxu0 0
        %1937 = vmatpush1.bf16.xpose.msra.mxu0 %v1934
        %1938 = vmatprep.subr.bf16.mxu0 0
        %1939 = vmatpush1.bf16.xpose.msra.mxu0 0
        %1940 = vmatprep.subr.bf16.mxu0 0
        %1941 = vmatpush1.bf16.xpose.msra.mxu0 0
        %1942 = vmatprep.subr.bf16.mxu0 0
        %1943 = vmatpush1.bf16.xpose.msra.mxu0 0
        %1944 = vmatprep.subr.bf16.mxu0 0
        %1945 = vmatpush1.bf16.xpose.msra.mxu0 0
        %1946 = vmatprep.subr.bf16.mxu0 0
        %1947 = vmatpush1.bf16.xpose.msra.mxu0 0
        %1948 = vmatprep.subr.bf16.mxu0 0
        %1949 = vmatpush1.bf16.xpose.msra.mxu0 0
        %1950 = vmatprep.subr.bf16.mxu0 0
        %1951 = vmatpush1.bf16.xpose.msra.mxu0 0
        %1952 = vmatprep.subr.bf16.mxu0 0
        %1953 = vmatpush1.bf16.xpose.msra.mxu0 0
        %1954 = vmatprep.subr.bf16.mxu0 0
        %1955 = vmatpush1.bf16.xpose.msra.mxu0 0
        %1956 = vmatprep.subr.bf16.mxu0 0
        %1957 = vmatpush1.bf16.xpose.msra.mxu0 0
        %1958 = vmatprep.subr.bf16.mxu0 0
        %1959 = vmatpush1.bf16.xpose.msra.mxu0 0
        %1960 = vmatprep.subr.bf16.mxu0 0
        %1961 = vmatpush1.bf16.xpose.msra.mxu0 0
        %1962 = vmatprep.subr.bf16.mxu0 0
        %1963 = vmatpush1.bf16.xpose.msra.mxu0 0
        %1964 = vmatprep.subr.bf16.mxu0 0
        %1965 = vmatpush1.bf16.xpose.msra.mxu0 0
        %1966 = vmatprep.subr.bf16.mxu0 0
        %1967 = vmatpush1.bf16.xpose.msra.mxu0 0
        %1968 = vmatprep.mubr.bf16.mxu0 0
        %1969 = vmatmul.mubr.bf16.gmra.mrb[0].mxu0 %v1931
        %v1970 = vpop.f32.mrb[0].mxu0
        %v1971 = vadd.f32 0.0, %v1970
        %v1972 = vpop.f32.mrb[0].mxu0
        %v1973 = vpop.f32.mrb[0].mxu0
        %v1974 = vpop.f32.mrb[0].mxu0
        %1975 = vdwg.mxu0
        %1976 = vrot.lane.b32.xlu0 %v931, 120
        %v1977 = vpop.permute.xlu0 %1976
        %1978 = vrot.lane.b32.xlu0 %v931, 88
        %v1979 = vpop.permute.xlu0 %1978
        %v1981 = vsel %vm939, %v1977, 0
        %v1984 = vsel %vm939, %v1979, 0
        %1986 = vmatprep.subr.bf16.mxu0 0
        %1987 = vmatpush1.bf16.xpose.msra.mxu0 %v1984
        %1988 = vmatprep.subr.bf16.mxu0 0
        %1989 = vmatpush1.bf16.xpose.msra.mxu0 0
        %1990 = vmatprep.subr.bf16.mxu0 0
        %1991 = vmatpush1.bf16.xpose.msra.mxu0 0
        %1992 = vmatprep.subr.bf16.mxu0 0
        %1993 = vmatpush1.bf16.xpose.msra.mxu0 0
        %1994 = vmatprep.subr.bf16.mxu0 0
        %1995 = vmatpush1.bf16.xpose.msra.mxu0 0
        %1996 = vmatprep.subr.bf16.mxu0 0
        %1997 = vmatpush1.bf16.xpose.msra.mxu0 0
        %1998 = vmatprep.subr.bf16.mxu0 0
        %1999 = vmatpush1.bf16.xpose.msra.mxu0 0
        %2000 = vmatprep.subr.bf16.mxu0 0
        %2001 = vmatpush1.bf16.xpose.msra.mxu0 0
        %2002 = vmatprep.subr.bf16.mxu0 0
        %2003 = vmatpush1.bf16.xpose.msra.mxu0 0
        %2004 = vmatprep.subr.bf16.mxu0 0
        %2005 = vmatpush1.bf16.xpose.msra.mxu0 0
        %2006 = vmatprep.subr.bf16.mxu0 0
        %2007 = vmatpush1.bf16.xpose.msra.mxu0 0
        %2008 = vmatprep.subr.bf16.mxu0 0
        %2009 = vmatpush1.bf16.xpose.msra.mxu0 0
        %2010 = vmatprep.subr.bf16.mxu0 0
        %2011 = vmatpush1.bf16.xpose.msra.mxu0 0
        %2012 = vmatprep.subr.bf16.mxu0 0
        %2013 = vmatpush1.bf16.xpose.msra.mxu0 0
        %2014 = vmatprep.subr.bf16.mxu0 0
        %2015 = vmatpush1.bf16.xpose.msra.mxu0 0
        %2016 = vmatprep.subr.bf16.mxu0 0
        %2017 = vmatpush1.bf16.xpose.msra.mxu0 0
        %2018 = vmatprep.mubr.bf16.mxu0 0
        %2019 = vmatmul.mubr.bf16.gmra.mrb[0].mxu0 %v1981
        %v2020 = vpop.f32.mrb[0].mxu0
        %v2021 = vadd.f32 0.0, %v2020
        %v2022 = vpop.f32.mrb[0].mxu0
        %v2023 = vpop.f32.mrb[0].mxu0
        %v2024 = vpop.f32.mrb[0].mxu0
        %2025 = vdwg.mxu0
        %2026 = vrot.lane.b32.xlu0 %v932, 120
        %v2027 = vpop.permute.xlu0 %2026
        %2028 = vrot.lane.b32.xlu0 %v932, 88
        %v2029 = vpop.permute.xlu0 %2028
        %v2031 = vsel %vm939, %v2027, 0
        %v2034 = vsel %vm939, %v2029, 0
        %2036 = vmatprep.subr.bf16.mxu0 0
        %2037 = vmatpush1.bf16.xpose.msra.mxu0 %v2034
        %2038 = vmatprep.subr.bf16.mxu0 0
        %2039 = vmatpush1.bf16.xpose.msra.mxu0 0
        %2040 = vmatprep.subr.bf16.mxu0 0
        %2041 = vmatpush1.bf16.xpose.msra.mxu0 0
        %2042 = vmatprep.subr.bf16.mxu0 0
        %2043 = vmatpush1.bf16.xpose.msra.mxu0 0
        %2044 = vmatprep.subr.bf16.mxu0 0
        %2045 = vmatpush1.bf16.xpose.msra.mxu0 0
        %2046 = vmatprep.subr.bf16.mxu0 0
        %2047 = vmatpush1.bf16.xpose.msra.mxu0 0
        %2048 = vmatprep.subr.bf16.mxu0 0
        %2049 = vmatpush1.bf16.xpose.msra.mxu0 0
        %2050 = vmatprep.subr.bf16.mxu0 0
        %2051 = vmatpush1.bf16.xpose.msra.mxu0 0
        %2052 = vmatprep.subr.bf16.mxu0 0
        %2053 = vmatpush1.bf16.xpose.msra.mxu0 0
        %2054 = vmatprep.subr.bf16.mxu0 0
        %2055 = vmatpush1.bf16.xpose.msra.mxu0 0
        %2056 = vmatprep.subr.bf16.mxu0 0
        %2057 = vmatpush1.bf16.xpose.msra.mxu0 0
        %2058 = vmatprep.subr.bf16.mxu0 0
        %2059 = vmatpush1.bf16.xpose.msra.mxu0 0
        %2060 = vmatprep.subr.bf16.mxu0 0
        %2061 = vmatpush1.bf16.xpose.msra.mxu0 0
        %2062 = vmatprep.subr.bf16.mxu0 0
        %2063 = vmatpush1.bf16.xpose.msra.mxu0 0
        %2064 = vmatprep.subr.bf16.mxu0 0
        %2065 = vmatpush1.bf16.xpose.msra.mxu0 0
        %2066 = vmatprep.subr.bf16.mxu0 0
        %2067 = vmatpush1.bf16.xpose.msra.mxu0 0
        %2068 = vmatprep.mubr.bf16.mxu0 0
        %2069 = vmatmul.mubr.bf16.gmra.mrb[0].mxu0 %v2031
        %v2070 = vpop.f32.mrb[0].mxu0
        %v2071 = vadd.f32 0.0, %v2070
        %v2072 = vpop.f32.mrb[0].mxu0
        %v2073 = vpop.f32.mrb[0].mxu0
        %v2074 = vpop.f32.mrb[0].mxu0
        %2075 = vdwg.mxu0
        %2076 = vrot.lane.b32.xlu0 %v933, 120
        %v2077 = vpop.permute.xlu0 %2076
        %2078 = vrot.lane.b32.xlu0 %v933, 88
        %v2079 = vpop.permute.xlu0 %2078
        %v2081 = vsel %vm939, %v2077, 0
        %v2084 = vsel %vm939, %v2079, 0
        %2086 = vmatprep.subr.bf16.mxu0 0
        %2087 = vmatpush1.bf16.xpose.msra.mxu0 %v2084
        %2088 = vmatprep.subr.bf16.mxu0 0
        %2089 = vmatpush1.bf16.xpose.msra.mxu0 0
        %2090 = vmatprep.subr.bf16.mxu0 0
        %2091 = vmatpush1.bf16.xpose.msra.mxu0 0
        %2092 = vmatprep.subr.bf16.mxu0 0
        %2093 = vmatpush1.bf16.xpose.msra.mxu0 0
        %2094 = vmatprep.subr.bf16.mxu0 0
        %2095 = vmatpush1.bf16.xpose.msra.mxu0 0
        %2096 = vmatprep.subr.bf16.mxu0 0
        %2097 = vmatpush1.bf16.xpose.msra.mxu0 0
        %2098 = vmatprep.subr.bf16.mxu0 0
        %2099 = vmatpush1.bf16.xpose.msra.mxu0 0
        %2100 = vmatprep.subr.bf16.mxu0 0
        %2101 = vmatpush1.bf16.xpose.msra.mxu0 0
        %2102 = vmatprep.subr.bf16.mxu0 0
        %2103 = vmatpush1.bf16.xpose.msra.mxu0 0
        %2104 = vmatprep.subr.bf16.mxu0 0
        %2105 = vmatpush1.bf16.xpose.msra.mxu0 0
        %2106 = vmatprep.subr.bf16.mxu0 0
        %2107 = vmatpush1.bf16.xpose.msra.mxu0 0
        %2108 = vmatprep.subr.bf16.mxu0 0
        %2109 = vmatpush1.bf16.xpose.msra.mxu0 0
        %2110 = vmatprep.subr.bf16.mxu0 0
        %2111 = vmatpush1.bf16.xpose.msra.mxu0 0
        %2112 = vmatprep.subr.bf16.mxu0 0
        %2113 = vmatpush1.bf16.xpose.msra.mxu0 0
        %2114 = vmatprep.subr.bf16.mxu0 0
        %2115 = vmatpush1.bf16.xpose.msra.mxu0 0
        %2116 = vmatprep.subr.bf16.mxu0 0
        %2117 = vmatpush1.bf16.xpose.msra.mxu0 0
        %2118 = vmatprep.mubr.bf16.mxu0 0
        %2119 = vmatmul.mubr.bf16.gmra.mrb[0].mxu0 %v2081
        %v2120 = vpop.f32.mrb[0].mxu0
        %v2121 = vadd.f32 0.0, %v2120
        %v2122 = vpop.f32.mrb[0].mxu0
        %v2123 = vpop.f32.mrb[0].mxu0
        %v2124 = vpop.f32.mrb[0].mxu0
        %2125 = vdwg.mxu0
        %2126 = vrot.lane.b32.xlu0 %v934, 120
        %v2127 = vpop.permute.xlu0 %2126
        %2128 = vrot.lane.b32.xlu0 %v934, 88
        %v2129 = vpop.permute.xlu0 %2128
        %v2131 = vsel %vm939, %v2127, 0
        %v2134 = vsel %vm939, %v2129, 0
        %2136 = vmatprep.subr.bf16.mxu0 0
        %2137 = vmatpush1.bf16.xpose.msra.mxu0 %v2134
        %2138 = vmatprep.subr.bf16.mxu0 0
        %2139 = vmatpush1.bf16.xpose.msra.mxu0 0
        %2140 = vmatprep.subr.bf16.mxu0 0
        %2141 = vmatpush1.bf16.xpose.msra.mxu0 0
        %2142 = vmatprep.subr.bf16.mxu0 0
        %2143 = vmatpush1.bf16.xpose.msra.mxu0 0
        %2144 = vmatprep.subr.bf16.mxu0 0
        %2145 = vmatpush1.bf16.xpose.msra.mxu0 0
        %2146 = vmatprep.subr.bf16.mxu0 0
        %2147 = vmatpush1.bf16.xpose.msra.mxu0 0
        %2148 = vmatprep.subr.bf16.mxu0 0
        %2149 = vmatpush1.bf16.xpose.msra.mxu0 0
        %2150 = vmatprep.subr.bf16.mxu0 0
        %2151 = vmatpush1.bf16.xpose.msra.mxu0 0
        %2152 = vmatprep.subr.bf16.mxu0 0
        %2153 = vmatpush1.bf16.xpose.msra.mxu0 0
        %2154 = vmatprep.subr.bf16.mxu0 0
        %2155 = vmatpush1.bf16.xpose.msra.mxu0 0
        %2156 = vmatprep.subr.bf16.mxu0 0
        %2157 = vmatpush1.bf16.xpose.msra.mxu0 0
        %2158 = vmatprep.subr.bf16.mxu0 0
        %2159 = vmatpush1.bf16.xpose.msra.mxu0 0
        %2160 = vmatprep.subr.bf16.mxu0 0
        %2161 = vmatpush1.bf16.xpose.msra.mxu0 0
        %2162 = vmatprep.subr.bf16.mxu0 0
        %2163 = vmatpush1.bf16.xpose.msra.mxu0 0
        %2164 = vmatprep.subr.bf16.mxu0 0
        %2165 = vmatpush1.bf16.xpose.msra.mxu0 0
        %2166 = vmatprep.subr.bf16.mxu0 0
        %2167 = vmatpush1.bf16.xpose.msra.mxu0 0
        %2168 = vmatprep.mubr.bf16.mxu0 0
        %2169 = vmatmul.mubr.bf16.gmra.mrb[0].mxu0 %v2131
        %v2170 = vpop.f32.mrb[0].mxu0
        %v2171 = vadd.f32 0.0, %v2170
        %v2172 = vpop.f32.mrb[0].mxu0
        %v2173 = vpop.f32.mrb[0].mxu0
        %v2174 = vpop.f32.mrb[0].mxu0
        %2175 = vdwg.mxu0
        %2176 = vrot.lane.b32.xlu0 %v935, 120
        %v2177 = vpop.permute.xlu0 %2176
        %2178 = vrot.lane.b32.xlu0 %v935, 88
        %v2179 = vpop.permute.xlu0 %2178
        %v2181 = vsel %vm939, %v2177, 0
        %v2184 = vsel %vm939, %v2179, 0
        %2186 = vmatprep.subr.bf16.mxu0 0
        %2187 = vmatpush1.bf16.xpose.msra.mxu0 %v2184
        %2188 = vmatprep.subr.bf16.mxu0 0
        %2189 = vmatpush1.bf16.xpose.msra.mxu0 0
        %2190 = vmatprep.subr.bf16.mxu0 0
        %2191 = vmatpush1.bf16.xpose.msra.mxu0 0
        %2192 = vmatprep.subr.bf16.mxu0 0
        %2193 = vmatpush1.bf16.xpose.msra.mxu0 0
        %2194 = vmatprep.subr.bf16.mxu0 0
        %2195 = vmatpush1.bf16.xpose.msra.mxu0 0
        %2196 = vmatprep.subr.bf16.mxu0 0
        %2197 = vmatpush1.bf16.xpose.msra.mxu0 0
        %2198 = vmatprep.subr.bf16.mxu0 0
        %2199 = vmatpush1.bf16.xpose.msra.mxu0 0
        %2200 = vmatprep.subr.bf16.mxu0 0
        %2201 = vmatpush1.bf16.xpose.msra.mxu0 0
        %2202 = vmatprep.subr.bf16.mxu0 0
        %2203 = vmatpush1.bf16.xpose.msra.mxu0 0
        %2204 = vmatprep.subr.bf16.mxu0 0
        %2205 = vmatpush1.bf16.xpose.msra.mxu0 0
        %2206 = vmatprep.subr.bf16.mxu0 0
        %2207 = vmatpush1.bf16.xpose.msra.mxu0 0
        %2208 = vmatprep.subr.bf16.mxu0 0
        %2209 = vmatpush1.bf16.xpose.msra.mxu0 0
        %2210 = vmatprep.subr.bf16.mxu0 0
        %2211 = vmatpush1.bf16.xpose.msra.mxu0 0
        %2212 = vmatprep.subr.bf16.mxu0 0
        %2213 = vmatpush1.bf16.xpose.msra.mxu0 0
        %2214 = vmatprep.subr.bf16.mxu0 0
        %2215 = vmatpush1.bf16.xpose.msra.mxu0 0
        %2216 = vmatprep.subr.bf16.mxu0 0
        %2217 = vmatpush1.bf16.xpose.msra.mxu0 0
        %2218 = vmatprep.mubr.bf16.mxu0 0
        %2219 = vmatmul.mubr.bf16.gmra.mrb[0].mxu0 %v2181
        %v2220 = vpop.f32.mrb[0].mxu0
        %v2221 = vadd.f32 0.0, %v2220
        %v2222 = vpop.f32.mrb[0].mxu0
        %v2223 = vpop.f32.mrb[0].mxu0
        %v2224 = vpop.f32.mrb[0].mxu0
        %2225 = vdwg.mxu0
        %v2226 = vmul.f32 %v1871, 0.35355338
        %v2227 = vmul.f32 %v1921, 0.35355338
        %v2228 = vmul.f32 %v1971, 0.35355338
        %v2229 = vmul.f32 %v2021, 0.35355338
        %v2230 = vmul.f32 %v2071, 0.35355338
        %v2231 = vmul.f32 %v2121, 0.35355338
        %v2232 = vmul.f32 %v2171, 0.35355338
        %v2233 = vmul.f32 %v2221, 0.35355338
        %v2234 = vadd.f32 %v2226, %v927
        %v2235 = vadd.f32 %v2227, %v927
        %v2236 = vadd.f32 %v2228, %v927
        %v2237 = vadd.f32 %v2229, %v927
        %v2238 = vadd.f32 %v2230, %v927
        %v2239 = vadd.f32 %v2231, %v927
        %v2240 = vadd.f32 %v2232, %v927
        %v2241 = vadd.f32 %v2233, %v927
        %v2242 = vsel %vm939, %v2234, -inf
        %2243 = vmax.xlane.f32.xlu0 %v2242
        %v2244 = vpop.xlane.xlu0 %2243
        %v2245 = vsel %vm939, %v2235, -inf
        %2246 = vmax.xlane.f32.xlu0 %v2245
        %v2247 = vpop.xlane.xlu0 %2246
        %v2248 = vsel %vm939, %v2236, -inf
        %2249 = vmax.xlane.f32.xlu0 %v2248
        %v2250 = vpop.xlane.xlu0 %2249
        %v2251 = vsel %vm939, %v2237, -inf
        %2252 = vmax.xlane.f32.xlu0 %v2251
        %v2253 = vpop.xlane.xlu0 %2252
        %v2254 = vsel %vm939, %v2238, -inf
        %2255 = vmax.xlane.f32.xlu0 %v2254
        %v2256 = vpop.xlane.xlu0 %2255
        %v2257 = vsel %vm939, %v2239, -inf
        %2258 = vmax.xlane.f32.xlu0 %v2257
        %v2259 = vpop.xlane.xlu0 %2258
        %v2260 = vsel %vm939, %v2240, -inf
        %2261 = vmax.xlane.f32.xlu0 %v2260
        %v2262 = vpop.xlane.xlu0 %2261
        %v2263 = vsel %vm939, %v2241, -inf
        %2264 = vmax.xlane.f32.xlu0 %v2263
        %v2265 = vpop.xlane.xlu0 %2264
        %v2266 = vsub.f32 %v2234, %v2244
        %v2267 = vsub.f32 %v2235, %v2247
        %v2268 = vsub.f32 %v2236, %v2250
        %v2269 = vsub.f32 %v2237, %v2253
        %v2270 = vsub.f32 %v2238, %v2256
        %v2271 = vsub.f32 %v2239, %v2259
        %v2272 = vsub.f32 %v2240, %v2262
        %v2273 = vsub.f32 %v2241, %v2265
        %v2274 = vmul.f32 %v2266, 1.442695
        %v2275 = vpow.pop %v2274
        %v2276 = vmul.f32 %v2267, 1.442695
        %v2277 = vpow.pop %v2276
        %v2278 = vmul.f32 %v2268, 1.442695
        %v2279 = vpow.pop %v2278
        %v2280 = vmul.f32 %v2269, 1.442695
        %v2281 = vpow.pop %v2280
        %v2282 = vmul.f32 %v2270, 1.442695
        %v2283 = vpow.pop %v2282
        %v2284 = vmul.f32 %v2271, 1.442695
        %v2285 = vpow.pop %v2284
        %v2286 = vmul.f32 %v2272, 1.442695
        %v2287 = vpow.pop %v2286
        %v2288 = vmul.f32 %v2273, 1.442695
        %v2289 = vpow.pop %v2288
        %v2290 = vsel %vm939, %v2275, 0.0
        %2291 = vadd.xlane.f32.xlu0 %v2290
        %v2292 = vpop.xlane.xlu0 %2291
        %v2293 = vsel %vm939, %v2277, 0.0
        %2294 = vadd.xlane.f32.xlu0 %v2293
        %v2295 = vpop.xlane.xlu0 %2294
        %v2296 = vsel %vm939, %v2279, 0.0
        %2297 = vadd.xlane.f32.xlu0 %v2296
        %v2298 = vpop.xlane.xlu0 %2297
        %v2299 = vsel %vm939, %v2281, 0.0
        %2300 = vadd.xlane.f32.xlu0 %v2299
        %v2301 = vpop.xlane.xlu0 %2300
        %v2302 = vsel %vm939, %v2283, 0.0
        %2303 = vadd.xlane.f32.xlu0 %v2302
        %v2304 = vpop.xlane.xlu0 %2303
        %v2305 = vsel %vm939, %v2285, 0.0
        %2306 = vadd.xlane.f32.xlu0 %v2305
        %v2307 = vpop.xlane.xlu0 %2306
        %v2308 = vsel %vm939, %v2287, 0.0
        %2309 = vadd.xlane.f32.xlu0 %v2308
        %v2310 = vpop.xlane.xlu0 %2309
        %v2311 = vsel %vm939, %v2289, 0.0
        %2312 = vadd.xlane.f32.xlu0 %v2311
        %v2313 = vpop.xlane.xlu0 %2312
        %v2314 = vrcp.pop %v2292
        %v2315 = vrcp.pop %v2295
        %v2316 = vrcp.pop %v2298
        %v2317 = vrcp.pop %v2301
        %v2318 = vrcp.pop %v2304
        %v2319 = vrcp.pop %v2307
        %v2320 = vrcp.pop %v2310
        %v2321 = vrcp.pop %v2313
        %v2322 = vmul.f32 %v2275, %v2314
        %v2323 = vmul.f32 %v2277, %v2315
        %v2324 = vmul.f32 %v2279, %v2316
        %v2325 = vmul.f32 %v2281, %v2317
        %v2326 = vmul.f32 %v2283, %v2318
        %v2327 = vmul.f32 %v2285, %v2319
        %v2328 = vmul.f32 %v2287, %v2320
        %v2329 = vmul.f32 %v2289, %v2321
        %v2330 = vpack.c.bf16 %v2322, %v2322
        %v2331 = vpack.c.bf16 %v2323, %v2323
        %v2332 = vpack.c.bf16 %v2324, %v2324
        %v2333 = vpack.c.bf16 %v2325, %v2325
        %v2334 = vpack.c.bf16 %v2326, %v2326
        %v2335 = vpack.c.bf16 %v2327, %v2327
        %v2336 = vpack.c.bf16 %v2328, %v2328
        %v2337 = vpack.c.bf16 %v2329, %v2329
        %2338 = vrot.lane.b32.xlu0 %v928, 56
        %v2339 = vpop.permute.xlu0 %2338
        %v2341 = vsel %vm939, %v2330, 0
        %v2344 = vsel %vm1446, %v2339, 0
        %2346 = vmatprep.subr.bf16.mxu0 0
        %2347 = vmatpush1.bf16.msra.mxu0 %v2344
        %2348 = vmatprep.subr.bf16.mxu0 0
        %2349 = vmatpush1.bf16.msra.mxu0 0
        %2350 = vmatprep.subr.bf16.mxu0 0
        %2351 = vmatpush1.bf16.msra.mxu0 0
        %2352 = vmatprep.subr.bf16.mxu0 0
        %2353 = vmatpush1.bf16.msra.mxu0 0
        %2354 = vmatprep.subr.bf16.mxu0 0
        %2355 = vmatpush1.bf16.msra.mxu0 0
        %2356 = vmatprep.subr.bf16.mxu0 0
        %2357 = vmatpush1.bf16.msra.mxu0 0
        %2358 = vmatprep.subr.bf16.mxu0 0
        %2359 = vmatpush1.bf16.msra.mxu0 0
        %2360 = vmatprep.subr.bf16.mxu0 0
        %2361 = vmatpush1.bf16.msra.mxu0 0
        %2362 = vmatprep.subr.bf16.mxu0 0
        %2363 = vmatpush1.bf16.msra.mxu0 0
        %2364 = vmatprep.subr.bf16.mxu0 0
        %2365 = vmatpush1.bf16.msra.mxu0 0
        %2366 = vmatprep.subr.bf16.mxu0 0
        %2367 = vmatpush1.bf16.msra.mxu0 0
        %2368 = vmatprep.subr.bf16.mxu0 0
        %2369 = vmatpush1.bf16.msra.mxu0 0
        %2370 = vmatprep.subr.bf16.mxu0 0
        %2371 = vmatpush1.bf16.msra.mxu0 0
        %2372 = vmatprep.subr.bf16.mxu0 0
        %2373 = vmatpush1.bf16.msra.mxu0 0
        %2374 = vmatprep.subr.bf16.mxu0 0
        %2375 = vmatpush1.bf16.msra.mxu0 0
        %2376 = vmatprep.subr.bf16.mxu0 0
        %2377 = vmatpush1.bf16.msra.mxu0 0
        %2378 = vmatprep.mubr.bf16.mxu0 0
        %2379 = vmatmul.mubr.bf16.gmra.mrb[0].mxu0 %v2341
        %v2380 = vpop.f32.mrb[0].mxu0
        %v2381 = vadd.f32 0.0, %v2380
        %v2382 = vpop.f32.mrb[0].mxu0
        %v2383 = vpop.f32.mrb[0].mxu0
        %v2384 = vpop.f32.mrb[0].mxu0
        %2385 = vdwg.mxu0
        %2386 = vrot.lane.b32.xlu0 %v929, 56
        %v2387 = vpop.permute.xlu0 %2386
        %v2389 = vsel %vm939, %v2331, 0
        %v2392 = vsel %vm1446, %v2387, 0
        %2394 = vmatprep.subr.bf16.mxu0 0
        %2395 = vmatpush1.bf16.msra.mxu0 %v2392
        %2396 = vmatprep.subr.bf16.mxu0 0
        %2397 = vmatpush1.bf16.msra.mxu0 0
        %2398 = vmatprep.subr.bf16.mxu0 0
        %2399 = vmatpush1.bf16.msra.mxu0 0
        %2400 = vmatprep.subr.bf16.mxu0 0
        %2401 = vmatpush1.bf16.msra.mxu0 0
        %2402 = vmatprep.subr.bf16.mxu0 0
        %2403 = vmatpush1.bf16.msra.mxu0 0
        %2404 = vmatprep.subr.bf16.mxu0 0
        %2405 = vmatpush1.bf16.msra.mxu0 0
        %2406 = vmatprep.subr.bf16.mxu0 0
        %2407 = vmatpush1.bf16.msra.mxu0 0
        %2408 = vmatprep.subr.bf16.mxu0 0
        %2409 = vmatpush1.bf16.msra.mxu0 0
        %2410 = vmatprep.subr.bf16.mxu0 0
        %2411 = vmatpush1.bf16.msra.mxu0 0
        %2412 = vmatprep.subr.bf16.mxu0 0
        %2413 = vmatpush1.bf16.msra.mxu0 0
        %2414 = vmatprep.subr.bf16.mxu0 0
        %2415 = vmatpush1.bf16.msra.mxu0 0
        %2416 = vmatprep.subr.bf16.mxu0 0
        %2417 = vmatpush1.bf16.msra.mxu0 0
        %2418 = vmatprep.subr.bf16.mxu0 0
        %2419 = vmatpush1.bf16.msra.mxu0 0
        %2420 = vmatprep.subr.bf16.mxu0 0
        %2421 = vmatpush1.bf16.msra.mxu0 0
        %2422 = vmatprep.subr.bf16.mxu0 0
        %2423 = vmatpush1.bf16.msra.mxu0 0
        %2424 = vmatprep.subr.bf16.mxu0 0
        %2425 = vmatpush1.bf16.msra.mxu0 0
        %2426 = vmatprep.mubr.bf16.mxu0 0
        %2427 = vmatmul.mubr.bf16.gmra.mrb[0].mxu0 %v2389
        %v2428 = vpop.f32.mrb[0].mxu0
        %v2429 = vadd.f32 0.0, %v2428
        %v2430 = vpop.f32.mrb[0].mxu0
        %v2431 = vpop.f32.mrb[0].mxu0
        %v2432 = vpop.f32.mrb[0].mxu0
        %2433 = vdwg.mxu0
        %2434 = vrot.lane.b32.xlu0 %v930, 56
        %v2435 = vpop.permute.xlu0 %2434
        %v2437 = vsel %vm939, %v2332, 0
        %v2440 = vsel %vm1446, %v2435, 0
        %2442 = vmatprep.subr.bf16.mxu0 0
        %2443 = vmatpush1.bf16.msra.mxu0 %v2440
        %2444 = vmatprep.subr.bf16.mxu0 0
        %2445 = vmatpush1.bf16.msra.mxu0 0
        %2446 = vmatprep.subr.bf16.mxu0 0
        %2447 = vmatpush1.bf16.msra.mxu0 0
        %2448 = vmatprep.subr.bf16.mxu0 0
        %2449 = vmatpush1.bf16.msra.mxu0 0
        %2450 = vmatprep.subr.bf16.mxu0 0
        %2451 = vmatpush1.bf16.msra.mxu0 0
        %2452 = vmatprep.subr.bf16.mxu0 0
        %2453 = vmatpush1.bf16.msra.mxu0 0
        %2454 = vmatprep.subr.bf16.mxu0 0
        %2455 = vmatpush1.bf16.msra.mxu0 0
        %2456 = vmatprep.subr.bf16.mxu0 0
        %2457 = vmatpush1.bf16.msra.mxu0 0
        %2458 = vmatprep.subr.bf16.mxu0 0
        %2459 = vmatpush1.bf16.msra.mxu0 0
        %2460 = vmatprep.subr.bf16.mxu0 0
        %2461 = vmatpush1.bf16.msra.mxu0 0
        %2462 = vmatprep.subr.bf16.mxu0 0
        %2463 = vmatpush1.bf16.msra.mxu0 0
        %2464 = vmatprep.subr.bf16.mxu0 0
        %2465 = vmatpush1.bf16.msra.mxu0 0
        %2466 = vmatprep.subr.bf16.mxu0 0
        %2467 = vmatpush1.bf16.msra.mxu0 0
        %2468 = vmatprep.subr.bf16.mxu0 0
        %2469 = vmatpush1.bf16.msra.mxu0 0
        %2470 = vmatprep.subr.bf16.mxu0 0
        %2471 = vmatpush1.bf16.msra.mxu0 0
        %2472 = vmatprep.subr.bf16.mxu0 0
        %2473 = vmatpush1.bf16.msra.mxu0 0
        %2474 = vmatprep.mubr.bf16.mxu0 0
        %2475 = vmatmul.mubr.bf16.gmra.mrb[0].mxu0 %v2437
        %v2476 = vpop.f32.mrb[0].mxu0
        %v2477 = vadd.f32 0.0, %v2476
        %v2478 = vpop.f32.mrb[0].mxu0
        %v2479 = vpop.f32.mrb[0].mxu0
        %v2480 = vpop.f32.mrb[0].mxu0
        %2481 = vdwg.mxu0
        %2482 = vrot.lane.b32.xlu0 %v931, 56
        %v2483 = vpop.permute.xlu0 %2482
        %v2485 = vsel %vm939, %v2333, 0
        %v2488 = vsel %vm1446, %v2483, 0
        %2490 = vmatprep.subr.bf16.mxu0 0
        %2491 = vmatpush1.bf16.msra.mxu0 %v2488
        %2492 = vmatprep.subr.bf16.mxu0 0
        %2493 = vmatpush1.bf16.msra.mxu0 0
        %2494 = vmatprep.subr.bf16.mxu0 0
        %2495 = vmatpush1.bf16.msra.mxu0 0
        %2496 = vmatprep.subr.bf16.mxu0 0
        %2497 = vmatpush1.bf16.msra.mxu0 0
        %2498 = vmatprep.subr.bf16.mxu0 0
        %2499 = vmatpush1.bf16.msra.mxu0 0
        %2500 = vmatprep.subr.bf16.mxu0 0
        %2501 = vmatpush1.bf16.msra.mxu0 0
        %2502 = vmatprep.subr.bf16.mxu0 0
        %2503 = vmatpush1.bf16.msra.mxu0 0
        %2504 = vmatprep.subr.bf16.mxu0 0
        %2505 = vmatpush1.bf16.msra.mxu0 0
        %2506 = vmatprep.subr.bf16.mxu0 0
        %2507 = vmatpush1.bf16.msra.mxu0 0
        %2508 = vmatprep.subr.bf16.mxu0 0
        %2509 = vmatpush1.bf16.msra.mxu0 0
        %2510 = vmatprep.subr.bf16.mxu0 0
        %2511 = vmatpush1.bf16.msra.mxu0 0
        %2512 = vmatprep.subr.bf16.mxu0 0
        %2513 = vmatpush1.bf16.msra.mxu0 0
        %2514 = vmatprep.subr.bf16.mxu0 0
        %2515 = vmatpush1.bf16.msra.mxu0 0
        %2516 = vmatprep.subr.bf16.mxu0 0
        %2517 = vmatpush1.bf16.msra.mxu0 0
        %2518 = vmatprep.subr.bf16.mxu0 0
        %2519 = vmatpush1.bf16.msra.mxu0 0
        %2520 = vmatprep.subr.bf16.mxu0 0
        %2521 = vmatpush1.bf16.msra.mxu0 0
        %2522 = vmatprep.mubr.bf16.mxu0 0
        %2523 = vmatmul.mubr.bf16.gmra.mrb[0].mxu0 %v2485
        %v2524 = vpop.f32.mrb[0].mxu0
        %v2525 = vadd.f32 0.0, %v2524
        %v2526 = vpop.f32.mrb[0].mxu0
        %v2527 = vpop.f32.mrb[0].mxu0
        %v2528 = vpop.f32.mrb[0].mxu0
        %2529 = vdwg.mxu0
        %2530 = vrot.lane.b32.xlu0 %v932, 56
        %v2531 = vpop.permute.xlu0 %2530
        %v2533 = vsel %vm939, %v2334, 0
        %v2536 = vsel %vm1446, %v2531, 0
        %2538 = vmatprep.subr.bf16.mxu0 0
        %2539 = vmatpush1.bf16.msra.mxu0 %v2536
        %2540 = vmatprep.subr.bf16.mxu0 0
        %2541 = vmatpush1.bf16.msra.mxu0 0
        %2542 = vmatprep.subr.bf16.mxu0 0
        %2543 = vmatpush1.bf16.msra.mxu0 0
        %2544 = vmatprep.subr.bf16.mxu0 0
        %2545 = vmatpush1.bf16.msra.mxu0 0
        %2546 = vmatprep.subr.bf16.mxu0 0
        %2547 = vmatpush1.bf16.msra.mxu0 0
        %2548 = vmatprep.subr.bf16.mxu0 0
        %2549 = vmatpush1.bf16.msra.mxu0 0
        %2550 = vmatprep.subr.bf16.mxu0 0
        %2551 = vmatpush1.bf16.msra.mxu0 0
        %2552 = vmatprep.subr.bf16.mxu0 0
        %2553 = vmatpush1.bf16.msra.mxu0 0
        %2554 = vmatprep.subr.bf16.mxu0 0
        %2555 = vmatpush1.bf16.msra.mxu0 0
        %2556 = vmatprep.subr.bf16.mxu0 0
        %2557 = vmatpush1.bf16.msra.mxu0 0
        %2558 = vmatprep.subr.bf16.mxu0 0
        %2559 = vmatpush1.bf16.msra.mxu0 0
        %2560 = vmatprep.subr.bf16.mxu0 0
        %2561 = vmatpush1.bf16.msra.mxu0 0
        %2562 = vmatprep.subr.bf16.mxu0 0
        %2563 = vmatpush1.bf16.msra.mxu0 0
        %2564 = vmatprep.subr.bf16.mxu0 0
        %2565 = vmatpush1.bf16.msra.mxu0 0
        %2566 = vmatprep.subr.bf16.mxu0 0
        %2567 = vmatpush1.bf16.msra.mxu0 0
        %2568 = vmatprep.subr.bf16.mxu0 0
        %2569 = vmatpush1.bf16.msra.mxu0 0
        %2570 = vmatprep.mubr.bf16.mxu0 0
        %2571 = vmatmul.mubr.bf16.gmra.mrb[0].mxu0 %v2533
        %v2572 = vpop.f32.mrb[0].mxu0
        %v2573 = vadd.f32 0.0, %v2572
        %v2574 = vpop.f32.mrb[0].mxu0
        %v2575 = vpop.f32.mrb[0].mxu0
        %v2576 = vpop.f32.mrb[0].mxu0
        %2577 = vdwg.mxu0
        %2578 = vrot.lane.b32.xlu0 %v933, 56
        %v2579 = vpop.permute.xlu0 %2578
        %v2581 = vsel %vm939, %v2335, 0
        %v2584 = vsel %vm1446, %v2579, 0
        %2586 = vmatprep.subr.bf16.mxu0 0
        %2587 = vmatpush1.bf16.msra.mxu0 %v2584
        %2588 = vmatprep.subr.bf16.mxu0 0
        %2589 = vmatpush1.bf16.msra.mxu0 0
        %2590 = vmatprep.subr.bf16.mxu0 0
        %2591 = vmatpush1.bf16.msra.mxu0 0
        %2592 = vmatprep.subr.bf16.mxu0 0
        %2593 = vmatpush1.bf16.msra.mxu0 0
        %2594 = vmatprep.subr.bf16.mxu0 0
        %2595 = vmatpush1.bf16.msra.mxu0 0
        %2596 = vmatprep.subr.bf16.mxu0 0
        %2597 = vmatpush1.bf16.msra.mxu0 0
        %2598 = vmatprep.subr.bf16.mxu0 0
        %2599 = vmatpush1.bf16.msra.mxu0 0
        %2600 = vmatprep.subr.bf16.mxu0 0
        %2601 = vmatpush1.bf16.msra.mxu0 0
        %2602 = vmatprep.subr.bf16.mxu0 0
        %2603 = vmatpush1.bf16.msra.mxu0 0
        %2604 = vmatprep.subr.bf16.mxu0 0
        %2605 = vmatpush1.bf16.msra.mxu0 0
        %2606 = vmatprep.subr.bf16.mxu0 0
        %2607 = vmatpush1.bf16.msra.mxu0 0
        %2608 = vmatprep.subr.bf16.mxu0 0
        %2609 = vmatpush1.bf16.msra.mxu0 0
        %2610 = vmatprep.subr.bf16.mxu0 0
        %2611 = vmatpush1.bf16.msra.mxu0 0
        %2612 = vmatprep.subr.bf16.mxu0 0
        %2613 = vmatpush1.bf16.msra.mxu0 0
        %2614 = vmatprep.subr.bf16.mxu0 0
        %2615 = vmatpush1.bf16.msra.mxu0 0
        %2616 = vmatprep.subr.bf16.mxu0 0
        %2617 = vmatpush1.bf16.msra.mxu0 0
        %2618 = vmatprep.mubr.bf16.mxu0 0
        %2619 = vmatmul.mubr.bf16.gmra.mrb[0].mxu0 %v2581
        %v2620 = vpop.f32.mrb[0].mxu0
        %v2621 = vadd.f32 0.0, %v2620
        %v2622 = vpop.f32.mrb[0].mxu0
        %v2623 = vpop.f32.mrb[0].mxu0
        %v2624 = vpop.f32.mrb[0].mxu0
        %2625 = vdwg.mxu0
        %2626 = vrot.lane.b32.xlu0 %v934, 56
        %v2627 = vpop.permute.xlu0 %2626
        %v2629 = vsel %vm939, %v2336, 0
        %v2632 = vsel %vm1446, %v2627, 0
        %2634 = vmatprep.subr.bf16.mxu0 0
        %2635 = vmatpush1.bf16.msra.mxu0 %v2632
        %2636 = vmatprep.subr.bf16.mxu0 0
        %2637 = vmatpush1.bf16.msra.mxu0 0
        %2638 = vmatprep.subr.bf16.mxu0 0
        %2639 = vmatpush1.bf16.msra.mxu0 0
        %2640 = vmatprep.subr.bf16.mxu0 0
        %2641 = vmatpush1.bf16.msra.mxu0 0
        %2642 = vmatprep.subr.bf16.mxu0 0
        %2643 = vmatpush1.bf16.msra.mxu0 0
        %2644 = vmatprep.subr.bf16.mxu0 0
        %2645 = vmatpush1.bf16.msra.mxu0 0
        %2646 = vmatprep.subr.bf16.mxu0 0
        %2647 = vmatpush1.bf16.msra.mxu0 0
        %2648 = vmatprep.subr.bf16.mxu0 0
        %2649 = vmatpush1.bf16.msra.mxu0 0
        %2650 = vmatprep.subr.bf16.mxu0 0
        %2651 = vmatpush1.bf16.msra.mxu0 0
        %2652 = vmatprep.subr.bf16.mxu0 0
        %2653 = vmatpush1.bf16.msra.mxu0 0
        %2654 = vmatprep.subr.bf16.mxu0 0
        %2655 = vmatpush1.bf16.msra.mxu0 0
        %2656 = vmatprep.subr.bf16.mxu0 0
        %2657 = vmatpush1.bf16.msra.mxu0 0
        %2658 = vmatprep.subr.bf16.mxu0 0
        %2659 = vmatpush1.bf16.msra.mxu0 0
        %2660 = vmatprep.subr.bf16.mxu0 0
        %2661 = vmatpush1.bf16.msra.mxu0 0
        %2662 = vmatprep.subr.bf16.mxu0 0
        %2663 = vmatpush1.bf16.msra.mxu0 0
        %2664 = vmatprep.subr.bf16.mxu0 0
        %2665 = vmatpush1.bf16.msra.mxu0 0
        %2666 = vmatprep.mubr.bf16.mxu0 0
        %2667 = vmatmul.mubr.bf16.gmra.mrb[0].mxu0 %v2629
        %v2668 = vpop.f32.mrb[0].mxu0
        %v2669 = vadd.f32 0.0, %v2668
        %v2670 = vpop.f32.mrb[0].mxu0
        %v2671 = vpop.f32.mrb[0].mxu0
        %v2672 = vpop.f32.mrb[0].mxu0
        %2673 = vdwg.mxu0
        %2674 = vrot.lane.b32.xlu0 %v935, 56
        %v2675 = vpop.permute.xlu0 %2674
        %v2677 = vsel %vm939, %v2337, 0
        %v2680 = vsel %vm1446, %v2675, 0
        %2682 = vmatprep.subr.bf16.mxu0 0
        %2683 = vmatpush1.bf16.msra.mxu0 %v2680
        %2684 = vmatprep.subr.bf16.mxu0 0
        %2685 = vmatpush1.bf16.msra.mxu0 0
        %2686 = vmatprep.subr.bf16.mxu0 0
        %2687 = vmatpush1.bf16.msra.mxu0 0
        %2688 = vmatprep.subr.bf16.mxu0 0
        %2689 = vmatpush1.bf16.msra.mxu0 0
        %2690 = vmatprep.subr.bf16.mxu0 0
        %2691 = vmatpush1.bf16.msra.mxu0 0
        %2692 = vmatprep.subr.bf16.mxu0 0
        %2693 = vmatpush1.bf16.msra.mxu0 0
        %2694 = vmatprep.subr.bf16.mxu0 0
        %2695 = vmatpush1.bf16.msra.mxu0 0
        %2696 = vmatprep.subr.bf16.mxu0 0
        %2697 = vmatpush1.bf16.msra.mxu0 0
        %2698 = vmatprep.subr.bf16.mxu0 0
        %2699 = vmatpush1.bf16.msra.mxu0 0
        %2700 = vmatprep.subr.bf16.mxu0 0
        %2701 = vmatpush1.bf16.msra.mxu0 0
        %2702 = vmatprep.subr.bf16.mxu0 0
        %2703 = vmatpush1.bf16.msra.mxu0 0
        %2704 = vmatprep.subr.bf16.mxu0 0
        %2705 = vmatpush1.bf16.msra.mxu0 0
        %2706 = vmatprep.subr.bf16.mxu0 0
        %2707 = vmatpush1.bf16.msra.mxu0 0
        %2708 = vmatprep.subr.bf16.mxu0 0
        %2709 = vmatpush1.bf16.msra.mxu0 0
        %2710 = vmatprep.subr.bf16.mxu0 0
        %2711 = vmatpush1.bf16.msra.mxu0 0
        %2712 = vmatprep.subr.bf16.mxu0 0
        %2713 = vmatpush1.bf16.msra.mxu0 0
        %2714 = vmatprep.mubr.bf16.mxu0 0
        %2715 = vmatmul.mubr.bf16.gmra.mrb[0].mxu0 %v2677
        %v2716 = vpop.f32.mrb[0].mxu0
        %v2717 = vadd.f32 0.0, %v2716
        %v2718 = vpop.f32.mrb[0].mxu0
        %v2719 = vpop.f32.mrb[0].mxu0
        %v2720 = vpop.f32.mrb[0].mxu0
        %2721 = vdwg.mxu0
        %2722 = vrot.lane.b32.xlu0 %v928, 112
        %v2723 = vpop.permute.xlu0 %2722
        %2724 = vrot.lane.b32.xlu0 %v928, 80
        %v2725 = vpop.permute.xlu0 %2724
        %v2727 = vsel %vm939, %v2723, 0
        %v2730 = vsel %vm939, %v2725, 0
        %2732 = vmatprep.subr.bf16.mxu0 0
        %2733 = vmatpush1.bf16.xpose.msra.mxu0 %v2730
        %2734 = vmatprep.subr.bf16.mxu0 0
        %2735 = vmatpush1.bf16.xpose.msra.mxu0 0
        %2736 = vmatprep.subr.bf16.mxu0 0
        %2737 = vmatpush1.bf16.xpose.msra.mxu0 0
        %2738 = vmatprep.subr.bf16.mxu0 0
        %2739 = vmatpush1.bf16.xpose.msra.mxu0 0
        %2740 = vmatprep.subr.bf16.mxu0 0
        %2741 = vmatpush1.bf16.xpose.msra.mxu0 0
        %2742 = vmatprep.subr.bf16.mxu0 0
        %2743 = vmatpush1.bf16.xpose.msra.mxu0 0
        %2744 = vmatprep.subr.bf16.mxu0 0
        %2745 = vmatpush1.bf16.xpose.msra.mxu0 0
        %2746 = vmatprep.subr.bf16.mxu0 0
        %2747 = vmatpush1.bf16.xpose.msra.mxu0 0
        %2748 = vmatprep.subr.bf16.mxu0 0
        %2749 = vmatpush1.bf16.xpose.msra.mxu0 0
        %2750 = vmatprep.subr.bf16.mxu0 0
        %2751 = vmatpush1.bf16.xpose.msra.mxu0 0
        %2752 = vmatprep.subr.bf16.mxu0 0
        %2753 = vmatpush1.bf16.xpose.msra.mxu0 0
        %2754 = vmatprep.subr.bf16.mxu0 0
        %2755 = vmatpush1.bf16.xpose.msra.mxu0 0
        %2756 = vmatprep.subr.bf16.mxu0 0
        %2757 = vmatpush1.bf16.xpose.msra.mxu0 0
        %2758 = vmatprep.subr.bf16.mxu0 0
        %2759 = vmatpush1.bf16.xpose.msra.mxu0 0
        %2760 = vmatprep.subr.bf16.mxu0 0
        %2761 = vmatpush1.bf16.xpose.msra.mxu0 0
        %2762 = vmatprep.subr.bf16.mxu0 0
        %2763 = vmatpush1.bf16.xpose.msra.mxu0 0
        %2764 = vmatprep.mubr.bf16.mxu0 0
        %2765 = vmatmul.mubr.bf16.gmra.mrb[0].mxu0 %v2727
        %v2766 = vpop.f32.mrb[0].mxu0
        %v2767 = vadd.f32 0.0, %v2766
        %v2768 = vpop.f32.mrb[0].mxu0
        %v2769 = vpop.f32.mrb[0].mxu0
        %v2770 = vpop.f32.mrb[0].mxu0
        %2771 = vdwg.mxu0
        %2772 = vrot.lane.b32.xlu0 %v929, 112
        %v2773 = vpop.permute.xlu0 %2772
        %2774 = vrot.lane.b32.xlu0 %v929, 80
        %v2775 = vpop.permute.xlu0 %2774
        %v2777 = vsel %vm939, %v2773, 0
        %v2780 = vsel %vm939, %v2775, 0
        %2782 = vmatprep.subr.bf16.mxu0 0
        %2783 = vmatpush1.bf16.xpose.msra.mxu0 %v2780
        %2784 = vmatprep.subr.bf16.mxu0 0
        %2785 = vmatpush1.bf16.xpose.msra.mxu0 0
        %2786 = vmatprep.subr.bf16.mxu0 0
        %2787 = vmatpush1.bf16.xpose.msra.mxu0 0
        %2788 = vmatprep.subr.bf16.mxu0 0
        %2789 = vmatpush1.bf16.xpose.msra.mxu0 0
        %2790 = vmatprep.subr.bf16.mxu0 0
        %2791 = vmatpush1.bf16.xpose.msra.mxu0 0
        %2792 = vmatprep.subr.bf16.mxu0 0
        %2793 = vmatpush1.bf16.xpose.msra.mxu0 0
        %2794 = vmatprep.subr.bf16.mxu0 0
        %2795 = vmatpush1.bf16.xpose.msra.mxu0 0
        %2796 = vmatprep.subr.bf16.mxu0 0
        %2797 = vmatpush1.bf16.xpose.msra.mxu0 0
        %2798 = vmatprep.subr.bf16.mxu0 0
        %2799 = vmatpush1.bf16.xpose.msra.mxu0 0
        %2800 = vmatprep.subr.bf16.mxu0 0
        %2801 = vmatpush1.bf16.xpose.msra.mxu0 0
        %2802 = vmatprep.subr.bf16.mxu0 0
        %2803 = vmatpush1.bf16.xpose.msra.mxu0 0
        %2804 = vmatprep.subr.bf16.mxu0 0
        %2805 = vmatpush1.bf16.xpose.msra.mxu0 0
        %2806 = vmatprep.subr.bf16.mxu0 0
        %2807 = vmatpush1.bf16.xpose.msra.mxu0 0
        %2808 = vmatprep.subr.bf16.mxu0 0
        %2809 = vmatpush1.bf16.xpose.msra.mxu0 0
        %2810 = vmatprep.subr.bf16.mxu0 0
        %2811 = vmatpush1.bf16.xpose.msra.mxu0 0
        %2812 = vmatprep.subr.bf16.mxu0 0
        %2813 = vmatpush1.bf16.xpose.msra.mxu0 0
        %2814 = vmatprep.mubr.bf16.mxu0 0
        %2815 = vmatmul.mubr.bf16.gmra.mrb[0].mxu0 %v2777
        %v2816 = vpop.f32.mrb[0].mxu0
        %v2817 = vadd.f32 0.0, %v2816
        %v2818 = vpop.f32.mrb[0].mxu0
        %v2819 = vpop.f32.mrb[0].mxu0
        %v2820 = vpop.f32.mrb[0].mxu0
        %2821 = vdwg.mxu0
        %2822 = vrot.lane.b32.xlu0 %v930, 112
        %v2823 = vpop.permute.xlu0 %2822
        %2824 = vrot.lane.b32.xlu0 %v930, 80
        %v2825 = vpop.permute.xlu0 %2824
        %v2827 = vsel %vm939, %v2823, 0
        %v2830 = vsel %vm939, %v2825, 0
        %2832 = vmatprep.subr.bf16.mxu0 0
        %2833 = vmatpush1.bf16.xpose.msra.mxu0 %v2830
        %2834 = vmatprep.subr.bf16.mxu0 0
        %2835 = vmatpush1.bf16.xpose.msra.mxu0 0
        %2836 = vmatprep.subr.bf16.mxu0 0
        %2837 = vmatpush1.bf16.xpose.msra.mxu0 0
        %2838 = vmatprep.subr.bf16.mxu0 0
        %2839 = vmatpush1.bf16.xpose.msra.mxu0 0
        %2840 = vmatprep.subr.bf16.mxu0 0
        %2841 = vmatpush1.bf16.xpose.msra.mxu0 0
        %2842 = vmatprep.subr.bf16.mxu0 0
        %2843 = vmatpush1.bf16.xpose.msra.mxu0 0
        %2844 = vmatprep.subr.bf16.mxu0 0
        %2845 = vmatpush1.bf16.xpose.msra.mxu0 0
        %2846 = vmatprep.subr.bf16.mxu0 0
        %2847 = vmatpush1.bf16.xpose.msra.mxu0 0
        %2848 = vmatprep.subr.bf16.mxu0 0
        %2849 = vmatpush1.bf16.xpose.msra.mxu0 0
        %2850 = vmatprep.subr.bf16.mxu0 0
        %2851 = vmatpush1.bf16.xpose.msra.mxu0 0
        %2852 = vmatprep.subr.bf16.mxu0 0
        %2853 = vmatpush1.bf16.xpose.msra.mxu0 0
        %2854 = vmatprep.subr.bf16.mxu0 0
        %2855 = vmatpush1.bf16.xpose.msra.mxu0 0
        %2856 = vmatprep.subr.bf16.mxu0 0
        %2857 = vmatpush1.bf16.xpose.msra.mxu0 0
        %2858 = vmatprep.subr.bf16.mxu0 0
        %2859 = vmatpush1.bf16.xpose.msra.mxu0 0
        %2860 = vmatprep.subr.bf16.mxu0 0
        %2861 = vmatpush1.bf16.xpose.msra.mxu0 0
        %2862 = vmatprep.subr.bf16.mxu0 0
        %2863 = vmatpush1.bf16.xpose.msra.mxu0 0
        %2864 = vmatprep.mubr.bf16.mxu0 0
        %2865 = vmatmul.mubr.bf16.gmra.mrb[0].mxu0 %v2827
        %v2866 = vpop.f32.mrb[0].mxu0
        %v2867 = vadd.f32 0.0, %v2866
        %v2868 = vpop.f32.mrb[0].mxu0
        %v2869 = vpop.f32.mrb[0].mxu0
        %v2870 = vpop.f32.mrb[0].mxu0
        %2871 = vdwg.mxu0
        %2872 = vrot.lane.b32.xlu0 %v931, 112
        %v2873 = vpop.permute.xlu0 %2872
        %2874 = vrot.lane.b32.xlu0 %v931, 80
        %v2875 = vpop.permute.xlu0 %2874
        %v2877 = vsel %vm939, %v2873, 0
        %v2880 = vsel %vm939, %v2875, 0
        %2882 = vmatprep.subr.bf16.mxu0 0
        %2883 = vmatpush1.bf16.xpose.msra.mxu0 %v2880
        %2884 = vmatprep.subr.bf16.mxu0 0
        %2885 = vmatpush1.bf16.xpose.msra.mxu0 0
        %2886 = vmatprep.subr.bf16.mxu0 0
        %2887 = vmatpush1.bf16.xpose.msra.mxu0 0
        %2888 = vmatprep.subr.bf16.mxu0 0
        %2889 = vmatpush1.bf16.xpose.msra.mxu0 0
        %2890 = vmatprep.subr.bf16.mxu0 0
        %2891 = vmatpush1.bf16.xpose.msra.mxu0 0
        %2892 = vmatprep.subr.bf16.mxu0 0
        %2893 = vmatpush1.bf16.xpose.msra.mxu0 0
        %2894 = vmatprep.subr.bf16.mxu0 0
        %2895 = vmatpush1.bf16.xpose.msra.mxu0 0
        %2896 = vmatprep.subr.bf16.mxu0 0
        %2897 = vmatpush1.bf16.xpose.msra.mxu0 0
        %2898 = vmatprep.subr.bf16.mxu0 0
        %2899 = vmatpush1.bf16.xpose.msra.mxu0 0
        %2900 = vmatprep.subr.bf16.mxu0 0
        %2901 = vmatpush1.bf16.xpose.msra.mxu0 0
        %2902 = vmatprep.subr.bf16.mxu0 0
        %2903 = vmatpush1.bf16.xpose.msra.mxu0 0
        %2904 = vmatprep.subr.bf16.mxu0 0
        %2905 = vmatpush1.bf16.xpose.msra.mxu0 0
        %2906 = vmatprep.subr.bf16.mxu0 0
        %2907 = vmatpush1.bf16.xpose.msra.mxu0 0
        %2908 = vmatprep.subr.bf16.mxu0 0
        %2909 = vmatpush1.bf16.xpose.msra.mxu0 0
        %2910 = vmatprep.subr.bf16.mxu0 0
        %2911 = vmatpush1.bf16.xpose.msra.mxu0 0
        %2912 = vmatprep.subr.bf16.mxu0 0
        %2913 = vmatpush1.bf16.xpose.msra.mxu0 0
        %2914 = vmatprep.mubr.bf16.mxu0 0
        %2915 = vmatmul.mubr.bf16.gmra.mrb[0].mxu0 %v2877
        %v2916 = vpop.f32.mrb[0].mxu0
        %v2917 = vadd.f32 0.0, %v2916
        %v2918 = vpop.f32.mrb[0].mxu0
        %v2919 = vpop.f32.mrb[0].mxu0
        %v2920 = vpop.f32.mrb[0].mxu0
        %2921 = vdwg.mxu0
        %2922 = vrot.lane.b32.xlu0 %v932, 112
        %v2923 = vpop.permute.xlu0 %2922
        %2924 = vrot.lane.b32.xlu0 %v932, 80
        %v2925 = vpop.permute.xlu0 %2924
        %v2927 = vsel %vm939, %v2923, 0
        %v2930 = vsel %vm939, %v2925, 0
        %2932 = vmatprep.subr.bf16.mxu0 0
        %2933 = vmatpush1.bf16.xpose.msra.mxu0 %v2930
        %2934 = vmatprep.subr.bf16.mxu0 0
        %2935 = vmatpush1.bf16.xpose.msra.mxu0 0
        %2936 = vmatprep.subr.bf16.mxu0 0
        %2937 = vmatpush1.bf16.xpose.msra.mxu0 0
        %2938 = vmatprep.subr.bf16.mxu0 0
        %2939 = vmatpush1.bf16.xpose.msra.mxu0 0
        %2940 = vmatprep.subr.bf16.mxu0 0
        %2941 = vmatpush1.bf16.xpose.msra.mxu0 0
        %2942 = vmatprep.subr.bf16.mxu0 0
        %2943 = vmatpush1.bf16.xpose.msra.mxu0 0
        %2944 = vmatprep.subr.bf16.mxu0 0
        %2945 = vmatpush1.bf16.xpose.msra.mxu0 0
        %2946 = vmatprep.subr.bf16.mxu0 0
        %2947 = vmatpush1.bf16.xpose.msra.mxu0 0
        %2948 = vmatprep.subr.bf16.mxu0 0
        %2949 = vmatpush1.bf16.xpose.msra.mxu0 0
        %2950 = vmatprep.subr.bf16.mxu0 0
        %2951 = vmatpush1.bf16.xpose.msra.mxu0 0
        %2952 = vmatprep.subr.bf16.mxu0 0
        %2953 = vmatpush1.bf16.xpose.msra.mxu0 0
        %2954 = vmatprep.subr.bf16.mxu0 0
        %2955 = vmatpush1.bf16.xpose.msra.mxu0 0
        %2956 = vmatprep.subr.bf16.mxu0 0
        %2957 = vmatpush1.bf16.xpose.msra.mxu0 0
        %2958 = vmatprep.subr.bf16.mxu0 0
        %2959 = vmatpush1.bf16.xpose.msra.mxu0 0
        %2960 = vmatprep.subr.bf16.mxu0 0
        %2961 = vmatpush1.bf16.xpose.msra.mxu0 0
        %2962 = vmatprep.subr.bf16.mxu0 0
        %2963 = vmatpush1.bf16.xpose.msra.mxu0 0
        %2964 = vmatprep.mubr.bf16.mxu0 0
        %2965 = vmatmul.mubr.bf16.gmra.mrb[0].mxu0 %v2927
        %v2966 = vpop.f32.mrb[0].mxu0
        %v2967 = vadd.f32 0.0, %v2966
        %v2968 = vpop.f32.mrb[0].mxu0
        %v2969 = vpop.f32.mrb[0].mxu0
        %v2970 = vpop.f32.mrb[0].mxu0
        %2971 = vdwg.mxu0
        %2972 = vrot.lane.b32.xlu0 %v933, 112
        %v2973 = vpop.permute.xlu0 %2972
        %2974 = vrot.lane.b32.xlu0 %v933, 80
        %v2975 = vpop.permute.xlu0 %2974
        %v2977 = vsel %vm939, %v2973, 0
        %v2980 = vsel %vm939, %v2975, 0
        %2982 = vmatprep.subr.bf16.mxu0 0
        %2983 = vmatpush1.bf16.xpose.msra.mxu0 %v2980
        %2984 = vmatprep.subr.bf16.mxu0 0
        %2985 = vmatpush1.bf16.xpose.msra.mxu0 0
        %2986 = vmatprep.subr.bf16.mxu0 0
        %2987 = vmatpush1.bf16.xpose.msra.mxu0 0
        %2988 = vmatprep.subr.bf16.mxu0 0
        %2989 = vmatpush1.bf16.xpose.msra.mxu0 0
        %2990 = vmatprep.subr.bf16.mxu0 0
        %2991 = vmatpush1.bf16.xpose.msra.mxu0 0
        %2992 = vmatprep.subr.bf16.mxu0 0
        %2993 = vmatpush1.bf16.xpose.msra.mxu0 0
        %2994 = vmatprep.subr.bf16.mxu0 0
        %2995 = vmatpush1.bf16.xpose.msra.mxu0 0
        %2996 = vmatprep.subr.bf16.mxu0 0
        %2997 = vmatpush1.bf16.xpose.msra.mxu0 0
        %2998 = vmatprep.subr.bf16.mxu0 0
        %2999 = vmatpush1.bf16.xpose.msra.mxu0 0
        %3000 = vmatprep.subr.bf16.mxu0 0
        %3001 = vmatpush1.bf16.xpose.msra.mxu0 0
        %3002 = vmatprep.subr.bf16.mxu0 0
        %3003 = vmatpush1.bf16.xpose.msra.mxu0 0
        %3004 = vmatprep.subr.bf16.mxu0 0
        %3005 = vmatpush1.bf16.xpose.msra.mxu0 0
        %3006 = vmatprep.subr.bf16.mxu0 0
        %3007 = vmatpush1.bf16.xpose.msra.mxu0 0
        %3008 = vmatprep.subr.bf16.mxu0 0
        %3009 = vmatpush1.bf16.xpose.msra.mxu0 0
        %3010 = vmatprep.subr.bf16.mxu0 0
        %3011 = vmatpush1.bf16.xpose.msra.mxu0 0
        %3012 = vmatprep.subr.bf16.mxu0 0
        %3013 = vmatpush1.bf16.xpose.msra.mxu0 0
        %3014 = vmatprep.mubr.bf16.mxu0 0
        %3015 = vmatmul.mubr.bf16.gmra.mrb[0].mxu0 %v2977
        %v3016 = vpop.f32.mrb[0].mxu0
        %v3017 = vadd.f32 0.0, %v3016
        %v3018 = vpop.f32.mrb[0].mxu0
        %v3019 = vpop.f32.mrb[0].mxu0
        %v3020 = vpop.f32.mrb[0].mxu0
        %3021 = vdwg.mxu0
        %3022 = vrot.lane.b32.xlu0 %v934, 112
        %v3023 = vpop.permute.xlu0 %3022
        %3024 = vrot.lane.b32.xlu0 %v934, 80
        %v3025 = vpop.permute.xlu0 %3024
        %v3027 = vsel %vm939, %v3023, 0
        %v3030 = vsel %vm939, %v3025, 0
        %3032 = vmatprep.subr.bf16.mxu0 0
        %3033 = vmatpush1.bf16.xpose.msra.mxu0 %v3030
        %3034 = vmatprep.subr.bf16.mxu0 0
        %3035 = vmatpush1.bf16.xpose.msra.mxu0 0
        %3036 = vmatprep.subr.bf16.mxu0 0
        %3037 = vmatpush1.bf16.xpose.msra.mxu0 0
        %3038 = vmatprep.subr.bf16.mxu0 0
        %3039 = vmatpush1.bf16.xpose.msra.mxu0 0
        %3040 = vmatprep.subr.bf16.mxu0 0
        %3041 = vmatpush1.bf16.xpose.msra.mxu0 0
        %3042 = vmatprep.subr.bf16.mxu0 0
        %3043 = vmatpush1.bf16.xpose.msra.mxu0 0
        %3044 = vmatprep.subr.bf16.mxu0 0
        %3045 = vmatpush1.bf16.xpose.msra.mxu0 0
        %3046 = vmatprep.subr.bf16.mxu0 0
        %3047 = vmatpush1.bf16.xpose.msra.mxu0 0
        %3048 = vmatprep.subr.bf16.mxu0 0
        %3049 = vmatpush1.bf16.xpose.msra.mxu0 0
        %3050 = vmatprep.subr.bf16.mxu0 0
        %3051 = vmatpush1.bf16.xpose.msra.mxu0 0
        %3052 = vmatprep.subr.bf16.mxu0 0
        %3053 = vmatpush1.bf16.xpose.msra.mxu0 0
        %3054 = vmatprep.subr.bf16.mxu0 0
        %3055 = vmatpush1.bf16.xpose.msra.mxu0 0
        %3056 = vmatprep.subr.bf16.mxu0 0
        %3057 = vmatpush1.bf16.xpose.msra.mxu0 0
        %3058 = vmatprep.subr.bf16.mxu0 0
        %3059 = vmatpush1.bf16.xpose.msra.mxu0 0
        %3060 = vmatprep.subr.bf16.mxu0 0
        %3061 = vmatpush1.bf16.xpose.msra.mxu0 0
        %3062 = vmatprep.subr.bf16.mxu0 0
        %3063 = vmatpush1.bf16.xpose.msra.mxu0 0
        %3064 = vmatprep.mubr.bf16.mxu0 0
        %3065 = vmatmul.mubr.bf16.gmra.mrb[0].mxu0 %v3027
        %v3066 = vpop.f32.mrb[0].mxu0
        %v3067 = vadd.f32 0.0, %v3066
        %v3068 = vpop.f32.mrb[0].mxu0
        %v3069 = vpop.f32.mrb[0].mxu0
        %v3070 = vpop.f32.mrb[0].mxu0
        %3071 = vdwg.mxu0
        %3072 = vrot.lane.b32.xlu0 %v935, 112
        %v3073 = vpop.permute.xlu0 %3072
        %3074 = vrot.lane.b32.xlu0 %v935, 80
        %v3075 = vpop.permute.xlu0 %3074
        %v3077 = vsel %vm939, %v3073, 0
        %v3080 = vsel %vm939, %v3075, 0
        %3082 = vmatprep.subr.bf16.mxu0 0
        %3083 = vmatpush1.bf16.xpose.msra.mxu0 %v3080
        %3084 = vmatprep.subr.bf16.mxu0 0
        %3085 = vmatpush1.bf16.xpose.msra.mxu0 0
        %3086 = vmatprep.subr.bf16.mxu0 0
        %3087 = vmatpush1.bf16.xpose.msra.mxu0 0
        %3088 = vmatprep.subr.bf16.mxu0 0
        %3089 = vmatpush1.bf16.xpose.msra.mxu0 0
        %3090 = vmatprep.subr.bf16.mxu0 0
        %3091 = vmatpush1.bf16.xpose.msra.mxu0 0
        %3092 = vmatprep.subr.bf16.mxu0 0
        %3093 = vmatpush1.bf16.xpose.msra.mxu0 0
        %3094 = vmatprep.subr.bf16.mxu0 0
        %3095 = vmatpush1.bf16.xpose.msra.mxu0 0
        %3096 = vmatprep.subr.bf16.mxu0 0
        %3097 = vmatpush1.bf16.xpose.msra.mxu0 0
        %3098 = vmatprep.subr.bf16.mxu0 0
        %3099 = vmatpush1.bf16.xpose.msra.mxu0 0
        %3100 = vmatprep.subr.bf16.mxu0 0
        %3101 = vmatpush1.bf16.xpose.msra.mxu0 0
        %3102 = vmatprep.subr.bf16.mxu0 0
        %3103 = vmatpush1.bf16.xpose.msra.mxu0 0
        %3104 = vmatprep.subr.bf16.mxu0 0
        %3105 = vmatpush1.bf16.xpose.msra.mxu0 0
        %3106 = vmatprep.subr.bf16.mxu0 0
        %3107 = vmatpush1.bf16.xpose.msra.mxu0 0
        %3108 = vmatprep.subr.bf16.mxu0 0
        %3109 = vmatpush1.bf16.xpose.msra.mxu0 0
        %3110 = vmatprep.subr.bf16.mxu0 0
        %3111 = vmatpush1.bf16.xpose.msra.mxu0 0
        %3112 = vmatprep.subr.bf16.mxu0 0
        %3113 = vmatpush1.bf16.xpose.msra.mxu0 0
        %3114 = vmatprep.mubr.bf16.mxu0 0
        %3115 = vmatmul.mubr.bf16.gmra.mrb[0].mxu0 %v3077
        %v3116 = vpop.f32.mrb[0].mxu0
        %v3117 = vadd.f32 0.0, %v3116
        %v3118 = vpop.f32.mrb[0].mxu0
        %v3119 = vpop.f32.mrb[0].mxu0
        %v3120 = vpop.f32.mrb[0].mxu0
        %3121 = vdwg.mxu0
        %v3122 = vmul.f32 %v2767, 0.35355338
        %v3123 = vmul.f32 %v2817, 0.35355338
        %v3124 = vmul.f32 %v2867, 0.35355338
        %v3125 = vmul.f32 %v2917, 0.35355338
        %v3126 = vmul.f32 %v2967, 0.35355338
        %v3127 = vmul.f32 %v3017, 0.35355338
        %v3128 = vmul.f32 %v3067, 0.35355338
        %v3129 = vmul.f32 %v3117, 0.35355338
        %v3130 = vadd.f32 %v3122, %v927
        %v3131 = vadd.f32 %v3123, %v927
        %v3132 = vadd.f32 %v3124, %v927
        %v3133 = vadd.f32 %v3125, %v927
        %v3134 = vadd.f32 %v3126, %v927
        %v3135 = vadd.f32 %v3127, %v927
        %v3136 = vadd.f32 %v3128, %v927
        %v3137 = vadd.f32 %v3129, %v927
        %v3138 = vsel %vm939, %v3130, -inf
        %3139 = vmax.xlane.f32.xlu0 %v3138
        %v3140 = vpop.xlane.xlu0 %3139
        %v3141 = vsel %vm939, %v3131, -inf
        %3142 = vmax.xlane.f32.xlu0 %v3141
        %v3143 = vpop.xlane.xlu0 %3142
        %v3144 = vsel %vm939, %v3132, -inf
        %3145 = vmax.xlane.f32.xlu0 %v3144
        %v3146 = vpop.xlane.xlu0 %3145
        %v3147 = vsel %vm939, %v3133, -inf
        %3148 = vmax.xlane.f32.xlu0 %v3147
        %v3149 = vpop.xlane.xlu0 %3148
        %v3150 = vsel %vm939, %v3134, -inf
        %3151 = vmax.xlane.f32.xlu0 %v3150
        %v3152 = vpop.xlane.xlu0 %3151
        %v3153 = vsel %vm939, %v3135, -inf
        %3154 = vmax.xlane.f32.xlu0 %v3153
        %v3155 = vpop.xlane.xlu0 %3154
        %v3156 = vsel %vm939, %v3136, -inf
        %3157 = vmax.xlane.f32.xlu0 %v3156
        %v3158 = vpop.xlane.xlu0 %3157
        %v3159 = vsel %vm939, %v3137, -inf
        %3160 = vmax.xlane.f32.xlu0 %v3159
        %v3161 = vpop.xlane.xlu0 %3160
        %v3162 = vsub.f32 %v3130, %v3140
        %v3163 = vsub.f32 %v3131, %v3143
        %v3164 = vsub.f32 %v3132, %v3146
        %v3165 = vsub.f32 %v3133, %v3149
        %v3166 = vsub.f32 %v3134, %v3152
        %v3167 = vsub.f32 %v3135, %v3155
        %v3168 = vsub.f32 %v3136, %v3158
        %v3169 = vsub.f32 %v3137, %v3161
        %v3170 = vmul.f32 %v3162, 1.442695
        %v3171 = vpow.pop %v3170
        %v3172 = vmul.f32 %v3163, 1.442695
        %v3173 = vpow.pop %v3172
        %v3174 = vmul.f32 %v3164, 1.442695
        %v3175 = vpow.pop %v3174
        %v3176 = vmul.f32 %v3165, 1.442695
        %v3177 = vpow.pop %v3176
        %v3178 = vmul.f32 %v3166, 1.442695
        %v3179 = vpow.pop %v3178
        %v3180 = vmul.f32 %v3167, 1.442695
        %v3181 = vpow.pop %v3180
        %v3182 = vmul.f32 %v3168, 1.442695
        %v3183 = vpow.pop %v3182
        %v3184 = vmul.f32 %v3169, 1.442695
        %v3185 = vpow.pop %v3184
        %v3186 = vsel %vm939, %v3171, 0.0
        %3187 = vadd.xlane.f32.xlu0 %v3186
        %v3188 = vpop.xlane.xlu0 %3187
        %v3189 = vsel %vm939, %v3173, 0.0
        %3190 = vadd.xlane.f32.xlu0 %v3189
        %v3191 = vpop.xlane.xlu0 %3190
        %v3192 = vsel %vm939, %v3175, 0.0
        %3193 = vadd.xlane.f32.xlu0 %v3192
        %v3194 = vpop.xlane.xlu0 %3193
        %v3195 = vsel %vm939, %v3177, 0.0
        %3196 = vadd.xlane.f32.xlu0 %v3195
        %v3197 = vpop.xlane.xlu0 %3196
        %v3198 = vsel %vm939, %v3179, 0.0
        %3199 = vadd.xlane.f32.xlu0 %v3198
        %v3200 = vpop.xlane.xlu0 %3199
        %v3201 = vsel %vm939, %v3181, 0.0
        %3202 = vadd.xlane.f32.xlu0 %v3201
        %v3203 = vpop.xlane.xlu0 %3202
        %v3204 = vsel %vm939, %v3183, 0.0
        %3205 = vadd.xlane.f32.xlu0 %v3204
        %v3206 = vpop.xlane.xlu0 %3205
        %v3207 = vsel %vm939, %v3185, 0.0
        %3208 = vadd.xlane.f32.xlu0 %v3207
        %v3209 = vpop.xlane.xlu0 %3208
        %v3210 = vrcp.pop %v3188
        %v3211 = vrcp.pop %v3191
        %v3212 = vrcp.pop %v3194
        %v3213 = vrcp.pop %v3197
        %v3214 = vrcp.pop %v3200
        %v3215 = vrcp.pop %v3203
        %v3216 = vrcp.pop %v3206
        %v3217 = vrcp.pop %v3209
        %v3218 = vmul.f32 %v3171, %v3210
        %v3219 = vmul.f32 %v3173, %v3211
        %v3220 = vmul.f32 %v3175, %v3212
        %v3221 = vmul.f32 %v3177, %v3213
        %v3222 = vmul.f32 %v3179, %v3214
        %v3223 = vmul.f32 %v3181, %v3215
        %v3224 = vmul.f32 %v3183, %v3216
        %v3225 = vmul.f32 %v3185, %v3217
        %v3226 = vpack.c.bf16 %v3218, %v3218
        %v3227 = vpack.c.bf16 %v3219, %v3219
        %v3228 = vpack.c.bf16 %v3220, %v3220
        %v3229 = vpack.c.bf16 %v3221, %v3221
        %v3230 = vpack.c.bf16 %v3222, %v3222
        %v3231 = vpack.c.bf16 %v3223, %v3223
        %v3232 = vpack.c.bf16 %v3224, %v3224
        %v3233 = vpack.c.bf16 %v3225, %v3225
        %3234 = vrot.lane.b32.xlu0 %v928, 48
        %v3235 = vpop.permute.xlu0 %3234
        %v3237 = vsel %vm939, %v3226, 0
        %v3240 = vsel %vm1446, %v3235, 0
        %3242 = vmatprep.subr.bf16.mxu0 0
        %3243 = vmatpush1.bf16.msra.mxu0 %v3240
        %3244 = vmatprep.subr.bf16.mxu0 0
        %3245 = vmatpush1.bf16.msra.mxu0 0
        %3246 = vmatprep.subr.bf16.mxu0 0
        %3247 = vmatpush1.bf16.msra.mxu0 0
        %3248 = vmatprep.subr.bf16.mxu0 0
        %3249 = vmatpush1.bf16.msra.mxu0 0
        %3250 = vmatprep.subr.bf16.mxu0 0
        %3251 = vmatpush1.bf16.msra.mxu0 0
        %3252 = vmatprep.subr.bf16.mxu0 0
        %3253 = vmatpush1.bf16.msra.mxu0 0
        %3254 = vmatprep.subr.bf16.mxu0 0
        %3255 = vmatpush1.bf16.msra.mxu0 0
        %3256 = vmatprep.subr.bf16.mxu0 0
        %3257 = vmatpush1.bf16.msra.mxu0 0
        %3258 = vmatprep.subr.bf16.mxu0 0
        %3259 = vmatpush1.bf16.msra.mxu0 0
        %3260 = vmatprep.subr.bf16.mxu0 0
        %3261 = vmatpush1.bf16.msra.mxu0 0
        %3262 = vmatprep.subr.bf16.mxu0 0
        %3263 = vmatpush1.bf16.msra.mxu0 0
        %3264 = vmatprep.subr.bf16.mxu0 0
        %3265 = vmatpush1.bf16.msra.mxu0 0
        %3266 = vmatprep.subr.bf16.mxu0 0
        %3267 = vmatpush1.bf16.msra.mxu0 0
        %3268 = vmatprep.subr.bf16.mxu0 0
        %3269 = vmatpush1.bf16.msra.mxu0 0
        %3270 = vmatprep.subr.bf16.mxu0 0
        %3271 = vmatpush1.bf16.msra.mxu0 0
        %3272 = vmatprep.subr.bf16.mxu0 0
        %3273 = vmatpush1.bf16.msra.mxu0 0
        %3274 = vmatprep.mubr.bf16.mxu0 0
        %3275 = vmatmul.mubr.bf16.gmra.mrb[0].mxu0 %v3237
        %v3276 = vpop.f32.mrb[0].mxu0
        %v3277 = vadd.f32 0.0, %v3276
        %v3278 = vpop.f32.mrb[0].mxu0
        %v3279 = vpop.f32.mrb[0].mxu0
        %v3280 = vpop.f32.mrb[0].mxu0
        %3281 = vdwg.mxu0
        %3282 = vrot.lane.b32.xlu0 %v929, 48
        %v3283 = vpop.permute.xlu0 %3282
        %v3285 = vsel %vm939, %v3227, 0
        %v3288 = vsel %vm1446, %v3283, 0
        %3290 = vmatprep.subr.bf16.mxu0 0
        %3291 = vmatpush1.bf16.msra.mxu0 %v3288
        %3292 = vmatprep.subr.bf16.mxu0 0
        %3293 = vmatpush1.bf16.msra.mxu0 0
        %3294 = vmatprep.subr.bf16.mxu0 0
        %3295 = vmatpush1.bf16.msra.mxu0 0
        %3296 = vmatprep.subr.bf16.mxu0 0
        %3297 = vmatpush1.bf16.msra.mxu0 0
        %3298 = vmatprep.subr.bf16.mxu0 0
        %3299 = vmatpush1.bf16.msra.mxu0 0
        %3300 = vmatprep.subr.bf16.mxu0 0
        %3301 = vmatpush1.bf16.msra.mxu0 0
        %3302 = vmatprep.subr.bf16.mxu0 0
        %3303 = vmatpush1.bf16.msra.mxu0 0
        %3304 = vmatprep.subr.bf16.mxu0 0
        %3305 = vmatpush1.bf16.msra.mxu0 0
        %3306 = vmatprep.subr.bf16.mxu0 0
        %3307 = vmatpush1.bf16.msra.mxu0 0
        %3308 = vmatprep.subr.bf16.mxu0 0
        %3309 = vmatpush1.bf16.msra.mxu0 0
        %3310 = vmatprep.subr.bf16.mxu0 0
        %3311 = vmatpush1.bf16.msra.mxu0 0
        %3312 = vmatprep.subr.bf16.mxu0 0
        %3313 = vmatpush1.bf16.msra.mxu0 0
        %3314 = vmatprep.subr.bf16.mxu0 0
        %3315 = vmatpush1.bf16.msra.mxu0 0
        %3316 = vmatprep.subr.bf16.mxu0 0
        %3317 = vmatpush1.bf16.msra.mxu0 0
        %3318 = vmatprep.subr.bf16.mxu0 0
        %3319 = vmatpush1.bf16.msra.mxu0 0
        %3320 = vmatprep.subr.bf16.mxu0 0
        %3321 = vmatpush1.bf16.msra.mxu0 0
        %3322 = vmatprep.mubr.bf16.mxu0 0
        %3323 = vmatmul.mubr.bf16.gmra.mrb[0].mxu0 %v3285
        %v3324 = vpop.f32.mrb[0].mxu0
        %v3325 = vadd.f32 0.0, %v3324
        %v3326 = vpop.f32.mrb[0].mxu0
        %v3327 = vpop.f32.mrb[0].mxu0
        %v3328 = vpop.f32.mrb[0].mxu0
        %3329 = vdwg.mxu0
        %3330 = vrot.lane.b32.xlu0 %v930, 48
        %v3331 = vpop.permute.xlu0 %3330
        %v3333 = vsel %vm939, %v3228, 0
        %v3336 = vsel %vm1446, %v3331, 0
        %3338 = vmatprep.subr.bf16.mxu0 0
        %3339 = vmatpush1.bf16.msra.mxu0 %v3336
        %3340 = vmatprep.subr.bf16.mxu0 0
        %3341 = vmatpush1.bf16.msra.mxu0 0
        %3342 = vmatprep.subr.bf16.mxu0 0
        %3343 = vmatpush1.bf16.msra.mxu0 0
        %3344 = vmatprep.subr.bf16.mxu0 0
        %3345 = vmatpush1.bf16.msra.mxu0 0
        %3346 = vmatprep.subr.bf16.mxu0 0
        %3347 = vmatpush1.bf16.msra.mxu0 0
        %3348 = vmatprep.subr.bf16.mxu0 0
        %3349 = vmatpush1.bf16.msra.mxu0 0
        %3350 = vmatprep.subr.bf16.mxu0 0
        %3351 = vmatpush1.bf16.msra.mxu0 0
        %3352 = vmatprep.subr.bf16.mxu0 0
        %3353 = vmatpush1.bf16.msra.mxu0 0
        %3354 = vmatprep.subr.bf16.mxu0 0
        %3355 = vmatpush1.bf16.msra.mxu0 0
        %3356 = vmatprep.subr.bf16.mxu0 0
        %3357 = vmatpush1.bf16.msra.mxu0 0
        %3358 = vmatprep.subr.bf16.mxu0 0
        %3359 = vmatpush1.bf16.msra.mxu0 0
        %3360 = vmatprep.subr.bf16.mxu0 0
        %3361 = vmatpush1.bf16.msra.mxu0 0
        %3362 = vmatprep.subr.bf16.mxu0 0
        %3363 = vmatpush1.bf16.msra.mxu0 0
        %3364 = vmatprep.subr.bf16.mxu0 0
        %3365 = vmatpush1.bf16.msra.mxu0 0
        %3366 = vmatprep.subr.bf16.mxu0 0
        %3367 = vmatpush1.bf16.msra.mxu0 0
        %3368 = vmatprep.subr.bf16.mxu0 0
        %3369 = vmatpush1.bf16.msra.mxu0 0
        %3370 = vmatprep.mubr.bf16.mxu0 0
        %3371 = vmatmul.mubr.bf16.gmra.mrb[0].mxu0 %v3333
        %v3372 = vpop.f32.mrb[0].mxu0
        %v3373 = vadd.f32 0.0, %v3372
        %v3374 = vpop.f32.mrb[0].mxu0
        %v3375 = vpop.f32.mrb[0].mxu0
        %v3376 = vpop.f32.mrb[0].mxu0
        %3377 = vdwg.mxu0
        %3378 = vrot.lane.b32.xlu0 %v931, 48
        %v3379 = vpop.permute.xlu0 %3378
        %v3381 = vsel %vm939, %v3229, 0
        %v3384 = vsel %vm1446, %v3379, 0
        %3386 = vmatprep.subr.bf16.mxu0 0
        %3387 = vmatpush1.bf16.msra.mxu0 %v3384
        %3388 = vmatprep.subr.bf16.mxu0 0
        %3389 = vmatpush1.bf16.msra.mxu0 0
        %3390 = vmatprep.subr.bf16.mxu0 0
        %3391 = vmatpush1.bf16.msra.mxu0 0
        %3392 = vmatprep.subr.bf16.mxu0 0
        %3393 = vmatpush1.bf16.msra.mxu0 0
        %3394 = vmatprep.subr.bf16.mxu0 0
        %3395 = vmatpush1.bf16.msra.mxu0 0
        %3396 = vmatprep.subr.bf16.mxu0 0
        %3397 = vmatpush1.bf16.msra.mxu0 0
        %3398 = vmatprep.subr.bf16.mxu0 0
        %3399 = vmatpush1.bf16.msra.mxu0 0
        %3400 = vmatprep.subr.bf16.mxu0 0
        %3401 = vmatpush1.bf16.msra.mxu0 0
        %3402 = vmatprep.subr.bf16.mxu0 0
        %3403 = vmatpush1.bf16.msra.mxu0 0
        %3404 = vmatprep.subr.bf16.mxu0 0
        %3405 = vmatpush1.bf16.msra.mxu0 0
        %3406 = vmatprep.subr.bf16.mxu0 0
        %3407 = vmatpush1.bf16.msra.mxu0 0
        %3408 = vmatprep.subr.bf16.mxu0 0
        %3409 = vmatpush1.bf16.msra.mxu0 0
        %3410 = vmatprep.subr.bf16.mxu0 0
        %3411 = vmatpush1.bf16.msra.mxu0 0
        %3412 = vmatprep.subr.bf16.mxu0 0
        %3413 = vmatpush1.bf16.msra.mxu0 0
        %3414 = vmatprep.subr.bf16.mxu0 0
        %3415 = vmatpush1.bf16.msra.mxu0 0
        %3416 = vmatprep.subr.bf16.mxu0 0
        %3417 = vmatpush1.bf16.msra.mxu0 0
        %3418 = vmatprep.mubr.bf16.mxu0 0
        %3419 = vmatmul.mubr.bf16.gmra.mrb[0].mxu0 %v3381
        %v3420 = vpop.f32.mrb[0].mxu0
        %v3421 = vadd.f32 0.0, %v3420
        %v3422 = vpop.f32.mrb[0].mxu0
        %v3423 = vpop.f32.mrb[0].mxu0
        %v3424 = vpop.f32.mrb[0].mxu0
        %3425 = vdwg.mxu0
        %3426 = vrot.lane.b32.xlu0 %v932, 48
        %v3427 = vpop.permute.xlu0 %3426
        %v3429 = vsel %vm939, %v3230, 0
        %v3432 = vsel %vm1446, %v3427, 0
        %3434 = vmatprep.subr.bf16.mxu0 0
        %3435 = vmatpush1.bf16.msra.mxu0 %v3432
        %3436 = vmatprep.subr.bf16.mxu0 0
        %3437 = vmatpush1.bf16.msra.mxu0 0
        %3438 = vmatprep.subr.bf16.mxu0 0
        %3439 = vmatpush1.bf16.msra.mxu0 0
        %3440 = vmatprep.subr.bf16.mxu0 0
        %3441 = vmatpush1.bf16.msra.mxu0 0
        %3442 = vmatprep.subr.bf16.mxu0 0
        %3443 = vmatpush1.bf16.msra.mxu0 0
        %3444 = vmatprep.subr.bf16.mxu0 0
        %3445 = vmatpush1.bf16.msra.mxu0 0
        %3446 = vmatprep.subr.bf16.mxu0 0
        %3447 = vmatpush1.bf16.msra.mxu0 0
        %3448 = vmatprep.subr.bf16.mxu0 0
        %3449 = vmatpush1.bf16.msra.mxu0 0
        %3450 = vmatprep.subr.bf16.mxu0 0
        %3451 = vmatpush1.bf16.msra.mxu0 0
        %3452 = vmatprep.subr.bf16.mxu0 0
        %3453 = vmatpush1.bf16.msra.mxu0 0
        %3454 = vmatprep.subr.bf16.mxu0 0
        %3455 = vmatpush1.bf16.msra.mxu0 0
        %3456 = vmatprep.subr.bf16.mxu0 0
        %3457 = vmatpush1.bf16.msra.mxu0 0
        %3458 = vmatprep.subr.bf16.mxu0 0
        %3459 = vmatpush1.bf16.msra.mxu0 0
        %3460 = vmatprep.subr.bf16.mxu0 0
        %3461 = vmatpush1.bf16.msra.mxu0 0
        %3462 = vmatprep.subr.bf16.mxu0 0
        %3463 = vmatpush1.bf16.msra.mxu0 0
        %3464 = vmatprep.subr.bf16.mxu0 0
        %3465 = vmatpush1.bf16.msra.mxu0 0
        %3466 = vmatprep.mubr.bf16.mxu0 0
        %3467 = vmatmul.mubr.bf16.gmra.mrb[0].mxu0 %v3429
        %v3468 = vpop.f32.mrb[0].mxu0
        %v3469 = vadd.f32 0.0, %v3468
        %v3470 = vpop.f32.mrb[0].mxu0
        %v3471 = vpop.f32.mrb[0].mxu0
        %v3472 = vpop.f32.mrb[0].mxu0
        %3473 = vdwg.mxu0
        %3474 = vrot.lane.b32.xlu0 %v933, 48
        %v3475 = vpop.permute.xlu0 %3474
        %v3477 = vsel %vm939, %v3231, 0
        %v3480 = vsel %vm1446, %v3475, 0
        %3482 = vmatprep.subr.bf16.mxu0 0
        %3483 = vmatpush1.bf16.msra.mxu0 %v3480
        %3484 = vmatprep.subr.bf16.mxu0 0
        %3485 = vmatpush1.bf16.msra.mxu0 0
        %3486 = vmatprep.subr.bf16.mxu0 0
        %3487 = vmatpush1.bf16.msra.mxu0 0
        %3488 = vmatprep.subr.bf16.mxu0 0
        %3489 = vmatpush1.bf16.msra.mxu0 0
        %3490 = vmatprep.subr.bf16.mxu0 0
        %3491 = vmatpush1.bf16.msra.mxu0 0
        %3492 = vmatprep.subr.bf16.mxu0 0
        %3493 = vmatpush1.bf16.msra.mxu0 0
        %3494 = vmatprep.subr.bf16.mxu0 0
        %3495 = vmatpush1.bf16.msra.mxu0 0
        %3496 = vmatprep.subr.bf16.mxu0 0
        %3497 = vmatpush1.bf16.msra.mxu0 0
        %3498 = vmatprep.subr.bf16.mxu0 0
        %3499 = vmatpush1.bf16.msra.mxu0 0
        %3500 = vmatprep.subr.bf16.mxu0 0
        %3501 = vmatpush1.bf16.msra.mxu0 0
        %3502 = vmatprep.subr.bf16.mxu0 0
        %3503 = vmatpush1.bf16.msra.mxu0 0
        %3504 = vmatprep.subr.bf16.mxu0 0
        %3505 = vmatpush1.bf16.msra.mxu0 0
        %3506 = vmatprep.subr.bf16.mxu0 0
        %3507 = vmatpush1.bf16.msra.mxu0 0
        %3508 = vmatprep.subr.bf16.mxu0 0
        %3509 = vmatpush1.bf16.msra.mxu0 0
        %3510 = vmatprep.subr.bf16.mxu0 0
        %3511 = vmatpush1.bf16.msra.mxu0 0
        %3512 = vmatprep.subr.bf16.mxu0 0
        %3513 = vmatpush1.bf16.msra.mxu0 0
        %3514 = vmatprep.mubr.bf16.mxu0 0
        %3515 = vmatmul.mubr.bf16.gmra.mrb[0].mxu0 %v3477
        %v3516 = vpop.f32.mrb[0].mxu0
        %v3517 = vadd.f32 0.0, %v3516
        %v3518 = vpop.f32.mrb[0].mxu0
        %v3519 = vpop.f32.mrb[0].mxu0
        %v3520 = vpop.f32.mrb[0].mxu0
        %3521 = vdwg.mxu0
        %3522 = vrot.lane.b32.xlu0 %v934, 48
        %v3523 = vpop.permute.xlu0 %3522
        %v3525 = vsel %vm939, %v3232, 0
        %v3528 = vsel %vm1446, %v3523, 0
        %3530 = vmatprep.subr.bf16.mxu0 0
        %3531 = vmatpush1.bf16.msra.mxu0 %v3528
        %3532 = vmatprep.subr.bf16.mxu0 0
        %3533 = vmatpush1.bf16.msra.mxu0 0
        %3534 = vmatprep.subr.bf16.mxu0 0
        %3535 = vmatpush1.bf16.msra.mxu0 0
        %3536 = vmatprep.subr.bf16.mxu0 0
        %3537 = vmatpush1.bf16.msra.mxu0 0
        %3538 = vmatprep.subr.bf16.mxu0 0
        %3539 = vmatpush1.bf16.msra.mxu0 0
        %3540 = vmatprep.subr.bf16.mxu0 0
        %3541 = vmatpush1.bf16.msra.mxu0 0
        %3542 = vmatprep.subr.bf16.mxu0 0
        %3543 = vmatpush1.bf16.msra.mxu0 0
        %3544 = vmatprep.subr.bf16.mxu0 0
        %3545 = vmatpush1.bf16.msra.mxu0 0
        %3546 = vmatprep.subr.bf16.mxu0 0
        %3547 = vmatpush1.bf16.msra.mxu0 0
        %3548 = vmatprep.subr.bf16.mxu0 0
        %3549 = vmatpush1.bf16.msra.mxu0 0
        %3550 = vmatprep.subr.bf16.mxu0 0
        %3551 = vmatpush1.bf16.msra.mxu0 0
        %3552 = vmatprep.subr.bf16.mxu0 0
        %3553 = vmatpush1.bf16.msra.mxu0 0
        %3554 = vmatprep.subr.bf16.mxu0 0
        %3555 = vmatpush1.bf16.msra.mxu0 0
        %3556 = vmatprep.subr.bf16.mxu0 0
        %3557 = vmatpush1.bf16.msra.mxu0 0
        %3558 = vmatprep.subr.bf16.mxu0 0
        %3559 = vmatpush1.bf16.msra.mxu0 0
        %3560 = vmatprep.subr.bf16.mxu0 0
        %3561 = vmatpush1.bf16.msra.mxu0 0
        %3562 = vmatprep.mubr.bf16.mxu0 0
        %3563 = vmatmul.mubr.bf16.gmra.mrb[0].mxu0 %v3525
        %v3564 = vpop.f32.mrb[0].mxu0
        %v3565 = vadd.f32 0.0, %v3564
        %v3566 = vpop.f32.mrb[0].mxu0
        %v3567 = vpop.f32.mrb[0].mxu0
        %v3568 = vpop.f32.mrb[0].mxu0
        %3569 = vdwg.mxu0
        %3570 = vrot.lane.b32.xlu0 %v935, 48
        %v3571 = vpop.permute.xlu0 %3570
        %v3573 = vsel %vm939, %v3233, 0
        %v3576 = vsel %vm1446, %v3571, 0
        %3578 = vmatprep.subr.bf16.mxu0 0
        %3579 = vmatpush1.bf16.msra.mxu0 %v3576
        %3580 = vmatprep.subr.bf16.mxu0 0
        %3581 = vmatpush1.bf16.msra.mxu0 0
        %3582 = vmatprep.subr.bf16.mxu0 0
        %3583 = vmatpush1.bf16.msra.mxu0 0
        %3584 = vmatprep.subr.bf16.mxu0 0
        %3585 = vmatpush1.bf16.msra.mxu0 0
        %3586 = vmatprep.subr.bf16.mxu0 0
        %3587 = vmatpush1.bf16.msra.mxu0 0
        %3588 = vmatprep.subr.bf16.mxu0 0
        %3589 = vmatpush1.bf16.msra.mxu0 0
        %3590 = vmatprep.subr.bf16.mxu0 0
        %3591 = vmatpush1.bf16.msra.mxu0 0
        %3592 = vmatprep.subr.bf16.mxu0 0
        %3593 = vmatpush1.bf16.msra.mxu0 0
        %3594 = vmatprep.subr.bf16.mxu0 0
        %3595 = vmatpush1.bf16.msra.mxu0 0
        %3596 = vmatprep.subr.bf16.mxu0 0
        %3597 = vmatpush1.bf16.msra.mxu0 0
        %3598 = vmatprep.subr.bf16.mxu0 0
        %3599 = vmatpush1.bf16.msra.mxu0 0
        %3600 = vmatprep.subr.bf16.mxu0 0
        %3601 = vmatpush1.bf16.msra.mxu0 0
        %3602 = vmatprep.subr.bf16.mxu0 0
        %3603 = vmatpush1.bf16.msra.mxu0 0
        %3604 = vmatprep.subr.bf16.mxu0 0
        %3605 = vmatpush1.bf16.msra.mxu0 0
        %3606 = vmatprep.subr.bf16.mxu0 0
        %3607 = vmatpush1.bf16.msra.mxu0 0
        %3608 = vmatprep.subr.bf16.mxu0 0
        %3609 = vmatpush1.bf16.msra.mxu0 0
        %3610 = vmatprep.mubr.bf16.mxu0 0
        %3611 = vmatmul.mubr.bf16.gmra.mrb[0].mxu0 %v3573
        %v3612 = vpop.f32.mrb[0].mxu0
        %v3613 = vadd.f32 0.0, %v3612
        %v3614 = vpop.f32.mrb[0].mxu0
        %v3615 = vpop.f32.mrb[0].mxu0
        %v3616 = vpop.f32.mrb[0].mxu0
        %3617 = vdwg.mxu0
        %3618 = vrot.lane.b32.xlu0 %v928, 104
        %v3619 = vpop.permute.xlu0 %3618
        %3620 = vrot.lane.b32.xlu0 %v928, 72
        %v3621 = vpop.permute.xlu0 %3620
        %v3623 = vsel %vm939, %v3619, 0
        %v3626 = vsel %vm939, %v3621, 0
        %3628 = vmatprep.subr.bf16.mxu0 0
        %3629 = vmatpush1.bf16.xpose.msra.mxu0 %v3626
        %3630 = vmatprep.subr.bf16.mxu0 0
        %3631 = vmatpush1.bf16.xpose.msra.mxu0 0
        %3632 = vmatprep.subr.bf16.mxu0 0
        %3633 = vmatpush1.bf16.xpose.msra.mxu0 0
        %3634 = vmatprep.subr.bf16.mxu0 0
        %3635 = vmatpush1.bf16.xpose.msra.mxu0 0
        %3636 = vmatprep.subr.bf16.mxu0 0
        %3637 = vmatpush1.bf16.xpose.msra.mxu0 0
        %3638 = vmatprep.subr.bf16.mxu0 0
        %3639 = vmatpush1.bf16.xpose.msra.mxu0 0
        %3640 = vmatprep.subr.bf16.mxu0 0
        %3641 = vmatpush1.bf16.xpose.msra.mxu0 0
        %3642 = vmatprep.subr.bf16.mxu0 0
        %3643 = vmatpush1.bf16.xpose.msra.mxu0 0
        %3644 = vmatprep.subr.bf16.mxu0 0
        %3645 = vmatpush1.bf16.xpose.msra.mxu0 0
        %3646 = vmatprep.subr.bf16.mxu0 0
        %3647 = vmatpush1.bf16.xpose.msra.mxu0 0
        %3648 = vmatprep.subr.bf16.mxu0 0
        %3649 = vmatpush1.bf16.xpose.msra.mxu0 0
        %3650 = vmatprep.subr.bf16.mxu0 0
        %3651 = vmatpush1.bf16.xpose.msra.mxu0 0
        %3652 = vmatprep.subr.bf16.mxu0 0
        %3653 = vmatpush1.bf16.xpose.msra.mxu0 0
        %3654 = vmatprep.subr.bf16.mxu0 0
        %3655 = vmatpush1.bf16.xpose.msra.mxu0 0
        %3656 = vmatprep.subr.bf16.mxu0 0
        %3657 = vmatpush1.bf16.xpose.msra.mxu0 0
        %3658 = vmatprep.subr.bf16.mxu0 0
        %3659 = vmatpush1.bf16.xpose.msra.mxu0 0
        %3660 = vmatprep.mubr.bf16.mxu0 0
        %3661 = vmatmul.mubr.bf16.gmra.mrb[0].mxu0 %v3623
        %v3662 = vpop.f32.mrb[0].mxu0
        %v3663 = vadd.f32 0.0, %v3662
        %v3664 = vpop.f32.mrb[0].mxu0
        %v3665 = vpop.f32.mrb[0].mxu0
        %v3666 = vpop.f32.mrb[0].mxu0
        %3667 = vdwg.mxu0
        %3668 = vrot.lane.b32.xlu0 %v929, 104
        %v3669 = vpop.permute.xlu0 %3668
        %3670 = vrot.lane.b32.xlu0 %v929, 72
        %v3671 = vpop.permute.xlu0 %3670
        %v3673 = vsel %vm939, %v3669, 0
        %v3676 = vsel %vm939, %v3671, 0
        %3678 = vmatprep.subr.bf16.mxu0 0
        %3679 = vmatpush1.bf16.xpose.msra.mxu0 %v3676
        %3680 = vmatprep.subr.bf16.mxu0 0
        %3681 = vmatpush1.bf16.xpose.msra.mxu0 0
        %3682 = vmatprep.subr.bf16.mxu0 0
        %3683 = vmatpush1.bf16.xpose.msra.mxu0 0
        %3684 = vmatprep.subr.bf16.mxu0 0
        %3685 = vmatpush1.bf16.xpose.msra.mxu0 0
        %3686 = vmatprep.subr.bf16.mxu0 0
        %3687 = vmatpush1.bf16.xpose.msra.mxu0 0
        %3688 = vmatprep.subr.bf16.mxu0 0
        %3689 = vmatpush1.bf16.xpose.msra.mxu0 0
        %3690 = vmatprep.subr.bf16.mxu0 0
        %3691 = vmatpush1.bf16.xpose.msra.mxu0 0
        %3692 = vmatprep.subr.bf16.mxu0 0
        %3693 = vmatpush1.bf16.xpose.msra.mxu0 0
        %3694 = vmatprep.subr.bf16.mxu0 0
        %3695 = vmatpush1.bf16.xpose.msra.mxu0 0
        %3696 = vmatprep.subr.bf16.mxu0 0
        %3697 = vmatpush1.bf16.xpose.msra.mxu0 0
        %3698 = vmatprep.subr.bf16.mxu0 0
        %3699 = vmatpush1.bf16.xpose.msra.mxu0 0
        %3700 = vmatprep.subr.bf16.mxu0 0
        %3701 = vmatpush1.bf16.xpose.msra.mxu0 0
        %3702 = vmatprep.subr.bf16.mxu0 0
        %3703 = vmatpush1.bf16.xpose.msra.mxu0 0
        %3704 = vmatprep.subr.bf16.mxu0 0
        %3705 = vmatpush1.bf16.xpose.msra.mxu0 0
        %3706 = vmatprep.subr.bf16.mxu0 0
        %3707 = vmatpush1.bf16.xpose.msra.mxu0 0
        %3708 = vmatprep.subr.bf16.mxu0 0
        %3709 = vmatpush1.bf16.xpose.msra.mxu0 0
        %3710 = vmatprep.mubr.bf16.mxu0 0
        %3711 = vmatmul.mubr.bf16.gmra.mrb[0].mxu0 %v3673
        %v3712 = vpop.f32.mrb[0].mxu0
        %v3713 = vadd.f32 0.0, %v3712
        %v3714 = vpop.f32.mrb[0].mxu0
        %v3715 = vpop.f32.mrb[0].mxu0
        %v3716 = vpop.f32.mrb[0].mxu0
        %3717 = vdwg.mxu0
        %3718 = vrot.lane.b32.xlu0 %v930, 104
        %v3719 = vpop.permute.xlu0 %3718
        %3720 = vrot.lane.b32.xlu0 %v930, 72
        %v3721 = vpop.permute.xlu0 %3720
        %v3723 = vsel %vm939, %v3719, 0
        %v3726 = vsel %vm939, %v3721, 0
        %3728 = vmatprep.subr.bf16.mxu0 0
        %3729 = vmatpush1.bf16.xpose.msra.mxu0 %v3726
        %3730 = vmatprep.subr.bf16.mxu0 0
        %3731 = vmatpush1.bf16.xpose.msra.mxu0 0
        %3732 = vmatprep.subr.bf16.mxu0 0
        %3733 = vmatpush1.bf16.xpose.msra.mxu0 0
        %3734 = vmatprep.subr.bf16.mxu0 0
        %3735 = vmatpush1.bf16.xpose.msra.mxu0 0
        %3736 = vmatprep.subr.bf16.mxu0 0
        %3737 = vmatpush1.bf16.xpose.msra.mxu0 0
        %3738 = vmatprep.subr.bf16.mxu0 0
        %3739 = vmatpush1.bf16.xpose.msra.mxu0 0
        %3740 = vmatprep.subr.bf16.mxu0 0
        %3741 = vmatpush1.bf16.xpose.msra.mxu0 0
        %3742 = vmatprep.subr.bf16.mxu0 0
        %3743 = vmatpush1.bf16.xpose.msra.mxu0 0
        %3744 = vmatprep.subr.bf16.mxu0 0
        %3745 = vmatpush1.bf16.xpose.msra.mxu0 0
        %3746 = vmatprep.subr.bf16.mxu0 0
        %3747 = vmatpush1.bf16.xpose.msra.mxu0 0
        %3748 = vmatprep.subr.bf16.mxu0 0
        %3749 = vmatpush1.bf16.xpose.msra.mxu0 0
        %3750 = vmatprep.subr.bf16.mxu0 0
        %3751 = vmatpush1.bf16.xpose.msra.mxu0 0
        %3752 = vmatprep.subr.bf16.mxu0 0
        %3753 = vmatpush1.bf16.xpose.msra.mxu0 0
        %3754 = vmatprep.subr.bf16.mxu0 0
        %3755 = vmatpush1.bf16.xpose.msra.mxu0 0
        %3756 = vmatprep.subr.bf16.mxu0 0
        %3757 = vmatpush1.bf16.xpose.msra.mxu0 0
        %3758 = vmatprep.subr.bf16.mxu0 0
        %3759 = vmatpush1.bf16.xpose.msra.mxu0 0
        %3760 = vmatprep.mubr.bf16.mxu0 0
        %3761 = vmatmul.mubr.bf16.gmra.mrb[0].mxu0 %v3723
        %v3762 = vpop.f32.mrb[0].mxu0
        %v3763 = vadd.f32 0.0, %v3762
        %v3764 = vpop.f32.mrb[0].mxu0
        %v3765 = vpop.f32.mrb[0].mxu0
        %v3766 = vpop.f32.mrb[0].mxu0
        %3767 = vdwg.mxu0
        %3768 = vrot.lane.b32.xlu0 %v931, 104
        %v3769 = vpop.permute.xlu0 %3768
        %3770 = vrot.lane.b32.xlu0 %v931, 72
        %v3771 = vpop.permute.xlu0 %3770
        %v3773 = vsel %vm939, %v3769, 0
        %v3776 = vsel %vm939, %v3771, 0
        %3778 = vmatprep.subr.bf16.mxu0 0
        %3779 = vmatpush1.bf16.xpose.msra.mxu0 %v3776
        %3780 = vmatprep.subr.bf16.mxu0 0
        %3781 = vmatpush1.bf16.xpose.msra.mxu0 0
        %3782 = vmatprep.subr.bf16.mxu0 0
        %3783 = vmatpush1.bf16.xpose.msra.mxu0 0
        %3784 = vmatprep.subr.bf16.mxu0 0
        %3785 = vmatpush1.bf16.xpose.msra.mxu0 0
        %3786 = vmatprep.subr.bf16.mxu0 0
        %3787 = vmatpush1.bf16.xpose.msra.mxu0 0
        %3788 = vmatprep.subr.bf16.mxu0 0
        %3789 = vmatpush1.bf16.xpose.msra.mxu0 0
        %3790 = vmatprep.subr.bf16.mxu0 0
        %3791 = vmatpush1.bf16.xpose.msra.mxu0 0
        %3792 = vmatprep.subr.bf16.mxu0 0
        %3793 = vmatpush1.bf16.xpose.msra.mxu0 0
        %3794 = vmatprep.subr.bf16.mxu0 0
        %3795 = vmatpush1.bf16.xpose.msra.mxu0 0
        %3796 = vmatprep.subr.bf16.mxu0 0
        %3797 = vmatpush1.bf16.xpose.msra.mxu0 0
        %3798 = vmatprep.subr.bf16.mxu0 0
        %3799 = vmatpush1.bf16.xpose.msra.mxu0 0
        %3800 = vmatprep.subr.bf16.mxu0 0
        %3801 = vmatpush1.bf16.xpose.msra.mxu0 0
        %3802 = vmatprep.subr.bf16.mxu0 0
        %3803 = vmatpush1.bf16.xpose.msra.mxu0 0
        %3804 = vmatprep.subr.bf16.mxu0 0
        %3805 = vmatpush1.bf16.xpose.msra.mxu0 0
        %3806 = vmatprep.subr.bf16.mxu0 0
        %3807 = vmatpush1.bf16.xpose.msra.mxu0 0
        %3808 = vmatprep.subr.bf16.mxu0 0
        %3809 = vmatpush1.bf16.xpose.msra.mxu0 0
        %3810 = vmatprep.mubr.bf16.mxu0 0
        %3811 = vmatmul.mubr.bf16.gmra.mrb[0].mxu0 %v3773
        %v3812 = vpop.f32.mrb[0].mxu0
        %v3813 = vadd.f32 0.0, %v3812
        %v3814 = vpop.f32.mrb[0].mxu0
        %v3815 = vpop.f32.mrb[0].mxu0
        %v3816 = vpop.f32.mrb[0].mxu0
        %3817 = vdwg.mxu0
        %3818 = vrot.lane.b32.xlu0 %v932, 104
        %v3819 = vpop.permute.xlu0 %3818
        %3820 = vrot.lane.b32.xlu0 %v932, 72
        %v3821 = vpop.permute.xlu0 %3820
        %v3823 = vsel %vm939, %v3819, 0
        %v3826 = vsel %vm939, %v3821, 0
        %3828 = vmatprep.subr.bf16.mxu0 0
        %3829 = vmatpush1.bf16.xpose.msra.mxu0 %v3826
        %3830 = vmatprep.subr.bf16.mxu0 0
        %3831 = vmatpush1.bf16.xpose.msra.mxu0 0
        %3832 = vmatprep.subr.bf16.mxu0 0
        %3833 = vmatpush1.bf16.xpose.msra.mxu0 0
        %3834 = vmatprep.subr.bf16.mxu0 0
        %3835 = vmatpush1.bf16.xpose.msra.mxu0 0
        %3836 = vmatprep.subr.bf16.mxu0 0
        %3837 = vmatpush1.bf16.xpose.msra.mxu0 0
        %3838 = vmatprep.subr.bf16.mxu0 0
        %3839 = vmatpush1.bf16.xpose.msra.mxu0 0
        %3840 = vmatprep.subr.bf16.mxu0 0
        %3841 = vmatpush1.bf16.xpose.msra.mxu0 0
        %3842 = vmatprep.subr.bf16.mxu0 0
        %3843 = vmatpush1.bf16.xpose.msra.mxu0 0
        %3844 = vmatprep.subr.bf16.mxu0 0
        %3845 = vmatpush1.bf16.xpose.msra.mxu0 0
        %3846 = vmatprep.subr.bf16.mxu0 0
        %3847 = vmatpush1.bf16.xpose.msra.mxu0 0
        %3848 = vmatprep.subr.bf16.mxu0 0
        %3849 = vmatpush1.bf16.xpose.msra.mxu0 0
        %3850 = vmatprep.subr.bf16.mxu0 0
        %3851 = vmatpush1.bf16.xpose.msra.mxu0 0
        %3852 = vmatprep.subr.bf16.mxu0 0
        %3853 = vmatpush1.bf16.xpose.msra.mxu0 0
        %3854 = vmatprep.subr.bf16.mxu0 0
        %3855 = vmatpush1.bf16.xpose.msra.mxu0 0
        %3856 = vmatprep.subr.bf16.mxu0 0
        %3857 = vmatpush1.bf16.xpose.msra.mxu0 0
        %3858 = vmatprep.subr.bf16.mxu0 0
        %3859 = vmatpush1.bf16.xpose.msra.mxu0 0
        %3860 = vmatprep.mubr.bf16.mxu0 0
        %3861 = vmatmul.mubr.bf16.gmra.mrb[0].mxu0 %v3823
        %v3862 = vpop.f32.mrb[0].mxu0
        %v3863 = vadd.f32 0.0, %v3862
        %v3864 = vpop.f32.mrb[0].mxu0
        %v3865 = vpop.f32.mrb[0].mxu0
        %v3866 = vpop.f32.mrb[0].mxu0
        %3867 = vdwg.mxu0
        %3868 = vrot.lane.b32.xlu0 %v933, 104
        %v3869 = vpop.permute.xlu0 %3868
        %3870 = vrot.lane.b32.xlu0 %v933, 72
        %v3871 = vpop.permute.xlu0 %3870
        %v3873 = vsel %vm939, %v3869, 0
        %v3876 = vsel %vm939, %v3871, 0
        %3878 = vmatprep.subr.bf16.mxu0 0
        %3879 = vmatpush1.bf16.xpose.msra.mxu0 %v3876
        %3880 = vmatprep.subr.bf16.mxu0 0
        %3881 = vmatpush1.bf16.xpose.msra.mxu0 0
        %3882 = vmatprep.subr.bf16.mxu0 0
        %3883 = vmatpush1.bf16.xpose.msra.mxu0 0
        %3884 = vmatprep.subr.bf16.mxu0 0
        %3885 = vmatpush1.bf16.xpose.msra.mxu0 0
        %3886 = vmatprep.subr.bf16.mxu0 0
        %3887 = vmatpush1.bf16.xpose.msra.mxu0 0
        %3888 = vmatprep.subr.bf16.mxu0 0
        %3889 = vmatpush1.bf16.xpose.msra.mxu0 0
        %3890 = vmatprep.subr.bf16.mxu0 0
        %3891 = vmatpush1.bf16.xpose.msra.mxu0 0
        %3892 = vmatprep.subr.bf16.mxu0 0
        %3893 = vmatpush1.bf16.xpose.msra.mxu0 0
        %3894 = vmatprep.subr.bf16.mxu0 0
        %3895 = vmatpush1.bf16.xpose.msra.mxu0 0
        %3896 = vmatprep.subr.bf16.mxu0 0
        %3897 = vmatpush1.bf16.xpose.msra.mxu0 0
        %3898 = vmatprep.subr.bf16.mxu0 0
        %3899 = vmatpush1.bf16.xpose.msra.mxu0 0
        %3900 = vmatprep.subr.bf16.mxu0 0
        %3901 = vmatpush1.bf16.xpose.msra.mxu0 0
        %3902 = vmatprep.subr.bf16.mxu0 0
        %3903 = vmatpush1.bf16.xpose.msra.mxu0 0
        %3904 = vmatprep.subr.bf16.mxu0 0
        %3905 = vmatpush1.bf16.xpose.msra.mxu0 0
        %3906 = vmatprep.subr.bf16.mxu0 0
        %3907 = vmatpush1.bf16.xpose.msra.mxu0 0
        %3908 = vmatprep.subr.bf16.mxu0 0
        %3909 = vmatpush1.bf16.xpose.msra.mxu0 0
        %3910 = vmatprep.mubr.bf16.mxu0 0
        %3911 = vmatmul.mubr.bf16.gmra.mrb[0].mxu0 %v3873
        %v3912 = vpop.f32.mrb[0].mxu0
        %v3913 = vadd.f32 0.0, %v3912
        %v3914 = vpop.f32.mrb[0].mxu0
        %v3915 = vpop.f32.mrb[0].mxu0
        %v3916 = vpop.f32.mrb[0].mxu0
        %3917 = vdwg.mxu0
        %3918 = vrot.lane.b32.xlu0 %v934, 104
        %v3919 = vpop.permute.xlu0 %3918
        %3920 = vrot.lane.b32.xlu0 %v934, 72
        %v3921 = vpop.permute.xlu0 %3920
        %v3923 = vsel %vm939, %v3919, 0
        %v3926 = vsel %vm939, %v3921, 0
        %3928 = vmatprep.subr.bf16.mxu0 0
        %3929 = vmatpush1.bf16.xpose.msra.mxu0 %v3926
        %3930 = vmatprep.subr.bf16.mxu0 0
        %3931 = vmatpush1.bf16.xpose.msra.mxu0 0
        %3932 = vmatprep.subr.bf16.mxu0 0
        %3933 = vmatpush1.bf16.xpose.msra.mxu0 0
        %3934 = vmatprep.subr.bf16.mxu0 0
        %3935 = vmatpush1.bf16.xpose.msra.mxu0 0
        %3936 = vmatprep.subr.bf16.mxu0 0
        %3937 = vmatpush1.bf16.xpose.msra.mxu0 0
        %3938 = vmatprep.subr.bf16.mxu0 0
        %3939 = vmatpush1.bf16.xpose.msra.mxu0 0
        %3940 = vmatprep.subr.bf16.mxu0 0
        %3941 = vmatpush1.bf16.xpose.msra.mxu0 0
        %3942 = vmatprep.subr.bf16.mxu0 0
        %3943 = vmatpush1.bf16.xpose.msra.mxu0 0
        %3944 = vmatprep.subr.bf16.mxu0 0
        %3945 = vmatpush1.bf16.xpose.msra.mxu0 0
        %3946 = vmatprep.subr.bf16.mxu0 0
        %3947 = vmatpush1.bf16.xpose.msra.mxu0 0
        %3948 = vmatprep.subr.bf16.mxu0 0
        %3949 = vmatpush1.bf16.xpose.msra.mxu0 0
        %3950 = vmatprep.subr.bf16.mxu0 0
        %3951 = vmatpush1.bf16.xpose.msra.mxu0 0
        %3952 = vmatprep.subr.bf16.mxu0 0
        %3953 = vmatpush1.bf16.xpose.msra.mxu0 0
        %3954 = vmatprep.subr.bf16.mxu0 0
        %3955 = vmatpush1.bf16.xpose.msra.mxu0 0
        %3956 = vmatprep.subr.bf16.mxu0 0
        %3957 = vmatpush1.bf16.xpose.msra.mxu0 0
        %3958 = vmatprep.subr.bf16.mxu0 0
        %3959 = vmatpush1.bf16.xpose.msra.mxu0 0
        %3960 = vmatprep.mubr.bf16.mxu0 0
        %3961 = vmatmul.mubr.bf16.gmra.mrb[0].mxu0 %v3923
        %v3962 = vpop.f32.mrb[0].mxu0
        %v3963 = vadd.f32 0.0, %v3962
        %v3964 = vpop.f32.mrb[0].mxu0
        %v3965 = vpop.f32.mrb[0].mxu0
        %v3966 = vpop.f32.mrb[0].mxu0
        %3967 = vdwg.mxu0
        %3968 = vrot.lane.b32.xlu0 %v935, 104
        %v3969 = vpop.permute.xlu0 %3968
        %3970 = vrot.lane.b32.xlu0 %v935, 72
        %v3971 = vpop.permute.xlu0 %3970
        %v3973 = vsel %vm939, %v3969, 0
        %v3976 = vsel %vm939, %v3971, 0
        %3978 = vmatprep.subr.bf16.mxu0 0
        %3979 = vmatpush1.bf16.xpose.msra.mxu0 %v3976
        %3980 = vmatprep.subr.bf16.mxu0 0
        %3981 = vmatpush1.bf16.xpose.msra.mxu0 0
        %3982 = vmatprep.subr.bf16.mxu0 0
        %3983 = vmatpush1.bf16.xpose.msra.mxu0 0
        %3984 = vmatprep.subr.bf16.mxu0 0
        %3985 = vmatpush1.bf16.xpose.msra.mxu0 0
        %3986 = vmatprep.subr.bf16.mxu0 0
        %3987 = vmatpush1.bf16.xpose.msra.mxu0 0
        %3988 = vmatprep.subr.bf16.mxu0 0
        %3989 = vmatpush1.bf16.xpose.msra.mxu0 0
        %3990 = vmatprep.subr.bf16.mxu0 0
        %3991 = vmatpush1.bf16.xpose.msra.mxu0 0
        %3992 = vmatprep.subr.bf16.mxu0 0
        %3993 = vmatpush1.bf16.xpose.msra.mxu0 0
        %3994 = vmatprep.subr.bf16.mxu0 0
        %3995 = vmatpush1.bf16.xpose.msra.mxu0 0
        %3996 = vmatprep.subr.bf16.mxu0 0
        %3997 = vmatpush1.bf16.xpose.msra.mxu0 0
        %3998 = vmatprep.subr.bf16.mxu0 0
        %3999 = vmatpush1.bf16.xpose.msra.mxu0 0
        %4000 = vmatprep.subr.bf16.mxu0 0
        %4001 = vmatpush1.bf16.xpose.msra.mxu0 0
        %4002 = vmatprep.subr.bf16.mxu0 0
        %4003 = vmatpush1.bf16.xpose.msra.mxu0 0
        %4004 = vmatprep.subr.bf16.mxu0 0
        %4005 = vmatpush1.bf16.xpose.msra.mxu0 0
        %4006 = vmatprep.subr.bf16.mxu0 0
        %4007 = vmatpush1.bf16.xpose.msra.mxu0 0
        %4008 = vmatprep.subr.bf16.mxu0 0
        %4009 = vmatpush1.bf16.xpose.msra.mxu0 0
        %4010 = vmatprep.mubr.bf16.mxu0 0
        %4011 = vmatmul.mubr.bf16.gmra.mrb[0].mxu0 %v3973
        %v4012 = vpop.f32.mrb[0].mxu0
        %v4013 = vadd.f32 0.0, %v4012
        %v4014 = vpop.f32.mrb[0].mxu0
        %v4015 = vpop.f32.mrb[0].mxu0
        %v4016 = vpop.f32.mrb[0].mxu0
        %4017 = vdwg.mxu0
        %v4018 = vmul.f32 %v3663, 0.35355338
        %v4019 = vmul.f32 %v3713, 0.35355338
        %v4020 = vmul.f32 %v3763, 0.35355338
        %v4021 = vmul.f32 %v3813, 0.35355338
        %v4022 = vmul.f32 %v3863, 0.35355338
        %v4023 = vmul.f32 %v3913, 0.35355338
        %v4024 = vmul.f32 %v3963, 0.35355338
        %v4025 = vmul.f32 %v4013, 0.35355338
        %v4026 = vadd.f32 %v4018, %v927
        %v4027 = vadd.f32 %v4019, %v927
        %v4028 = vadd.f32 %v4020, %v927
        %v4029 = vadd.f32 %v4021, %v927
        %v4030 = vadd.f32 %v4022, %v927
        %v4031 = vadd.f32 %v4023, %v927
        %v4032 = vadd.f32 %v4024, %v927
        %v4033 = vadd.f32 %v4025, %v927
        %v4034 = vsel %vm939, %v4026, -inf
        %4035 = vmax.xlane.f32.xlu0 %v4034
        %v4036 = vpop.xlane.xlu0 %4035
        %v4037 = vsel %vm939, %v4027, -inf
        %4038 = vmax.xlane.f32.xlu0 %v4037
        %v4039 = vpop.xlane.xlu0 %4038
        %v4040 = vsel %vm939, %v4028, -inf
        %4041 = vmax.xlane.f32.xlu0 %v4040
        %v4042 = vpop.xlane.xlu0 %4041
        %v4043 = vsel %vm939, %v4029, -inf
        %4044 = vmax.xlane.f32.xlu0 %v4043
        %v4045 = vpop.xlane.xlu0 %4044
        %v4046 = vsel %vm939, %v4030, -inf
        %4047 = vmax.xlane.f32.xlu0 %v4046
        %v4048 = vpop.xlane.xlu0 %4047
        %v4049 = vsel %vm939, %v4031, -inf
        %4050 = vmax.xlane.f32.xlu0 %v4049
        %v4051 = vpop.xlane.xlu0 %4050
        %v4052 = vsel %vm939, %v4032, -inf
        %4053 = vmax.xlane.f32.xlu0 %v4052
        %v4054 = vpop.xlane.xlu0 %4053
        %v4055 = vsel %vm939, %v4033, -inf
        %4056 = vmax.xlane.f32.xlu0 %v4055
        %v4057 = vpop.xlane.xlu0 %4056
        %v4058 = vsub.f32 %v4026, %v4036
        %v4059 = vsub.f32 %v4027, %v4039
        %v4060 = vsub.f32 %v4028, %v4042
        %v4061 = vsub.f32 %v4029, %v4045
        %v4062 = vsub.f32 %v4030, %v4048
        %v4063 = vsub.f32 %v4031, %v4051
        %v4064 = vsub.f32 %v4032, %v4054
        %v4065 = vsub.f32 %v4033, %v4057
        %v4066 = vmul.f32 %v4058, 1.442695
        %v4067 = vpow.pop %v4066
        %v4068 = vmul.f32 %v4059, 1.442695
        %v4069 = vpow.pop %v4068
        %v4070 = vmul.f32 %v4060, 1.442695
        %v4071 = vpow.pop %v4070
        %v4072 = vmul.f32 %v4061, 1.442695
        %v4073 = vpow.pop %v4072
        %v4074 = vmul.f32 %v4062, 1.442695
        %v4075 = vpow.pop %v4074
        %v4076 = vmul.f32 %v4063, 1.442695
        %v4077 = vpow.pop %v4076
        %v4078 = vmul.f32 %v4064, 1.442695
        %v4079 = vpow.pop %v4078
        %v4080 = vmul.f32 %v4065, 1.442695
        %v4081 = vpow.pop %v4080
        %v4082 = vsel %vm939, %v4067, 0.0
        %4083 = vadd.xlane.f32.xlu0 %v4082
        %v4084 = vpop.xlane.xlu0 %4083
        %v4085 = vsel %vm939, %v4069, 0.0
        %4086 = vadd.xlane.f32.xlu0 %v4085
        %v4087 = vpop.xlane.xlu0 %4086
        %v4088 = vsel %vm939, %v4071, 0.0
        %4089 = vadd.xlane.f32.xlu0 %v4088
        %v4090 = vpop.xlane.xlu0 %4089
        %v4091 = vsel %vm939, %v4073, 0.0
        %4092 = vadd.xlane.f32.xlu0 %v4091
        %v4093 = vpop.xlane.xlu0 %4092
        %v4094 = vsel %vm939, %v4075, 0.0
        %4095 = vadd.xlane.f32.xlu0 %v4094
        %v4096 = vpop.xlane.xlu0 %4095
        %v4097 = vsel %vm939, %v4077, 0.0
        %4098 = vadd.xlane.f32.xlu0 %v4097
        %v4099 = vpop.xlane.xlu0 %4098
        %v4100 = vsel %vm939, %v4079, 0.0
        %4101 = vadd.xlane.f32.xlu0 %v4100
        %v4102 = vpop.xlane.xlu0 %4101
        %v4103 = vsel %vm939, %v4081, 0.0
        %4104 = vadd.xlane.f32.xlu0 %v4103
        %v4105 = vpop.xlane.xlu0 %4104
        %v4106 = vrcp.pop %v4084
        %v4107 = vrcp.pop %v4087
        %v4108 = vrcp.pop %v4090
        %v4109 = vrcp.pop %v4093
        %v4110 = vrcp.pop %v4096
        %v4111 = vrcp.pop %v4099
        %v4112 = vrcp.pop %v4102
        %v4113 = vrcp.pop %v4105
        %v4114 = vmul.f32 %v4067, %v4106
        %v4115 = vmul.f32 %v4069, %v4107
        %v4116 = vmul.f32 %v4071, %v4108
        %v4117 = vmul.f32 %v4073, %v4109
        %v4118 = vmul.f32 %v4075, %v4110
        %v4119 = vmul.f32 %v4077, %v4111
        %v4120 = vmul.f32 %v4079, %v4112
        %v4121 = vmul.f32 %v4081, %v4113
        %v4122 = vpack.c.bf16 %v4114, %v4114
        %v4123 = vpack.c.bf16 %v4115, %v4115
        %v4124 = vpack.c.bf16 %v4116, %v4116
        %v4125 = vpack.c.bf16 %v4117, %v4117
        %v4126 = vpack.c.bf16 %v4118, %v4118
        %v4127 = vpack.c.bf16 %v4119, %v4119
        %v4128 = vpack.c.bf16 %v4120, %v4120
        %v4129 = vpack.c.bf16 %v4121, %v4121
        %4130 = vrot.lane.b32.xlu0 %v928, 40
        %v4131 = vpop.permute.xlu0 %4130
        %v4133 = vsel %vm939, %v4122, 0
        %v4136 = vsel %vm1446, %v4131, 0
        %4138 = vmatprep.subr.bf16.mxu0 0
        %4139 = vmatpush1.bf16.msra.mxu0 %v4136
        %4140 = vmatprep.subr.bf16.mxu0 0
        %4141 = vmatpush1.bf16.msra.mxu0 0
        %4142 = vmatprep.subr.bf16.mxu0 0
        %4143 = vmatpush1.bf16.msra.mxu0 0
        %4144 = vmatprep.subr.bf16.mxu0 0
        %4145 = vmatpush1.bf16.msra.mxu0 0
        %4146 = vmatprep.subr.bf16.mxu0 0
        %4147 = vmatpush1.bf16.msra.mxu0 0
        %4148 = vmatprep.subr.bf16.mxu0 0
        %4149 = vmatpush1.bf16.msra.mxu0 0
        %4150 = vmatprep.subr.bf16.mxu0 0
        %4151 = vmatpush1.bf16.msra.mxu0 0
        %4152 = vmatprep.subr.bf16.mxu0 0
        %4153 = vmatpush1.bf16.msra.mxu0 0
        %4154 = vmatprep.subr.bf16.mxu0 0
        %4155 = vmatpush1.bf16.msra.mxu0 0
        %4156 = vmatprep.subr.bf16.mxu0 0
        %4157 = vmatpush1.bf16.msra.mxu0 0
        %4158 = vmatprep.subr.bf16.mxu0 0
        %4159 = vmatpush1.bf16.msra.mxu0 0
        %4160 = vmatprep.subr.bf16.mxu0 0
        %4161 = vmatpush1.bf16.msra.mxu0 0
        %4162 = vmatprep.subr.bf16.mxu0 0
        %4163 = vmatpush1.bf16.msra.mxu0 0
        %4164 = vmatprep.subr.bf16.mxu0 0
        %4165 = vmatpush1.bf16.msra.mxu0 0
        %4166 = vmatprep.subr.bf16.mxu0 0
        %4167 = vmatpush1.bf16.msra.mxu0 0
        %4168 = vmatprep.subr.bf16.mxu0 0
        %4169 = vmatpush1.bf16.msra.mxu0 0
        %4170 = vmatprep.mubr.bf16.mxu0 0
        %4171 = vmatmul.mubr.bf16.gmra.mrb[0].mxu0 %v4133
        %v4172 = vpop.f32.mrb[0].mxu0
        %v4173 = vadd.f32 0.0, %v4172
        %v4174 = vpop.f32.mrb[0].mxu0
        %v4175 = vpop.f32.mrb[0].mxu0
        %v4176 = vpop.f32.mrb[0].mxu0
        %4177 = vdwg.mxu0
        %4178 = vrot.lane.b32.xlu0 %v929, 40
        %v4179 = vpop.permute.xlu0 %4178
        %v4181 = vsel %vm939, %v4123, 0
        %v4184 = vsel %vm1446, %v4179, 0
        %4186 = vmatprep.subr.bf16.mxu0 0
        %4187 = vmatpush1.bf16.msra.mxu0 %v4184
        %4188 = vmatprep.subr.bf16.mxu0 0
        %4189 = vmatpush1.bf16.msra.mxu0 0
        %4190 = vmatprep.subr.bf16.mxu0 0
        %4191 = vmatpush1.bf16.msra.mxu0 0
        %4192 = vmatprep.subr.bf16.mxu0 0
        %4193 = vmatpush1.bf16.msra.mxu0 0
        %4194 = vmatprep.subr.bf16.mxu0 0
        %4195 = vmatpush1.bf16.msra.mxu0 0
        %4196 = vmatprep.subr.bf16.mxu0 0
        %4197 = vmatpush1.bf16.msra.mxu0 0
        %4198 = vmatprep.subr.bf16.mxu0 0
        %4199 = vmatpush1.bf16.msra.mxu0 0
        %4200 = vmatprep.subr.bf16.mxu0 0
        %4201 = vmatpush1.bf16.msra.mxu0 0
        %4202 = vmatprep.subr.bf16.mxu0 0
        %4203 = vmatpush1.bf16.msra.mxu0 0
        %4204 = vmatprep.subr.bf16.mxu0 0
        %4205 = vmatpush1.bf16.msra.mxu0 0
        %4206 = vmatprep.subr.bf16.mxu0 0
        %4207 = vmatpush1.bf16.msra.mxu0 0
        %4208 = vmatprep.subr.bf16.mxu0 0
        %4209 = vmatpush1.bf16.msra.mxu0 0
        %4210 = vmatprep.subr.bf16.mxu0 0
        %4211 = vmatpush1.bf16.msra.mxu0 0
        %4212 = vmatprep.subr.bf16.mxu0 0
        %4213 = vmatpush1.bf16.msra.mxu0 0
        %4214 = vmatprep.subr.bf16.mxu0 0
        %4215 = vmatpush1.bf16.msra.mxu0 0
        %4216 = vmatprep.subr.bf16.mxu0 0
        %4217 = vmatpush1.bf16.msra.mxu0 0
        %4218 = vmatprep.mubr.bf16.mxu0 0
        %4219 = vmatmul.mubr.bf16.gmra.mrb[0].mxu0 %v4181
        %v4220 = vpop.f32.mrb[0].mxu0
        %v4221 = vadd.f32 0.0, %v4220
        %v4222 = vpop.f32.mrb[0].mxu0
        %v4223 = vpop.f32.mrb[0].mxu0
        %v4224 = vpop.f32.mrb[0].mxu0
        %4225 = vdwg.mxu0
        %4226 = vrot.lane.b32.xlu0 %v930, 40
        %v4227 = vpop.permute.xlu0 %4226
        %v4229 = vsel %vm939, %v4124, 0
        %v4232 = vsel %vm1446, %v4227, 0
        %4234 = vmatprep.subr.bf16.mxu0 0
        %4235 = vmatpush1.bf16.msra.mxu0 %v4232
        %4236 = vmatprep.subr.bf16.mxu0 0
        %4237 = vmatpush1.bf16.msra.mxu0 0
        %4238 = vmatprep.subr.bf16.mxu0 0
        %4239 = vmatpush1.bf16.msra.mxu0 0
        %4240 = vmatprep.subr.bf16.mxu0 0
        %4241 = vmatpush1.bf16.msra.mxu0 0
        %4242 = vmatprep.subr.bf16.mxu0 0
        %4243 = vmatpush1.bf16.msra.mxu0 0
        %4244 = vmatprep.subr.bf16.mxu0 0
        %4245 = vmatpush1.bf16.msra.mxu0 0
        %4246 = vmatprep.subr.bf16.mxu0 0
        %4247 = vmatpush1.bf16.msra.mxu0 0
        %4248 = vmatprep.subr.bf16.mxu0 0
        %4249 = vmatpush1.bf16.msra.mxu0 0
        %4250 = vmatprep.subr.bf16.mxu0 0
        %4251 = vmatpush1.bf16.msra.mxu0 0
        %4252 = vmatprep.subr.bf16.mxu0 0
        %4253 = vmatpush1.bf16.msra.mxu0 0
        %4254 = vmatprep.subr.bf16.mxu0 0
        %4255 = vmatpush1.bf16.msra.mxu0 0
        %4256 = vmatprep.subr.bf16.mxu0 0
        %4257 = vmatpush1.bf16.msra.mxu0 0
        %4258 = vmatprep.subr.bf16.mxu0 0
        %4259 = vmatpush1.bf16.msra.mxu0 0
        %4260 = vmatprep.subr.bf16.mxu0 0
        %4261 = vmatpush1.bf16.msra.mxu0 0
        %4262 = vmatprep.subr.bf16.mxu0 0
        %4263 = vmatpush1.bf16.msra.mxu0 0
        %4264 = vmatprep.subr.bf16.mxu0 0
        %4265 = vmatpush1.bf16.msra.mxu0 0
        %4266 = vmatprep.mubr.bf16.mxu0 0
        %4267 = vmatmul.mubr.bf16.gmra.mrb[0].mxu0 %v4229
        %v4268 = vpop.f32.mrb[0].mxu0
        %v4269 = vadd.f32 0.0, %v4268
        %v4270 = vpop.f32.mrb[0].mxu0
        %v4271 = vpop.f32.mrb[0].mxu0
        %v4272 = vpop.f32.mrb[0].mxu0
        %4273 = vdwg.mxu0
        %4274 = vrot.lane.b32.xlu0 %v931, 40
        %v4275 = vpop.permute.xlu0 %4274
        %v4277 = vsel %vm939, %v4125, 0
        %v4280 = vsel %vm1446, %v4275, 0
        %4282 = vmatprep.subr.bf16.mxu0 0
        %4283 = vmatpush1.bf16.msra.mxu0 %v4280
        %4284 = vmatprep.subr.bf16.mxu0 0
        %4285 = vmatpush1.bf16.msra.mxu0 0
        %4286 = vmatprep.subr.bf16.mxu0 0
        %4287 = vmatpush1.bf16.msra.mxu0 0
        %4288 = vmatprep.subr.bf16.mxu0 0
        %4289 = vmatpush1.bf16.msra.mxu0 0
        %4290 = vmatprep.subr.bf16.mxu0 0
        %4291 = vmatpush1.bf16.msra.mxu0 0
        %4292 = vmatprep.subr.bf16.mxu0 0
        %4293 = vmatpush1.bf16.msra.mxu0 0
        %4294 = vmatprep.subr.bf16.mxu0 0
        %4295 = vmatpush1.bf16.msra.mxu0 0
        %4296 = vmatprep.subr.bf16.mxu0 0
        %4297 = vmatpush1.bf16.msra.mxu0 0
        %4298 = vmatprep.subr.bf16.mxu0 0
        %4299 = vmatpush1.bf16.msra.mxu0 0
        %4300 = vmatprep.subr.bf16.mxu0 0
        %4301 = vmatpush1.bf16.msra.mxu0 0
        %4302 = vmatprep.subr.bf16.mxu0 0
        %4303 = vmatpush1.bf16.msra.mxu0 0
        %4304 = vmatprep.subr.bf16.mxu0 0
        %4305 = vmatpush1.bf16.msra.mxu0 0
        %4306 = vmatprep.subr.bf16.mxu0 0
        %4307 = vmatpush1.bf16.msra.mxu0 0
        %4308 = vmatprep.subr.bf16.mxu0 0
        %4309 = vmatpush1.bf16.msra.mxu0 0
        %4310 = vmatprep.subr.bf16.mxu0 0
        %4311 = vmatpush1.bf16.msra.mxu0 0
        %4312 = vmatprep.subr.bf16.mxu0 0
        %4313 = vmatpush1.bf16.msra.mxu0 0
        %4314 = vmatprep.mubr.bf16.mxu0 0
        %4315 = vmatmul.mubr.bf16.gmra.mrb[0].mxu0 %v4277
        %v4316 = vpop.f32.mrb[0].mxu0
        %v4317 = vadd.f32 0.0, %v4316
        %v4318 = vpop.f32.mrb[0].mxu0
        %v4319 = vpop.f32.mrb[0].mxu0
        %v4320 = vpop.f32.mrb[0].mxu0
        %4321 = vdwg.mxu0
        %4322 = vrot.lane.b32.xlu0 %v932, 40
        %v4323 = vpop.permute.xlu0 %4322
        %v4325 = vsel %vm939, %v4126, 0
        %v4328 = vsel %vm1446, %v4323, 0
        %4330 = vmatprep.subr.bf16.mxu0 0
        %4331 = vmatpush1.bf16.msra.mxu0 %v4328
        %4332 = vmatprep.subr.bf16.mxu0 0
        %4333 = vmatpush1.bf16.msra.mxu0 0
        %4334 = vmatprep.subr.bf16.mxu0 0
        %4335 = vmatpush1.bf16.msra.mxu0 0
        %4336 = vmatprep.subr.bf16.mxu0 0
        %4337 = vmatpush1.bf16.msra.mxu0 0
        %4338 = vmatprep.subr.bf16.mxu0 0
        %4339 = vmatpush1.bf16.msra.mxu0 0
        %4340 = vmatprep.subr.bf16.mxu0 0
        %4341 = vmatpush1.bf16.msra.mxu0 0
        %4342 = vmatprep.subr.bf16.mxu0 0
        %4343 = vmatpush1.bf16.msra.mxu0 0
        %4344 = vmatprep.subr.bf16.mxu0 0
        %4345 = vmatpush1.bf16.msra.mxu0 0
        %4346 = vmatprep.subr.bf16.mxu0 0
        %4347 = vmatpush1.bf16.msra.mxu0 0
        %4348 = vmatprep.subr.bf16.mxu0 0
        %4349 = vmatpush1.bf16.msra.mxu0 0
        %4350 = vmatprep.subr.bf16.mxu0 0
        %4351 = vmatpush1.bf16.msra.mxu0 0
        %4352 = vmatprep.subr.bf16.mxu0 0
        %4353 = vmatpush1.bf16.msra.mxu0 0
        %4354 = vmatprep.subr.bf16.mxu0 0
        %4355 = vmatpush1.bf16.msra.mxu0 0
        %4356 = vmatprep.subr.bf16.mxu0 0
        %4357 = vmatpush1.bf16.msra.mxu0 0
        %4358 = vmatprep.subr.bf16.mxu0 0
        %4359 = vmatpush1.bf16.msra.mxu0 0
        %4360 = vmatprep.subr.bf16.mxu0 0
        %4361 = vmatpush1.bf16.msra.mxu0 0
        %4362 = vmatprep.mubr.bf16.mxu0 0
        %4363 = vmatmul.mubr.bf16.gmra.mrb[0].mxu0 %v4325
        %v4364 = vpop.f32.mrb[0].mxu0
        %v4365 = vadd.f32 0.0, %v4364
        %v4366 = vpop.f32.mrb[0].mxu0
        %v4367 = vpop.f32.mrb[0].mxu0
        %v4368 = vpop.f32.mrb[0].mxu0
        %4369 = vdwg.mxu0
        %4370 = vrot.lane.b32.xlu0 %v933, 40
        %v4371 = vpop.permute.xlu0 %4370
        %v4373 = vsel %vm939, %v4127, 0
        %v4376 = vsel %vm1446, %v4371, 0
        %4378 = vmatprep.subr.bf16.mxu0 0
        %4379 = vmatpush1.bf16.msra.mxu0 %v4376
        %4380 = vmatprep.subr.bf16.mxu0 0
        %4381 = vmatpush1.bf16.msra.mxu0 0
        %4382 = vmatprep.subr.bf16.mxu0 0
        %4383 = vmatpush1.bf16.msra.mxu0 0
        %4384 = vmatprep.subr.bf16.mxu0 0
        %4385 = vmatpush1.bf16.msra.mxu0 0
        %4386 = vmatprep.subr.bf16.mxu0 0
        %4387 = vmatpush1.bf16.msra.mxu0 0
        %4388 = vmatprep.subr.bf16.mxu0 0
        %4389 = vmatpush1.bf16.msra.mxu0 0
        %4390 = vmatprep.subr.bf16.mxu0 0
        %4391 = vmatpush1.bf16.msra.mxu0 0
        %4392 = vmatprep.subr.bf16.mxu0 0
        %4393 = vmatpush1.bf16.msra.mxu0 0
        %4394 = vmatprep.subr.bf16.mxu0 0
        %4395 = vmatpush1.bf16.msra.mxu0 0
        %4396 = vmatprep.subr.bf16.mxu0 0
        %4397 = vmatpush1.bf16.msra.mxu0 0
        %4398 = vmatprep.subr.bf16.mxu0 0
        %4399 = vmatpush1.bf16.msra.mxu0 0
        %4400 = vmatprep.subr.bf16.mxu0 0
        %4401 = vmatpush1.bf16.msra.mxu0 0
        %4402 = vmatprep.subr.bf16.mxu0 0
        %4403 = vmatpush1.bf16.msra.mxu0 0
        %4404 = vmatprep.subr.bf16.mxu0 0
        %4405 = vmatpush1.bf16.msra.mxu0 0
        %4406 = vmatprep.subr.bf16.mxu0 0
        %4407 = vmatpush1.bf16.msra.mxu0 0
        %4408 = vmatprep.subr.bf16.mxu0 0
        %4409 = vmatpush1.bf16.msra.mxu0 0
        %4410 = vmatprep.mubr.bf16.mxu0 0
        %4411 = vmatmul.mubr.bf16.gmra.mrb[0].mxu0 %v4373
        %v4412 = vpop.f32.mrb[0].mxu0
        %v4413 = vadd.f32 0.0, %v4412
        %v4414 = vpop.f32.mrb[0].mxu0
        %v4415 = vpop.f32.mrb[0].mxu0
        %v4416 = vpop.f32.mrb[0].mxu0
        %4417 = vdwg.mxu0
        %4418 = vrot.lane.b32.xlu0 %v934, 40
        %v4419 = vpop.permute.xlu0 %4418
        %v4421 = vsel %vm939, %v4128, 0
        %v4424 = vsel %vm1446, %v4419, 0
        %4426 = vmatprep.subr.bf16.mxu0 0
        %4427 = vmatpush1.bf16.msra.mxu0 %v4424
        %4428 = vmatprep.subr.bf16.mxu0 0
        %4429 = vmatpush1.bf16.msra.mxu0 0
        %4430 = vmatprep.subr.bf16.mxu0 0
        %4431 = vmatpush1.bf16.msra.mxu0 0
        %4432 = vmatprep.subr.bf16.mxu0 0
        %4433 = vmatpush1.bf16.msra.mxu0 0
        %4434 = vmatprep.subr.bf16.mxu0 0
        %4435 = vmatpush1.bf16.msra.mxu0 0
        %4436 = vmatprep.subr.bf16.mxu0 0
        %4437 = vmatpush1.bf16.msra.mxu0 0
        %4438 = vmatprep.subr.bf16.mxu0 0
        %4439 = vmatpush1.bf16.msra.mxu0 0
        %4440 = vmatprep.subr.bf16.mxu0 0
        %4441 = vmatpush1.bf16.msra.mxu0 0
        %4442 = vmatprep.subr.bf16.mxu0 0
        %4443 = vmatpush1.bf16.msra.mxu0 0
        %4444 = vmatprep.subr.bf16.mxu0 0
        %4445 = vmatpush1.bf16.msra.mxu0 0
        %4446 = vmatprep.subr.bf16.mxu0 0
        %4447 = vmatpush1.bf16.msra.mxu0 0
        %4448 = vmatprep.subr.bf16.mxu0 0
        %4449 = vmatpush1.bf16.msra.mxu0 0
        %4450 = vmatprep.subr.bf16.mxu0 0
        %4451 = vmatpush1.bf16.msra.mxu0 0
        %4452 = vmatprep.subr.bf16.mxu0 0
        %4453 = vmatpush1.bf16.msra.mxu0 0
        %4454 = vmatprep.subr.bf16.mxu0 0
        %4455 = vmatpush1.bf16.msra.mxu0 0
        %4456 = vmatprep.subr.bf16.mxu0 0
        %4457 = vmatpush1.bf16.msra.mxu0 0
        %4458 = vmatprep.mubr.bf16.mxu0 0
        %4459 = vmatmul.mubr.bf16.gmra.mrb[0].mxu0 %v4421
        %v4460 = vpop.f32.mrb[0].mxu0
        %v4461 = vadd.f32 0.0, %v4460
        %v4462 = vpop.f32.mrb[0].mxu0
        %v4463 = vpop.f32.mrb[0].mxu0
        %v4464 = vpop.f32.mrb[0].mxu0
        %4465 = vdwg.mxu0
        %4466 = vrot.lane.b32.xlu0 %v935, 40
        %v4467 = vpop.permute.xlu0 %4466
        %v4469 = vsel %vm939, %v4129, 0
        %v4472 = vsel %vm1446, %v4467, 0
        %4474 = vmatprep.subr.bf16.mxu0 0
        %4475 = vmatpush1.bf16.msra.mxu0 %v4472
        %4476 = vmatprep.subr.bf16.mxu0 0
        %4477 = vmatpush1.bf16.msra.mxu0 0
        %4478 = vmatprep.subr.bf16.mxu0 0
        %4479 = vmatpush1.bf16.msra.mxu0 0
        %4480 = vmatprep.subr.bf16.mxu0 0
        %4481 = vmatpush1.bf16.msra.mxu0 0
        %4482 = vmatprep.subr.bf16.mxu0 0
        %4483 = vmatpush1.bf16.msra.mxu0 0
        %4484 = vmatprep.subr.bf16.mxu0 0
        %4485 = vmatpush1.bf16.msra.mxu0 0
        %4486 = vmatprep.subr.bf16.mxu0 0
        %4487 = vmatpush1.bf16.msra.mxu0 0
        %4488 = vmatprep.subr.bf16.mxu0 0
        %4489 = vmatpush1.bf16.msra.mxu0 0
        %4490 = vmatprep.subr.bf16.mxu0 0
        %4491 = vmatpush1.bf16.msra.mxu0 0
        %4492 = vmatprep.subr.bf16.mxu0 0
        %4493 = vmatpush1.bf16.msra.mxu0 0
        %4494 = vmatprep.subr.bf16.mxu0 0
        %4495 = vmatpush1.bf16.msra.mxu0 0
        %4496 = vmatprep.subr.bf16.mxu0 0
        %4497 = vmatpush1.bf16.msra.mxu0 0
        %4498 = vmatprep.subr.bf16.mxu0 0
        %4499 = vmatpush1.bf16.msra.mxu0 0
        %4500 = vmatprep.subr.bf16.mxu0 0
        %4501 = vmatpush1.bf16.msra.mxu0 0
        %4502 = vmatprep.subr.bf16.mxu0 0
        %4503 = vmatpush1.bf16.msra.mxu0 0
        %4504 = vmatprep.subr.bf16.mxu0 0
        %4505 = vmatpush1.bf16.msra.mxu0 0
        %4506 = vmatprep.mubr.bf16.mxu0 0
        %4507 = vmatmul.mubr.bf16.gmra.mrb[0].mxu0 %v4469
        %v4508 = vpop.f32.mrb[0].mxu0
        %v4509 = vadd.f32 0.0, %v4508
        %v4510 = vpop.f32.mrb[0].mxu0
        %v4511 = vpop.f32.mrb[0].mxu0
        %v4512 = vpop.f32.mrb[0].mxu0
        %4513 = vdwg.mxu0
        %4522 = vrot.lane.b32.xlu0 %v2381, 8
        %v4523 = vpop.permute.xlu0 %4522
        %4524 = vrot.lane.b32.xlu0 %v2429, 8
        %v4525 = vpop.permute.xlu0 %4524
        %4526 = vrot.lane.b32.xlu0 %v2477, 8
        %v4527 = vpop.permute.xlu0 %4526
        %4528 = vrot.lane.b32.xlu0 %v2525, 8
        %v4529 = vpop.permute.xlu0 %4528
        %4530 = vrot.lane.b32.xlu0 %v2573, 8
        %v4531 = vpop.permute.xlu0 %4530
        %4532 = vrot.lane.b32.xlu0 %v2621, 8
        %v4533 = vpop.permute.xlu0 %4532
        %4534 = vrot.lane.b32.xlu0 %v2669, 8
        %v4535 = vpop.permute.xlu0 %4534
        %4536 = vrot.lane.b32.xlu0 %v2717, 8
        %v4537 = vpop.permute.xlu0 %4536
        %4554 = vrot.lane.b32.xlu0 %v3277, 16
        %v4555 = vpop.permute.xlu0 %4554
        %4556 = vrot.lane.b32.xlu0 %v3325, 16
        %v4557 = vpop.permute.xlu0 %4556
        %4558 = vrot.lane.b32.xlu0 %v3373, 16
        %v4559 = vpop.permute.xlu0 %4558
        %4560 = vrot.lane.b32.xlu0 %v3421, 16
        %v4561 = vpop.permute.xlu0 %4560
        %4562 = vrot.lane.b32.xlu0 %v3469, 16
        %v4563 = vpop.permute.xlu0 %4562
        %4564 = vrot.lane.b32.xlu0 %v3517, 16
        %v4565 = vpop.permute.xlu0 %4564
        %4566 = vrot.lane.b32.xlu0 %v3565, 16
        %v4567 = vpop.permute.xlu0 %4566
        %4568 = vrot.lane.b32.xlu0 %v3613, 16
        %v4569 = vpop.permute.xlu0 %4568
        %4586 = vrot.lane.b32.xlu0 %v4173, 24
        %v4587 = vpop.permute.xlu0 %4586
        %4588 = vrot.lane.b32.xlu0 %v4221, 24
        %v4589 = vpop.permute.xlu0 %4588
        %4590 = vrot.lane.b32.xlu0 %v4269, 24
        %v4591 = vpop.permute.xlu0 %4590
        %4592 = vrot.lane.b32.xlu0 %v4317, 24
        %v4593 = vpop.permute.xlu0 %4592
        %4594 = vrot.lane.b32.xlu0 %v4365, 24
        %v4595 = vpop.permute.xlu0 %4594
        %4596 = vrot.lane.b32.xlu0 %v4413, 24
        %v4597 = vpop.permute.xlu0 %4596
        %4598 = vrot.lane.b32.xlu0 %v4461, 24
        %v4599 = vpop.permute.xlu0 %4598
        %4600 = vrot.lane.b32.xlu0 %v4509, 24
        %v4601 = vpop.permute.xlu0 %4600
        %v4610 = vsel %vm939, %v1485, %v4523
        %v4611 = vsel %vm939, %v1533, %v4525
        %v4612 = vsel %vm939, %v1581, %v4527
        %v4613 = vsel %vm939, %v1629, %v4529
        %v4614 = vsel %vm939, %v1677, %v4531
        %v4615 = vsel %vm939, %v1725, %v4533
        %v4616 = vsel %vm939, %v1773, %v4535
        %v4617 = vsel %vm939, %v1821, %v4537
        %vm4618 = vcmask 130048
        %v4619 = vsel %vm4618, %v4610, %v4555
        %v4620 = vsel %vm4618, %v4611, %v4557
        %v4621 = vsel %vm4618, %v4612, %v4559
        %v4622 = vsel %vm4618, %v4613, %v4561
        %v4623 = vsel %vm4618, %v4614, %v4563
        %v4624 = vsel %vm4618, %v4615, %v4565
        %v4625 = vsel %vm4618, %v4616, %v4567
        %v4626 = vsel %vm4618, %v4617, %v4569
        %vm4627 = vcmask 195584
        %v4628 = vsel %vm4627, %v4619, %v4587
        %v4629 = vsel %vm4627, %v4620, %v4589
        %v4630 = vsel %vm4627, %v4621, %v4591
        %v4631 = vsel %vm4627, %v4622, %v4593
        %v4632 = vsel %vm4627, %v4623, %v4595
        %v4633 = vsel %vm4627, %v4624, %v4597
        %v4634 = vsel %vm4627, %v4625, %v4599
        %v4635 = vsel %vm4627, %v4626, %v4601
        %v4636 = vpack.c.bf16 %v4629, %v4628
        %v4637 = vpack.c.bf16 %v4631, %v4630
        %v4638 = vpack.c.bf16 %v4633, %v4632
        %v4639 = vpack.c.bf16 %v4635, %v4634
        %v4640 = vld [vmem:[%s613] sm:$0xf]
        %v4641 = vld [vmem:[%s613 + $0x4] sm:$0xf]
        %v4642 = vld [vmem:[%s613 + $0x8] sm:$0xf]
        %v4643 = vld [vmem:[%s613 + $0xc] sm:$0xf]
        %v4644 = vld [vmem:[%s629] sm:$0x1]
        %v4646 = vlaneseq
        %v4647 = vshrl.u32 %v4646, 7
        %v4648 = vsub.s32 0, %v4647
        %v4649 = vrot.slane %v4644, %v4648
        %v4655 = vunpack.c.l.b16 %v4640
        %v4656 = vunpack.c.l.b16 %v4641
        %v4657 = vunpack.c.l.b16 %v4642
        %v4658 = vunpack.c.l.b16 %v4643
        %v4659 = vpack.c.b16 %v4656, %v4655
        %v4660 = vpack.c.b16 %v4658, %v4657
        %v4664 = vsel %vm688, %v4636, 0
        %v4667 = vsel %vm688, %v4637, 0
        %v4670 = vsel %vm688, %v4638, 0
        %v4673 = vsel %vm688, %v4639, 0
        %4675 = vmatprep.subr.bf16.mxu0 0
        %4676 = vmatpush1.bf16.msra.mxu0 %v4659
        %4677 = vmatprep.subr.bf16.mxu0 0
        %4678 = vmatpush1.bf16.msra.mxu0 %v4660
        %4679 = vmatprep.subr.bf16.mxu0 0
        %4680 = vmatpush1.bf16.msra.mxu0 0
        %4681 = vmatprep.subr.bf16.mxu0 0
        %4682 = vmatpush1.bf16.msra.mxu0 0
        %4683 = vmatprep.subr.bf16.mxu0 0
        %4684 = vmatpush1.bf16.msra.mxu0 0
        %4685 = vmatprep.subr.bf16.mxu0 0
        %4686 = vmatpush1.bf16.msra.mxu0 0
        %4687 = vmatprep.subr.bf16.mxu0 0
        %4688 = vmatpush1.bf16.msra.mxu0 0
        %4689 = vmatprep.subr.bf16.mxu0 0
        %4690 = vmatpush1.bf16.msra.mxu0 0
        %4691 = vmatprep.subr.bf16.mxu0 0
        %4692 = vmatpush1.bf16.msra.mxu0 0
        %4693 = vmatprep.subr.bf16.mxu0 0
        %4694 = vmatpush1.bf16.msra.mxu0 0
        %4695 = vmatprep.subr.bf16.mxu0 0
        %4696 = vmatpush1.bf16.msra.mxu0 0
        %4697 = vmatprep.subr.bf16.mxu0 0
        %4698 = vmatpush1.bf16.msra.mxu0 0
        %4699 = vmatprep.subr.bf16.mxu0 0
        %4700 = vmatpush1.bf16.msra.mxu0 0
        %4701 = vmatprep.subr.bf16.mxu0 0
        %4702 = vmatpush1.bf16.msra.mxu0 0
        %4703 = vmatprep.subr.bf16.mxu0 0
        %4704 = vmatpush1.bf16.msra.mxu0 0
        %4705 = vmatprep.subr.bf16.mxu0 0
        %4706 = vmatpush1.bf16.msra.mxu0 0
        %4707 = vmatprep.mubr.bf16.mxu0 0
        %4708 = vmatmul.mubr.bf16.gmra.mrb[0].mxu0 %v4664
        %v4709 = vpop.f32.mrb[0].mxu0
        %v4710 = vadd.f32 %v4649, %v4709
        %v4711 = vpop.f32.mrb[0].mxu0
        %v4712 = vpop.f32.mrb[0].mxu0
        %v4713 = vadd.f32 %v4649, %v4712
        %v4714 = vpop.f32.mrb[0].mxu0
        %4715 = vmatprep.mubr.bf16.mxu0 0
        %4716 = vmatmul.mubr.bf16.gmra.mrb[0].mxu0 %v4667
        %v4717 = vpop.f32.mrb[0].mxu0
        %v4718 = vadd.f32 %v4649, %v4717
        %v4719 = vpop.f32.mrb[0].mxu0
        %v4720 = vpop.f32.mrb[0].mxu0
        %v4721 = vadd.f32 %v4649, %v4720
        %v4722 = vpop.f32.mrb[0].mxu0
        %4723 = vmatprep.mubr.bf16.mxu0 0
        %4724 = vmatmul.mubr.bf16.gmra.mrb[0].mxu0 %v4670
        %v4725 = vpop.f32.mrb[0].mxu0
        %v4726 = vadd.f32 %v4649, %v4725
        %v4727 = vpop.f32.mrb[0].mxu0
        %v4728 = vpop.f32.mrb[0].mxu0
        %v4729 = vadd.f32 %v4649, %v4728
        %v4730 = vpop.f32.mrb[0].mxu0
        %4731 = vmatprep.mubr.bf16.mxu0 0
        %4732 = vmatmul.mubr.bf16.gmra.mrb[0].mxu0 %v4673
        %v4733 = vpop.f32.mrb[0].mxu0
        %v4734 = vadd.f32 %v4649, %v4733
        %v4735 = vpop.f32.mrb[0].mxu0
        %v4736 = vpop.f32.mrb[0].mxu0
        %v4737 = vadd.f32 %v4649, %v4736
        %v4738 = vpop.f32.mrb[0].mxu0
        %4739 = vdwg.mxu0
        %v4740 = vadd.f32 %v680, %v4710
        %v4741 = vadd.f32 %v681, %v4713
        %v4742 = vadd.f32 %v682, %v4718
        %v4743 = vadd.f32 %v683, %v4721
        %v4744 = vadd.f32 %v684, %v4726
        %v4745 = vadd.f32 %v685, %v4729
        %v4746 = vadd.f32 %v686, %v4734
        %v4747 = vadd.f32 %v687, %v4737
        %v4748 = vsel %vm688, %v4740, 0.0
        %4749 = vadd.xlane.f32.xlu0 %v4748
        %v4750 = vpop.xlane.xlu0 %4749
        %v4751 = vsel %vm688, %v4741, 0.0
        %4752 = vadd.xlane.f32.xlu0 %v4751
        %v4753 = vpop.xlane.xlu0 %4752
        %v4754 = vsel %vm688, %v4742, 0.0
        %4755 = vadd.xlane.f32.xlu0 %v4754
        %v4756 = vpop.xlane.xlu0 %4755
        %v4757 = vsel %vm688, %v4743, 0.0
        %4758 = vadd.xlane.f32.xlu0 %v4757
        %v4759 = vpop.xlane.xlu0 %4758
        %v4760 = vsel %vm688, %v4744, 0.0
        %4761 = vadd.xlane.f32.xlu0 %v4760
        %v4762 = vpop.xlane.xlu0 %4761
        %v4763 = vsel %vm688, %v4745, 0.0
        %4764 = vadd.xlane.f32.xlu0 %v4763
        %v4765 = vpop.xlane.xlu0 %4764
        %v4766 = vsel %vm688, %v4746, 0.0
        %4767 = vadd.xlane.f32.xlu0 %v4766
        %v4768 = vpop.xlane.xlu0 %4767
        %v4769 = vsel %vm688, %v4747, 0.0
        %4770 = vadd.xlane.f32.xlu0 %v4769
        %v4771 = vpop.xlane.xlu0 %4770
        %v4772 = vmul.f32 %v4750, %v713
        %v4773 = vmul.f32 %v4753, %v713
        %v4774 = vmul.f32 %v4756, %v713
        %v4775 = vmul.f32 %v4759, %v713
        %v4776 = vmul.f32 %v4762, %v713
        %v4777 = vmul.f32 %v4765, %v713
        %v4778 = vmul.f32 %v4768, %v713
        %v4779 = vmul.f32 %v4771, %v713
        %v4780 = vsub.f32 %v4740, %v4772
        %v4781 = vsub.f32 %v4741, %v4773
        %v4782 = vsub.f32 %v4742, %v4774
        %v4783 = vsub.f32 %v4743, %v4775
        %v4784 = vsub.f32 %v4744, %v4776
        %v4785 = vsub.f32 %v4745, %v4777
        %v4786 = vsub.f32 %v4746, %v4778
        %v4787 = vsub.f32 %v4747, %v4779
        %v4788 = vmul.f32 %v4780, %v4780
        %v4789 = vmul.f32 %v4781, %v4781
        %v4790 = vmul.f32 %v4782, %v4782
        %v4791 = vmul.f32 %v4783, %v4783
        %v4792 = vmul.f32 %v4784, %v4784
        %v4793 = vmul.f32 %v4785, %v4785
        %v4794 = vmul.f32 %v4786, %v4786
        %v4795 = vmul.f32 %v4787, %v4787
        %v4796 = vsel %vm688, %v4788, 0.0
        %4797 = vadd.xlane.f32.xlu0 %v4796
        %v4798 = vpop.xlane.xlu0 %4797
        %v4799 = vsel %vm688, %v4789, 0.0
        %4800 = vadd.xlane.f32.xlu0 %v4799
        %v4801 = vpop.xlane.xlu0 %4800
        %v4802 = vsel %vm688, %v4790, 0.0
        %4803 = vadd.xlane.f32.xlu0 %v4802
        %v4804 = vpop.xlane.xlu0 %4803
        %v4805 = vsel %vm688, %v4791, 0.0
        %4806 = vadd.xlane.f32.xlu0 %v4805
        %v4807 = vpop.xlane.xlu0 %4806
        %v4808 = vsel %vm688, %v4792, 0.0
        %4809 = vadd.xlane.f32.xlu0 %v4808
        %v4810 = vpop.xlane.xlu0 %4809
        %v4811 = vsel %vm688, %v4793, 0.0
        %4812 = vadd.xlane.f32.xlu0 %v4811
        %v4813 = vpop.xlane.xlu0 %4812
        %v4814 = vsel %vm688, %v4794, 0.0
        %4815 = vadd.xlane.f32.xlu0 %v4814
        %v4816 = vpop.xlane.xlu0 %4815
        %v4817 = vsel %vm688, %v4795, 0.0
        %4818 = vadd.xlane.f32.xlu0 %v4817
        %v4819 = vpop.xlane.xlu0 %4818
        %v4820 = vmul.f32 %v4798, %v713
        %v4821 = vmul.f32 %v4801, %v713
        %v4822 = vmul.f32 %v4804, %v713
        %v4823 = vmul.f32 %v4807, %v713
        %v4824 = vmul.f32 %v4810, %v713
        %v4825 = vmul.f32 %v4813, %v713
        %v4826 = vmul.f32 %v4816, %v713
        %v4827 = vmul.f32 %v4819, %v713
        %v4828 = vadd.f32 %v4820, 1e-05
        %v4829 = vadd.f32 %v4821, 1e-05
        %v4830 = vadd.f32 %v4822, 1e-05
        %v4831 = vadd.f32 %v4823, 1e-05
        %v4832 = vadd.f32 %v4824, 1e-05
        %v4833 = vadd.f32 %v4825, 1e-05
        %v4834 = vadd.f32 %v4826, 1e-05
        %v4835 = vadd.f32 %v4827, 1e-05
        %v4836 = vrsqrt.pop %v4828
        %v4837 = vrsqrt.pop %v4829
        %v4838 = vrsqrt.pop %v4830
        %v4839 = vrsqrt.pop %v4831
        %v4840 = vrsqrt.pop %v4832
        %v4841 = vrsqrt.pop %v4833
        %v4842 = vrsqrt.pop %v4834
        %v4843 = vrsqrt.pop %v4835
        %v4844 = vmul.f32 %v4780, %v4836
        %v4845 = vmul.f32 %v4781, %v4837
        %v4846 = vmul.f32 %v4782, %v4838
        %v4847 = vmul.f32 %v4783, %v4839
        %v4848 = vmul.f32 %v4784, %v4840
        %v4849 = vmul.f32 %v4785, %v4841
        %v4850 = vmul.f32 %v4786, %v4842
        %v4851 = vmul.f32 %v4787, %v4843
        %v4852 = vlaneseq
        %v4853 = vshrl.u32 %v4852, 7
        %v4854 = vsub.s32 2, %v4853
        %v4855 = vrot.slane %v679, %v4854
        %v4856 = vmul.f32 %v4844, %v4855
        %v4857 = vmul.f32 %v4845, %v4855
        %v4858 = vmul.f32 %v4846, %v4855
        %v4859 = vmul.f32 %v4847, %v4855
        %v4860 = vmul.f32 %v4848, %v4855
        %v4861 = vmul.f32 %v4849, %v4855
        %v4862 = vmul.f32 %v4850, %v4855
        %v4863 = vmul.f32 %v4851, %v4855
        %v4864 = vlaneseq
        %v4865 = vshrl.u32 %v4864, 7
        %v4866 = vsub.s32 3, %v4865
        %v4867 = vrot.slane %v679, %v4866
        %v4868 = vadd.f32 %v4856, %v4867
        %v4869 = vadd.f32 %v4857, %v4867
        %v4870 = vadd.f32 %v4858, %v4867
        %v4871 = vadd.f32 %v4859, %v4867
        %v4872 = vadd.f32 %v4860, %v4867
        %v4873 = vadd.f32 %v4861, %v4867
        %v4874 = vadd.f32 %v4862, %v4867
        %v4875 = vadd.f32 %v4863, %v4867
        %v4876 = vpack.c.bf16 %v4869, %v4868
        %v4877 = vpack.c.bf16 %v4871, %v4870
        %v4878 = vpack.c.bf16 %v4873, %v4872
        %v4879 = vpack.c.bf16 %v4875, %v4874
        %v4880 = vld [vmem:[%s618] sm:$0xf]
        %v4881 = vld [vmem:[%s618 + $0x4] sm:$0xf]
        %v4882 = vld [vmem:[%s618 + $0x8] sm:$0xf]
        %v4883 = vld [vmem:[%s618 + $0xc] sm:$0xf]
        %v4884 = vld [vmem:[%s632] sm:$0x1]
        %v4886 = vlaneseq
        %v4887 = vshrl.u32 %v4886, 7
        %v4888 = vsub.s32 0, %v4887
        %v4889 = vrot.slane %v4884, %v4888
        %v4895 = vunpack.c.l.b16 %v4880
        %v4896 = vunpack.c.l.b16 %v4881
        %v4897 = vunpack.c.l.b16 %v4882
        %v4898 = vunpack.c.l.b16 %v4883
        %v4899 = vpack.c.b16 %v4896, %v4895
        %v4900 = vpack.c.b16 %v4898, %v4897
        %v4904 = vsel %vm688, %v4876, 0
        %v4907 = vsel %vm688, %v4877, 0
        %v4910 = vsel %vm688, %v4878, 0
        %v4913 = vsel %vm688, %v4879, 0
        %4915 = vmatprep.subr.bf16.mxu0 0
        %4916 = vmatpush1.bf16.msra.mxu0 %v4899
        %4917 = vmatprep.subr.bf16.mxu0 0
        %4918 = vmatpush1.bf16.msra.mxu0 %v4900
        %4919 = vmatprep.subr.bf16.mxu0 0
        %4920 = vmatpush1.bf16.msra.mxu0 0
        %4921 = vmatprep.subr.bf16.mxu0 0
        %4922 = vmatpush1.bf16.msra.mxu0 0
        %4923 = vmatprep.subr.bf16.mxu0 0
        %4924 = vmatpush1.bf16.msra.mxu0 0
        %4925 = vmatprep.subr.bf16.mxu0 0
        %4926 = vmatpush1.bf16.msra.mxu0 0
        %4927 = vmatprep.subr.bf16.mxu0 0
        %4928 = vmatpush1.bf16.msra.mxu0 0
        %4929 = vmatprep.subr.bf16.mxu0 0
        %4930 = vmatpush1.bf16.msra.mxu0 0
        %4931 = vmatprep.subr.bf16.mxu0 0
        %4932 = vmatpush1.bf16.msra.mxu0 0
        %4933 = vmatprep.subr.bf16.mxu0 0
        %4934 = vmatpush1.bf16.msra.mxu0 0
        %4935 = vmatprep.subr.bf16.mxu0 0
        %4936 = vmatpush1.bf16.msra.mxu0 0
        %4937 = vmatprep.subr.bf16.mxu0 0
        %4938 = vmatpush1.bf16.msra.mxu0 0
        %4939 = vmatprep.subr.bf16.mxu0 0
        %4940 = vmatpush1.bf16.msra.mxu0 0
        %4941 = vmatprep.subr.bf16.mxu0 0
        %4942 = vmatpush1.bf16.msra.mxu0 0
        %4943 = vmatprep.subr.bf16.mxu0 0
        %4944 = vmatpush1.bf16.msra.mxu0 0
        %4945 = vmatprep.subr.bf16.mxu0 0
        %4946 = vmatpush1.bf16.msra.mxu0 0
        %4947 = vmatprep.mubr.bf16.mxu0 0
        %4948 = vmatmul.mubr.bf16.gmra.mrb[0].mxu0 %v4904
        %v4949 = vpop.f32.mrb[0].mxu0
        %v4950 = vadd.f32 %v4889, %v4949
        %v4951 = vpop.f32.mrb[0].mxu0
        %v4952 = vpop.f32.mrb[0].mxu0
        %v4953 = vadd.f32 %v4889, %v4952
        %v4954 = vpop.f32.mrb[0].mxu0
        %4955 = vmatprep.mubr.bf16.mxu0 0
        %4956 = vmatmul.mubr.bf16.gmra.mrb[0].mxu0 %v4907
        %v4957 = vpop.f32.mrb[0].mxu0
        %v4958 = vadd.f32 %v4889, %v4957
        %v4959 = vpop.f32.mrb[0].mxu0
        %v4960 = vpop.f32.mrb[0].mxu0
        %v4961 = vadd.f32 %v4889, %v4960
        %v4962 = vpop.f32.mrb[0].mxu0
        %4963 = vmatprep.mubr.bf16.mxu0 0
        %4964 = vmatmul.mubr.bf16.gmra.mrb[0].mxu0 %v4910
        %v4965 = vpop.f32.mrb[0].mxu0
        %v4966 = vadd.f32 %v4889, %v4965
        %v4967 = vpop.f32.mrb[0].mxu0
        %v4968 = vpop.f32.mrb[0].mxu0
        %v4969 = vadd.f32 %v4889, %v4968
        %v4970 = vpop.f32.mrb[0].mxu0
        %4971 = vmatprep.mubr.bf16.mxu0 0
        %4972 = vmatmul.mubr.bf16.gmra.mrb[0].mxu0 %v4913
        %v4973 = vpop.f32.mrb[0].mxu0
        %v4974 = vadd.f32 %v4889, %v4973
        %v4975 = vpop.f32.mrb[0].mxu0
        %v4976 = vpop.f32.mrb[0].mxu0
        %v4977 = vadd.f32 %v4889, %v4976
        %v4978 = vpop.f32.mrb[0].mxu0
        %4979 = vdwg.mxu0
        %v4980 = vmul.f32 %v4950, 1.702
        %v4981 = vmul.f32 %v4953, 1.702
        %v4982 = vmul.f32 %v4958, 1.702
        %v4983 = vmul.f32 %v4961, 1.702
        %v4984 = vmul.f32 %v4966, 1.702
        %v4985 = vmul.f32 %v4969, 1.702
        %v4986 = vmul.f32 %v4974, 1.702
        %v4987 = vmul.f32 %v4977, 1.702
        %v4988 = vpack.c.bf16 %v4981, %v4980
        %v4989 = vpack.c.bf16 %v4983, %v4982
        %v4990 = vpack.c.bf16 %v4985, %v4984
        %v4991 = vpack.c.bf16 %v4987, %v4986
        %v4992 = vxor.u32 %v4988, 2147516416
        %v4993 = vxor.u32 %v4989, 2147516416
        %v4994 = vxor.u32 %v4990, 2147516416
        %v4995 = vxor.u32 %v4991, 2147516416
        %v4997 = vmul.bf16 %v4992, 1069105081
        %v4998 = vpow.bf16.pop %v4997
        %v5000 = vmul.bf16 %v4993, 1069105081
        %v5001 = vpow.bf16.pop %v5000
        %v5003 = vmul.bf16 %v4994, 1069105081
        %v5004 = vpow.bf16.pop %v5003
        %v5006 = vmul.bf16 %v4995, 1069105081
        %v5007 = vpow.bf16.pop %v5006
        %v5008 = vadd.bf16 %v4998, 1065369472
        %v5009 = vadd.bf16 %v5001, 1065369472
        %v5010 = vadd.bf16 %v5004, 1065369472
        %v5011 = vadd.bf16 %v5007, 1065369472
        %v5012 = vrcp.bf16.pop %v5008
        %v5013 = vmul.bf16 1065369472, %v5012
        %v5014 = vrcp.bf16.pop %v5009
        %v5015 = vmul.bf16 1065369472, %v5014
        %v5016 = vrcp.bf16.pop %v5010
        %v5017 = vmul.bf16 1065369472, %v5016
        %v5018 = vrcp.bf16.pop %v5011
        %v5019 = vmul.bf16 1065369472, %v5018
        %v5020 = vunpack.c.l.bf16 %v5013
        %v5021 = vunpack.c.h.bf16 %v5013
        %v5022 = vunpack.c.l.bf16 %v5015
        %v5023 = vunpack.c.h.bf16 %v5015
        %v5024 = vunpack.c.l.bf16 %v5017
        %v5025 = vunpack.c.h.bf16 %v5017
        %v5026 = vunpack.c.l.bf16 %v5019
        %v5027 = vunpack.c.h.bf16 %v5019
        %v5028 = vmul.f32 %v4950, %v5020
        %v5029 = vmul.f32 %v4953, %v5021
        %v5030 = vmul.f32 %v4958, %v5022
        %v5031 = vmul.f32 %v4961, %v5023
        %v5032 = vmul.f32 %v4966, %v5024
        %v5033 = vmul.f32 %v4969, %v5025
        %v5034 = vmul.f32 %v4974, %v5026
        %v5035 = vmul.f32 %v4977, %v5027
        %v5036 = vpack.c.bf16 %v5029, %v5028
        %v5037 = vpack.c.bf16 %v5031, %v5030
        %v5038 = vpack.c.bf16 %v5033, %v5032
        %v5039 = vpack.c.bf16 %v5035, %v5034
        %v5040 = vld [vmem:[%s623] sm:$0xf]
        %v5041 = vld [vmem:[%s623 + $0x4] sm:$0xf]
        %v5042 = vld [vmem:[%s623 + $0x8] sm:$0xf]
        %v5043 = vld [vmem:[%s623 + $0xc] sm:$0xf]
        %v5044 = vld [vmem:[%s623 + $0x10] sm:$0xf]
        %v5045 = vld [vmem:[%s623 + $0x14] sm:$0xf]
        %v5046 = vld [vmem:[%s623 + $0x18] sm:$0xf]
        %v5047 = vld [vmem:[%s623 + $0x1c] sm:$0xf]
        %v5048 = vld [vmem:[%s623 + $0x20] sm:$0xf]
        %v5049 = vld [vmem:[%s623 + $0x24] sm:$0xf]
        %v5050 = vld [vmem:[%s623 + $0x28] sm:$0xf]
        %v5051 = vld [vmem:[%s623 + $0x2c] sm:$0xf]
        %v5052 = vld [vmem:[%s623 + $0x30] sm:$0xf]
        %v5053 = vld [vmem:[%s623 + $0x34] sm:$0xf]
        %v5054 = vld [vmem:[%s623 + $0x38] sm:$0xf]
        %v5055 = vld [vmem:[%s623 + $0x3c] sm:$0xf]
        %v5056 = vld [vmem:[%s635] sm:$0x1]
        %v5058 = vlaneseq
        %v5059 = vshrl.u32 %v5058, 7
        %v5060 = vsub.s32 0, %v5059
        %v5061 = vrot.slane %v5056, %v5060
        %v5079 = vunpack.c.l.b16 %v5040
        %v5080 = vunpack.c.l.b16 %v5041
        %v5081 = vunpack.c.l.b16 %v5042
        %v5082 = vunpack.c.l.b16 %v5043
        %v5083 = vunpack.c.l.b16 %v5044
        %v5084 = vunpack.c.l.b16 %v5045
        %v5085 = vunpack.c.l.b16 %v5046
        %v5086 = vunpack.c.l.b16 %v5047
        %v5087 = vunpack.c.l.b16 %v5048
        %v5088 = vunpack.c.l.b16 %v5049
        %v5089 = vunpack.c.l.b16 %v5050
        %v5090 = vunpack.c.l.b16 %v5051
        %v5091 = vunpack.c.l.b16 %v5052
        %v5092 = vunpack.c.l.b16 %v5053
        %v5093 = vunpack.c.l.b16 %v5054
        %v5094 = vunpack.c.l.b16 %v5055
        %v5095 = vpack.c.b16 %v5080, %v5079
        %v5096 = vpack.c.b16 %v5082, %v5081
        %v5097 = vpack.c.b16 %v5084, %v5083
        %v5098 = vpack.c.b16 %v5086, %v5085
        %v5099 = vpack.c.b16 %v5088, %v5087
        %v5100 = vpack.c.b16 %v5090, %v5089
        %v5101 = vpack.c.b16 %v5092, %v5091
        %v5102 = vpack.c.b16 %v5094, %v5093
        %5111 = vmatprep.subr.bf16.mxu0 0
        %5112 = vmatpush1.bf16.msra.mxu0 %v5095
        %5113 = vmatprep.subr.bf16.mxu0 0
        %5114 = vmatpush1.bf16.msra.mxu0 %v5096
        %5115 = vmatprep.subr.bf16.mxu0 0
        %5116 = vmatpush1.bf16.msra.mxu0 %v5097
        %5117 = vmatprep.subr.bf16.mxu0 0
        %5118 = vmatpush1.bf16.msra.mxu0 %v5098
        %5119 = vmatprep.subr.bf16.mxu0 0
        %5120 = vmatpush1.bf16.msra.mxu0 %v5099
        %5121 = vmatprep.subr.bf16.mxu0 0
        %5122 = vmatpush1.bf16.msra.mxu0 %v5100
        %5123 = vmatprep.subr.bf16.mxu0 0
        %5124 = vmatpush1.bf16.msra.mxu0 %v5101
        %5125 = vmatprep.subr.bf16.mxu0 0
        %5126 = vmatpush1.bf16.msra.mxu0 %v5102
        %5127 = vmatprep.subr.bf16.mxu0 0
        %5128 = vmatpush1.bf16.msra.mxu0 0
        %5129 = vmatprep.subr.bf16.mxu0 0
        %5130 = vmatpush1.bf16.msra.mxu0 0
        %5131 = vmatprep.subr.bf16.mxu0 0
        %5132 = vmatpush1.bf16.msra.mxu0 0
        %5133 = vmatprep.subr.bf16.mxu0 0
        %5134 = vmatpush1.bf16.msra.mxu0 0
        %5135 = vmatprep.subr.bf16.mxu0 0
        %5136 = vmatpush1.bf16.msra.mxu0 0
        %5137 = vmatprep.subr.bf16.mxu0 0
        %5138 = vmatpush1.bf16.msra.mxu0 0
        %5139 = vmatprep.subr.bf16.mxu0 0
        %5140 = vmatpush1.bf16.msra.mxu0 0
        %5141 = vmatprep.subr.bf16.mxu0 0
        %5142 = vmatpush1.bf16.msra.mxu0 0
        %5143 = vmatprep.mubr.bf16.mxu0 0
        %5144 = vmatmul.mubr.bf16.gmra.mrb[0].mxu0 %v5036
        %v5145 = vpop.f32.mrb[0].mxu0
        %v5146 = vadd.f32 %v5061, %v5145
        %v5147 = vpop.f32.mrb[0].mxu0
        %v5148 = vpop.f32.mrb[0].mxu0
        %v5149 = vadd.f32 %v5061, %v5148
        %v5150 = vpop.f32.mrb[0].mxu0
        %5151 = vmatprep.mubr.bf16.mxu0 0
        %5152 = vmatmul.mubr.bf16.gmra.mrb[0].mxu0 %v5037
        %v5153 = vpop.f32.mrb[0].mxu0
        %v5154 = vadd.f32 %v5061, %v5153
        %v5155 = vpop.f32.mrb[0].mxu0
        %v5156 = vpop.f32.mrb[0].mxu0
        %v5157 = vadd.f32 %v5061, %v5156
        %v5158 = vpop.f32.mrb[0].mxu0
        %5159 = vmatprep.mubr.bf16.mxu0 0
        %5160 = vmatmul.mubr.bf16.gmra.mrb[0].mxu0 %v5038
        %v5161 = vpop.f32.mrb[0].mxu0
        %v5162 = vadd.f32 %v5061, %v5161
        %v5163 = vpop.f32.mrb[0].mxu0
        %v5164 = vpop.f32.mrb[0].mxu0
        %v5165 = vadd.f32 %v5061, %v5164
        %v5166 = vpop.f32.mrb[0].mxu0
        %5167 = vmatprep.mubr.bf16.mxu0 0
        %5168 = vmatmul.mubr.bf16.gmra.mrb[0].mxu0 %v5039
        %v5169 = vpop.f32.mrb[0].mxu0
        %v5170 = vadd.f32 %v5061, %v5169
        %v5171 = vpop.f32.mrb[0].mxu0
        %v5172 = vpop.f32.mrb[0].mxu0
        %v5173 = vadd.f32 %v5061, %v5172
        %v5174 = vpop.f32.mrb[0].mxu0
        %5175 = vdwg.mxu0
        %v5176 = vadd.f32 %v4740, %v5146
        %v5177 = vadd.f32 %v4741, %v5149
        %v5178 = vadd.f32 %v4742, %v5154
        %v5179 = vadd.f32 %v4743, %v5157
        %v5180 = vadd.f32 %v4744, %v5162
        %v5181 = vadd.f32 %v4745, %v5165
        %v5182 = vadd.f32 %v4746, %v5170
        %v5183 = vadd.f32 %v4747, %v5173
        %5184 = vst.msk [vmem:[#allocation2] sm:$0xff] %vm688, %v5176
        %5185 = vst.msk [vmem:[#allocation2 + $0x8] sm:$0xff] %vm688, %v5177
        %5186 = vst.msk [vmem:[#allocation2 + $0x10] sm:$0xff] %vm688, %v5178
        %5187 = vst.msk [vmem:[#allocation2 + $0x18] sm:$0xff] %vm688, %v5179
        %5188 = vst.msk [vmem:[#allocation2 + $0x20] sm:$0xff] %vm688, %v5180
        %5189 = vst.msk [vmem:[#allocation2 + $0x28] sm:$0xff] %vm688, %v5181
        %5190 = vst.msk [vmem:[#allocation2 + $0x30] sm:$0xff] %vm688, %v5182
        %5191 = vst.msk [vmem:[#allocation2 + $0x38] sm:$0xff] %vm688, %v5183
        %p5192 = scmp.eq.s32.totalorder %s40, 1
        // Predicated region
        $region81: #{tpu_custom_call.1} parent=75 // pred_check
          %p5193 = pneg %p5192
        $region82: #{tpu_custom_call.1} parent=75 // pred_check_branch
          %5195 = sbr.rel (%p5193) target = $region84
        $region83: #{tpu_custom_call.1} parent=75 // pred_region
          loop: start=0, step=1, limit=8
          $region85: #{tpu_custom_call.1} parent=83 // loop_pre_header
            _
          $region86: #{tpu_custom_call.1} parent=83 // loop_header
            %s5197 = sphi 0, %s5201
            %p5198 = scmp.ge.s32.totalorder %s5197, 8
          $region87: #{tpu_custom_call.1} parent=83 // loop_header_branch
            %5200 = sbr.rel (%p5198) target = $region91
          $region88: #{tpu_custom_call.1} parent=83 // loop_body
            %s5202 = smul.u32 %s39, 8
            %s5203 = sadd.s32 %s5202, %s5197
            %s5204 = smul.u32 %s5197, 8
            %s5205 = sld [smem:[#allocation5 + %s5203]]
            %s5206 = sadd.s32 %s5204, %s5205
            %s5207 = scalar_lea.vmem [#allocation2], %s5206
            %v5208 = vld [vmem:[%s5207] sm:$0x1]
            %s5209 = scalar_lea.vmem [#allocation3], %s5197
            %vm5210 = vcmask 253952
            %5211 = vst.msk [vmem:[%s5209] sm:$0x1] %vm5210, %v5208
          $region89: #{tpu_custom_call.1} parent=83 // loop_footer
            %s5201 = sadd.s32 1, %s5197
          $region90: #{tpu_custom_call.1} parent=83 // loop_footer_branch
            %5196 = sbr.rel target = $region86
          $region91: #{tpu_custom_call.1} parent=83 // loop_exit
            _
          %v5212 = vld [vmem:[#allocation3] sm:$0xff]
          %v5213 = vld [vmem:[%s12] sm:$0x1]
          %v5214 = vld [vmem:[%s13] sm:$0x1]
          %v5215 = vsel %vm688, %v5212, 0.0
          %5216 = vadd.xlane.f32.xlu0 %v5215
          %v5217 = vpop.xlane.xlu0 %5216
          %v5218 = vmul.f32 %v5217, %v713
          %v5219 = vsub.f32 %v5212, %v5218
          %v5220 = vmul.f32 %v5219, %v5219
          %v5221 = vsel %vm688, %v5220, 0.0
          %5222 = vadd.xlane.f32.xlu0 %v5221
          %v5223 = vpop.xlane.xlu0 %5222
          %v5224 = vmul.f32 %v5223, %v713
          %v5225 = vadd.f32 %v5224, 1e-05
          %v5226 = vrsqrt.pop %v5225
          %v5227 = vmul.f32 %v5219, %v5226
          %v5229 = vlaneseq
          %v5230 = vshrl.u32 %v5229, 7
          %v5231 = vsub.s32 0, %v5230
          %v5232 = vrot.slane %v5213, %v5231
          %v5234 = vmul.f32 %v5227, %v5232
          %v5236 = vlaneseq
          %v5237 = vshrl.u32 %v5236, 7
          %v5238 = vsub.s32 0, %v5237
          %v5239 = vrot.slane %v5214, %v5238
          %v5241 = vadd.f32 %v5234, %v5239
          %v5242 = vpack.c.bf16 %v5241, %v5241
          %v5243 = vld [vmem:[%s14] sm:$0xf]
          %v5244 = vld [vmem:[%s14 + $0x4] sm:$0xf]
          %v5245 = vld [vmem:[%s14 + $0x8] sm:$0xf]
          %v5246 = vld [vmem:[%s14 + $0xc] sm:$0xf]
          %v5251 = vunpack.c.l.b16 %v5243
          %v5252 = vunpack.c.l.b16 %v5244
          %v5253 = vunpack.c.l.b16 %v5245
          %v5254 = vunpack.c.l.b16 %v5246
          %v5255 = vpack.c.b16 %v5252, %v5251
          %v5256 = vpack.c.b16 %v5254, %v5253
          %v5260 = vsel %vm688, %v5242, 0
          %5262 = vmatprep.subr.bf16.mxu0 0
          %5263 = vmatpush1.bf16.msra.mxu0 %v5255
          %5264 = vmatprep.subr.bf16.mxu0 0
          %5265 = vmatpush1.bf16.msra.mxu0 %v5256
          %5266 = vmatprep.subr.bf16.mxu0 0
          %5267 = vmatpush1.bf16.msra.mxu0 0
          %5268 = vmatprep.subr.bf16.mxu0 0
          %5269 = vmatpush1.bf16.msra.mxu0 0
          %5270 = vmatprep.subr.bf16.mxu0 0
          %5271 = vmatpush1.bf16.msra.mxu0 0
          %5272 = vmatprep.subr.bf16.mxu0 0
          %5273 = vmatpush1.bf16.msra.mxu0 0
          %5274 = vmatprep.subr.bf16.mxu0 0
          %5275 = vmatpush1.bf16.msra.mxu0 0
          %5276 = vmatprep.subr.bf16.mxu0 0
          %5277 = vmatpush1.bf16.msra.mxu0 0
          %5278 = vmatprep.subr.bf16.mxu0 0
          %5279 = vmatpush1.bf16.msra.mxu0 0
          %5280 = vmatprep.subr.bf16.mxu0 0
          %5281 = vmatpush1.bf16.msra.mxu0 0
          %5282 = vmatprep.subr.bf16.mxu0 0
          %5283 = vmatpush1.bf16.msra.mxu0 0
          %5284 = vmatprep.subr.bf16.mxu0 0
          %5285 = vmatpush1.bf16.msra.mxu0 0
          %5286 = vmatprep.subr.bf16.mxu0 0
          %5287 = vmatpush1.bf16.msra.mxu0 0
          %5288 = vmatprep.subr.bf16.mxu0 0
          %5289 = vmatpush1.bf16.msra.mxu0 0
          %5290 = vmatprep.subr.bf16.mxu0 0
          %5291 = vmatpush1.bf16.msra.mxu0 0
          %5292 = vmatprep.subr.bf16.mxu0 0
          %5293 = vmatpush1.bf16.msra.mxu0 0
          %5294 = vmatprep.mubr.bf16.mxu0 0
          %5295 = vmatmul.mubr.bf16.gmra.mrb[0].mxu0 %v5260
          %v5296 = vpop.f32.mrb[0].mxu0
          %v5297 = vadd.f32 0.0, %v5296
          %v5298 = vpop.f32.mrb[0].mxu0
          %v5299 = vpop.f32.mrb[0].mxu0
          %v5300 = vpop.f32.mrb[0].mxu0
          %5301 = vdwg.mxu0
          %5302 = vst.msk [vmem:[%s597] sm:$0xff] %vm688, %v5297
        $region84: #{tpu_custom_call.1} parent=75 // pred_fallthru
          _
        %s5303 = sand.u32 %s399, 1
        %s5304 = scalar_lea.sflag [#allocation7], %s5303
        %s5305 = sand.u32 %s399, 1
        %s5306 = smul.addr %s5305, 8
        %s5307 = scalar_lea.vmem [#allocation6], %s5306
        // Predicated region
        $region92: #{tpu_custom_call.1} parent=75 // pred_check
          %p5308 = pneg %p409
        $region93: #{tpu_custom_call.1} parent=75 // pred_check_branch
          %5310 = sbr.rel (%p5308) target = $region95
        $region94: #{tpu_custom_call.1} parent=75 // pred_region
          %s5312 = ssub.s32 128, 128
          %5313 = vsyncadd %s5304, %s5312
          %s5314 = smul.addr %s39, 128
          %s5315 = scalar_lea.hbm %s15, %s5314
          %s5317 = sshll.u32 %s5307, 4
          %s5318 = int_to_ptr.vmem [resolvable:$true] %s5317
          %5320 = dma.vmem_to_hbm [thread:$0]  %s5318, 128, %s5315, %s5304
        $region95: #{tpu_custom_call.1} parent=75 // pred_fallthru
          _
      $region76: #{tpu_custom_call.1} parent=5 // pred_fallthru
        _
      %p5321 = scmp.le.s32.totalorder 2, %s30
      // Predicated region
      $region96: #{tpu_custom_call.1} parent=5 // pred_check
        %p5322 = pneg %p5321
      $region97: #{tpu_custom_call.1} parent=5 // pred_check_branch
        %5324 = sbr.rel (%p5322) target = $region99
      $region98: #{tpu_custom_call.1} parent=5 // pred_region
        %s5325 = ssub.s32 %s30, 2
        // Predicated region
        $region100: #{tpu_custom_call.1} parent=98 // pred_check
          %p5326 = pneg %p415
        $region101: #{tpu_custom_call.1} parent=98 // pred_check_branch
          %5328 = sbr.rel (%p5326) target = $region103
        $region102: #{tpu_custom_call.1} parent=98 // pred_region
          %s5329 = sand.u32 %s400, 1
          %s5330 = scalar_lea.sflag [#allocation7], %s5329
          %s5331 = sand.u32 %s400, 1
          %s5332 = smul.addr %s5331, 8
          %s5333 = scalar_lea.vmem [#allocation6], %s5332
          %5334 = dma.done %s5330, 128
        $region103: #{tpu_custom_call.1} parent=98 // pred_fallthru
          _
      $region99: #{tpu_custom_call.1} parent=5 // pred_fallthru
        _
    $region6: #{tpu_custom_call.1} parent=1 // loop_footer
      %s34 = sadd.s32 1, %s30
    $region7: #{tpu_custom_call.1} parent=1 // loop_footer_branch
      %29 = sbr.rel target = $region3
    $region8: #{tpu_custom_call.1} parent=1 // loop_exit
      _
    %5335 = vsyncpa [#allocation7], 1
    %s5336 = scalar_lea.sflag [#allocation7], 1
    %5337 = vsyncpa %s5336, 1

</llo_original>
